<compile_context>
chip_gen: v6e
topology: v6e:2x2x1
jax: 0.10.0
libtpu: 0.0.40
codegen_flags: <defaults>
</compile_context>

<pallas_src>
import jax
import jax.numpy as jnp
from jax.experimental import pallas as pl
from jax.experimental.pallas import tpu as pltpu

# ---- hyperparameters (small, consistent with the module's __init__) ----
NUM_CLASSES   = 1
INPUT_SIZE    = 8
HIDDEN_SIZE   = 32
NUM_LAYERS    = 2
SEQ_LENGTH    = 16
OTHER_DIM     = 4
HIDDEN_NODES  = 16
LINEAR_LAYERS = 2
CHANNELS      = 4
KERNEL_SIZE   = 8
CONV_DIM1     = SEQ_LENGTH - (KERNEL_SIZE - 1)     # = 9
BATCH         = 2
CONV_FEAT     = CHANNELS * CONV_DIM1               # = 36
FEAT_IN       = CONV_FEAT + OTHER_DIM              # = 40
DEC_OUT       = INPUT_SIZE * SEQ_LENGTH            # = 128


def convlstm_kernel(x_seq_ref, x_other_ref, w_toep_ref,
                    dec_wc_ref, dec_wo_ref, dec_b_ref, *rest):
    # rest = [wih_T, whh_T, bias]*NUM_LAYERS + head params + [out_ref, x0_scr, h_scr]
    lstm_refs = rest[:3 * NUM_LAYERS]
    head_refs = rest[3 * NUM_LAYERS:-3]
    out_ref   = rest[-3]
    x0_scr    = rest[-2]
    h_scr     = rest[-1]

    B = x_seq_ref.shape[0]
    T = SEQ_LENGTH
    H = HIDDEN_SIZE
    I = INPUT_SIZE

    # --- Conv1d(1, C, K, bias=False) + ReLU + Flatten as one Toeplitz matmul ---
    conv_flat = jnp.maximum(
        jnp.dot(x_seq_ref[...], w_toep_ref[...],
                preferred_element_type=jnp.float32), 0.0)              # (B, C*D1)

    # --- decode Linear + ReLU (dropout = identity); concat avoided via split W ---
    z = (jnp.dot(conv_flat, dec_wc_ref[...], preferred_element_type=jnp.float32)
         + jnp.dot(x_other_ref[...], dec_wo_ref[...], preferred_element_type=jnp.float32)
         + dec_b_ref[...])
    z = jnp.maximum(z, 0.0)                                            # (B, T*I)

    # --- rearrange decode output into a time-major (T*B, I) slab (one-time) ---
    for t in range(T):
        x0_scr[t * B:(t + 1) * B, :] = z[:, t * I:(t + 1) * I]
    x_all = x0_scr[...]                                                # (T*B, I)

    # --- multi-layer unidirectional LSTM, h0 = c0 = 0, gate order i,f,g,o ---
    for l in range(NUM_LAYERS):
        wih_T = lstm_refs[3 * l + 0][...]                              # (Din, 4H)
        whh_T = lstm_refs[3 * l + 1][...]                              # (H,   4H)
        bias  = lstm_refs[3 * l + 2][...]                              # (1,   4H)

        # hoisted input projection: ONE matmul + ONE bias add per layer
        gx = jnp.dot(x_all, wih_T, preferred_element_type=jnp.float32) + bias  # (T*B, 4H)

        h = jnp.zeros((B, H), jnp.float32)
        c = jnp.zeros((B, H), jnp.float32)
        for t in range(T):
            # only the recurrent matmul sits on the serial path
            g = gx[t * B:(t + 1) * B, :] + jnp.dot(
                h, whh_T, preferred_element_type=jnp.float32)          # (B, 4H)
            sig = jax.nn.sigmoid(g)                                    # full-width EUP op
            th  = jnp.tanh(g)                                          # full-width EUP op
            i_g = sig[:, 0 * H:1 * H]
            f_g = sig[:, 1 * H:2 * H]
            g_g = th[:,  2 * H:3 * H]
            o_g = sig[:, 3 * H:4 * H]
            c = f_g * c + i_g * g_g
            h = o_g * jnp.tanh(c)
            h_scr[t * B:(t + 1) * B, :] = h                            # bound live ranges
        # time-major (T*B, H) slab for next layer / head; inter-layer dropout = identity
        x_all = h_scr[...]

    # --- linear head on the contiguous (T*B, H) slab ---
    y = x_all
    n_hidden = LINEAR_LAYERS - 1
    for i in range(n_hidden):
        w = head_refs[2 * i][...]
        b = head_refs[2 * i + 1][...]
        y = jnp.maximum(jnp.dot(y, w, preferred_element_type=jnp.float32) + b, 0.0)
    w = head_refs[2 * n_hidden][...]
    b = head_refs[2 * n_hidden + 1][...]
    y = jnp.dot(y, w, preferred_element_type=jnp.float32) + b          # (T*B, NC)

    out_ref[...] = y                                                   # time-major


def _toeplitz_conv_weight(conv_w):
    """(C, K) Conv1d weight -> (T, C*D1) Toeplitz matrix in torch Flatten (c, d) order."""
    t_idx = jnp.arange(SEQ_LENGTH)[:, None]        # (T, 1)
    d_idx = jnp.arange(CONV_DIM1)[None, :]         # (1, D1)
    k = t_idx - d_idx                              # (T, D1): tap index for (t, d)
    valid = (k >= 0) & (k < KERNEL_SIZE)
    kc = jnp.clip(k, 0, KERNEL_SIZE - 1)
    w = conv_w[:, kc]                              # (C, T, D1)
    w = jnp.where(valid[None, :, :], w, 0.0)
    return jnp.transpose(w, (1, 0, 2)).reshape(SEQ_LENGTH, CONV_FEAT)


def init_params(key):
    """Deterministic synthetic parameters (stored pre-transposed for x @ W)."""
    ks = iter(jax.random.split(key, 32))
    p = []

    # Conv1d weight (C, 1, K) -> (C, K)
    p.append(0.1 * jax.random.normal(next(ks), (CHANNELS, KERNEL_SIZE), jnp.float32))

    # decode Linear: torch weight (DEC_OUT, FEAT_IN) -> transposed (FEAT_IN, DEC_OUT)
    p.append(0.1 * jax.random.normal(next(ks), (FEAT_IN, DEC_OUT), jnp.float32))
    p.append(0.1 * jax.random.normal(next(ks), (1, DEC_OUT), jnp.float32))

    # LSTM layers
    for l in range(NUM_LAYERS):
        din = INPUT_SIZE if l == 0 else HIDDEN_SIZE
        p.append(0.1 * jax.random.normal(next(ks), (din, 4 * HIDDEN_SIZE), jnp.float32))          # W_ih^T
        p.append(0.1 * jax.random.normal(next(ks), (HIDDEN_SIZE, 4 * HIDDEN_SIZE), jnp.float32))  # W_hh^T
        b_ih = 0.1 * jax.random.normal(next(ks), (4 * HIDDEN_SIZE,), jnp.float32)
        b_hh = 0.1 * jax.random.normal(next(ks), (4 * HIDDEN_SIZE,), jnp.float32)
        p.append((b_ih + b_hh)[None, :])

    # linear head
    p.append(0.1 * jax.random.normal(next(ks), (HIDDEN_SIZE, HIDDEN_NODES), jnp.float32))
    p.append(0.1 * jax.random.normal(next(ks), (1, HIDDEN_NODES), jnp.float32))
    p.append(0.1 * jax.random.normal(next(ks), (HIDDEN_NODES, NUM_CLASSES), jnp.float32))
    p.append(0.1 * jax.random.normal(next(ks), (1, NUM_CLASSES), jnp.float32))
    return p


@jax.jit
def convlstm_forward(x, *params):
    conv_w, dec_w, dec_b = params[0], params[1], params[2]
    rest = list(params[3:])

    B = x.shape[0]
    x_other = x[:, :OTHER_DIM]
    x_seq   = x[:, OTHER_DIM:]

    # wrapper-side weight prep (layout/structure only, no per-step compute)
    w_toep = _toeplitz_conv_weight(conv_w)         # (T, C*D1)
    dec_wc = dec_w[:CONV_FEAT, :]                  # (C*D1, T*I) — conv features
    dec_wo = dec_w[CONV_FEAT:, :]                  # (OD,   T*I) — other features

    inputs = [x_seq, x_other, w_toep, dec_wc, dec_wo, dec_b] + rest
    vmem_specs = [pl.BlockSpec(memory_space=pltpu.MemorySpace.VMEM) for _ in inputs]

    # TODO(synk): if batch grows, add a batch-tile grid with
    # dimension_semantics=("parallel",) so v7x's second TensorCore is used.
    y = pl.pallas_call(
        convlstm_kernel,
        out_shape=jax.ShapeDtypeStruct((SEQ_LENGTH * B, NUM_CLASSES), jnp.float32),
        in_specs=vmem_specs,
        out_specs=pl.BlockSpec(memory_space=pltpu.MemorySpace.VMEM),
        scratch_shapes=[
            pltpu.VMEM((SEQ_LENGTH * B, INPUT_SIZE), jnp.float32),   # x0_scr (time-major)
            pltpu.VMEM((SEQ_LENGTH * B, HIDDEN_SIZE), jnp.float32),  # h_scr  (time-major)
        ],
    )(*inputs)

    # time-major (T*B, 1) -> (B, T): pure layout plumbing in the wrapper.
    return y.reshape(SEQ_LENGTH, B).T


if __name__ == "__main__":
    key = jax.random.PRNGKey(0)
    k_x, k_p = jax.random.split(key)
    # x: (batch, other_dim + seq_length)
    x = jax.random.normal(k_x, (BATCH, OTHER_DIM + SEQ_LENGTH), jnp.float32)
    params = init_params(k_p)

    out = convlstm_forward(x, *params)
    jax.block_until_ready(out)
    assert out.shape == (BATCH, SEQ_LENGTH), out.shape
    print("KERNEL_OK")
</pallas_src>

<mosaic_0001>
module attributes {stable_mosaic.version = 11 : i64} {
  func.func @convlstm_kernel(%arg0: memref<2x16xf32, #tpu.memory_space<vmem>>, %arg1: memref<2x4xf32, #tpu.memory_space<vmem>>, %arg2: memref<16x36xf32, #tpu.memory_space<vmem>>, %arg3: memref<36x128xf32, #tpu.memory_space<vmem>>, %arg4: memref<4x128xf32, #tpu.memory_space<vmem>>, %arg5: memref<1x128xf32, #tpu.memory_space<vmem>>, %arg6: memref<8x128xf32, #tpu.memory_space<vmem>>, %arg7: memref<32x128xf32, #tpu.memory_space<vmem>>, %arg8: memref<1x128xf32, #tpu.memory_space<vmem>>, %arg9: memref<32x128xf32, #tpu.memory_space<vmem>>, %arg10: memref<32x128xf32, #tpu.memory_space<vmem>>, %arg11: memref<1x128xf32, #tpu.memory_space<vmem>>, %arg12: memref<32x16xf32, #tpu.memory_space<vmem>>, %arg13: memref<1x16xf32, #tpu.memory_space<vmem>>, %arg14: memref<16x1xf32, #tpu.memory_space<vmem>>, %arg15: memref<1x1xf32, #tpu.memory_space<vmem>>, %arg16: memref<32x1xf32, #tpu.memory_space<vmem>>, %arg17: memref<32x8xf32, #tpu.memory_space<vmem>>, %arg18: memref<32x32xf32, #tpu.memory_space<vmem>>) attributes {dimension_semantics = [], scalar_prefetch = 0 : i64, scratch_operands = 2 : i64, tpu.core_type = #tpu.core_type<tc>} {
    %c0 = arith.constant 0 : index
    %c0_0 = arith.constant 0 : index
    %0 = vector.load %arg0[%c0, %c0_0] : memref<2x16xf32, #tpu.memory_space<vmem>>, vector<2x16xf32>
    %c0_1 = arith.constant 0 : index
    %c0_2 = arith.constant 0 : index
    %1 = vector.load %arg2[%c0_1, %c0_2] : memref<16x36xf32, #tpu.memory_space<vmem>>, vector<16x36xf32>
    %cst = arith.constant dense<0.000000e+00> : vector<2x36xf32>
    %2 = tpu.matmul %0, %1, %cst {dimension_numbers = #tpu.dot_dimension_numbers<[1], [0], [0], [1], [0, 0, 1, 1], [], []>} : vector<2x16xf32>, vector<16x36xf32>, vector<2x36xf32> -> vector<2x36xf32>
    %cst_3 = arith.constant 0.000000e+00 : f32
    %3 = vector.broadcast %cst_3 : f32 to vector<2x36xf32>
    %4 = arith.maximumf %2, %3 : vector<2x36xf32>
    %c0_4 = arith.constant 0 : index
    %c0_5 = arith.constant 0 : index
    %5 = vector.load %arg3[%c0_4, %c0_5] : memref<36x128xf32, #tpu.memory_space<vmem>>, vector<36x128xf32>
    %cst_6 = arith.constant dense<0.000000e+00> : vector<2x128xf32>
    %6 = tpu.matmul %4, %5, %cst_6 {dimension_numbers = #tpu.dot_dimension_numbers<[1], [0], [0], [1], [0, 0, 1, 1], [], []>} : vector<2x36xf32>, vector<36x128xf32>, vector<2x128xf32> -> vector<2x128xf32>
    %c0_7 = arith.constant 0 : index
    %c0_8 = arith.constant 0 : index
    %7 = vector.load %arg1[%c0_7, %c0_8] : memref<2x4xf32, #tpu.memory_space<vmem>>, vector<2x4xf32>
    %c0_9 = arith.constant 0 : index
    %c0_10 = arith.constant 0 : index
    %8 = vector.load %arg4[%c0_9, %c0_10] : memref<4x128xf32, #tpu.memory_space<vmem>>, vector<4x128xf32>
    %cst_11 = arith.constant dense<0.000000e+00> : vector<2x128xf32>
    %9 = tpu.matmul %7, %8, %cst_11 {dimension_numbers = #tpu.dot_dimension_numbers<[1], [0], [0], [1], [0, 0, 1, 1], [], []>} : vector<2x4xf32>, vector<4x128xf32>, vector<2x128xf32> -> vector<2x128xf32>
    %10 = arith.addf %6, %9 : vector<2x128xf32>
    %c0_12 = arith.constant 0 : index
    %c0_13 = arith.constant 0 : index
    %11 = vector.load %arg5[%c0_12, %c0_13] : memref<1x128xf32, #tpu.memory_space<vmem>>, vector<1x128xf32>
    %12 = vector.broadcast %11 : vector<1x128xf32> to vector<2x128xf32>
    %13 = arith.addf %10, %12 : vector<2x128xf32>
    %cst_14 = arith.constant 0.000000e+00 : f32
    %14 = vector.broadcast %cst_14 : f32 to vector<2x128xf32>
    %15 = arith.maximumf %13, %14 : vector<2x128xf32>
    %16 = vector.extract_strided_slice %15 {offsets = [0, 0], sizes = [2, 8], strides = [1, 1]} : vector<2x128xf32> to vector<2x8xf32>
    %c0_15 = arith.constant 0 : index
    %c0_16 = arith.constant 0 : index
    %17 = vector.load %arg17[%c0_15, %c0_16] : memref<32x8xf32, #tpu.memory_space<vmem>>, vector<2x8xf32>
    tpu.vector_store %arg17[%c0_15, %c0_16], %16 {strides = array<i32>} : memref<32x8xf32, #tpu.memory_space<vmem>>, vector<2x8xf32>,
    %18 = vector.extract_strided_slice %15 {offsets = [0, 8], sizes = [2, 8], strides = [1, 1]} : vector<2x128xf32> to vector<2x8xf32>
    %c2 = arith.constant 2 : index
    %c0_17 = arith.constant 0 : index
    %19 = vector.load %arg17[%c2, %c0_17] : memref<32x8xf32, #tpu.memory_space<vmem>>, vector<2x8xf32>
    tpu.vector_store %arg17[%c2, %c0_17], %18 {strides = array<i32>} : memref<32x8xf32, #tpu.memory_space<vmem>>, vector<2x8xf32>,
    %20 = vector.extract_strided_slice %15 {offsets = [0, 16], sizes = [2, 8], strides = [1, 1]} : vector<2x128xf32> to vector<2x8xf32>
    %c4 = arith.constant 4 : index
    %c0_18 = arith.constant 0 : index
    %21 = vector.load %arg17[%c4, %c0_18] : memref<32x8xf32, #tpu.memory_space<vmem>>, vector<2x8xf32>
    tpu.vector_store %arg17[%c4, %c0_18], %20 {strides = array<i32>} : memref<32x8xf32, #tpu.memory_space<vmem>>, vector<2x8xf32>,
    %22 = vector.extract_strided_slice %15 {offsets = [0, 24], sizes = [2, 8], strides = [1, 1]} : vector<2x128xf32> to vector<2x8xf32>
    %c6 = arith.constant 6 : index
    %c0_19 = arith.constant 0 : index
    %23 = vector.load %arg17[%c6, %c0_19] : memref<32x8xf32, #tpu.memory_space<vmem>>, vector<2x8xf32>
    tpu.vector_store %arg17[%c6, %c0_19], %22 {strides = array<i32>} : memref<32x8xf32, #tpu.memory_space<vmem>>, vector<2x8xf32>,
    %24 = vector.extract_strided_slice %15 {offsets = [0, 32], sizes = [2, 8], strides = [1, 1]} : vector<2x128xf32> to vector<2x8xf32>
    %c8 = arith.constant 8 : index
    %c0_20 = arith.constant 0 : index
    %25 = vector.load %arg17[%c8, %c0_20] : memref<32x8xf32, #tpu.memory_space<vmem>>, vector<2x8xf32>
    tpu.vector_store %arg17[%c8, %c0_20], %24 {strides = array<i32>} : memref<32x8xf32, #tpu.memory_space<vmem>>, vector<2x8xf32>,
    %26 = vector.extract_strided_slice %15 {offsets = [0, 40], sizes = [2, 8], strides = [1, 1]} : vector<2x128xf32> to vector<2x8xf32>
    %c10 = arith.constant 10 : index
    %c0_21 = arith.constant 0 : index
    %27 = vector.load %arg17[%c10, %c0_21] : memref<32x8xf32, #tpu.memory_space<vmem>>, vector<2x8xf32>
    tpu.vector_store %arg17[%c10, %c0_21], %26 {strides = array<i32>} : memref<32x8xf32, #tpu.memory_space<vmem>>, vector<2x8xf32>,
    %28 = vector.extract_strided_slice %15 {offsets = [0, 48], sizes = [2, 8], strides = [1, 1]} : vector<2x128xf32> to vector<2x8xf32>
    %c12 = arith.constant 12 : index
    %c0_22 = arith.constant 0 : index
    %29 = vector.load %arg17[%c12, %c0_22] : memref<32x8xf32, #tpu.memory_space<vmem>>, vector<2x8xf32>
    tpu.vector_store %arg17[%c12, %c0_22], %28 {strides = array<i32>} : memref<32x8xf32, #tpu.memory_space<vmem>>, vector<2x8xf32>,
    %30 = vector.extract_strided_slice %15 {offsets = [0, 56], sizes = [2, 8], strides = [1, 1]} : vector<2x128xf32> to vector<2x8xf32>
    %c14 = arith.constant 14 : index
    %c0_23 = arith.constant 0 : index
    %31 = vector.load %arg17[%c14, %c0_23] : memref<32x8xf32, #tpu.memory_space<vmem>>, vector<2x8xf32>
    tpu.vector_store %arg17[%c14, %c0_23], %30 {strides = array<i32>} : memref<32x8xf32, #tpu.memory_space<vmem>>, vector<2x8xf32>,
    %32 = vector.extract_strided_slice %15 {offsets = [0, 64], sizes = [2, 8], strides = [1, 1]} : vector<2x128xf32> to vector<2x8xf32>
    %c16 = arith.constant 16 : index
    %c0_24 = arith.constant 0 : index
    %33 = vector.load %arg17[%c16, %c0_24] : memref<32x8xf32, #tpu.memory_space<vmem>>, vector<2x8xf32>
    tpu.vector_store %arg17[%c16, %c0_24], %32 {strides = array<i32>} : memref<32x8xf32, #tpu.memory_space<vmem>>, vector<2x8xf32>,
    %34 = vector.extract_strided_slice %15 {offsets = [0, 72], sizes = [2, 8], strides = [1, 1]} : vector<2x128xf32> to vector<2x8xf32>
    %c18 = arith.constant 18 : index
    %c0_25 = arith.constant 0 : index
    %35 = vector.load %arg17[%c18, %c0_25] : memref<32x8xf32, #tpu.memory_space<vmem>>, vector<2x8xf32>
    tpu.vector_store %arg17[%c18, %c0_25], %34 {strides = array<i32>} : memref<32x8xf32, #tpu.memory_space<vmem>>, vector<2x8xf32>,
    %36 = vector.extract_strided_slice %15 {offsets = [0, 80], sizes = [2, 8], strides = [1, 1]} : vector<2x128xf32> to vector<2x8xf32>
    %c20 = arith.constant 20 : index
    %c0_26 = arith.constant 0 : index
    %37 = vector.load %arg17[%c20, %c0_26] : memref<32x8xf32, #tpu.memory_space<vmem>>, vector<2x8xf32>
    tpu.vector_store %arg17[%c20, %c0_26], %36 {strides = array<i32>} : memref<32x8xf32, #tpu.memory_space<vmem>>, vector<2x8xf32>,
    %38 = vector.extract_strided_slice %15 {offsets = [0, 88], sizes = [2, 8], strides = [1, 1]} : vector<2x128xf32> to vector<2x8xf32>
    %c22 = arith.constant 22 : index
    %c0_27 = arith.constant 0 : index
    %39 = vector.load %arg17[%c22, %c0_27] : memref<32x8xf32, #tpu.memory_space<vmem>>, vector<2x8xf32>
    tpu.vector_store %arg17[%c22, %c0_27], %38 {strides = array<i32>} : memref<32x8xf32, #tpu.memory_space<vmem>>, vector<2x8xf32>,
    %40 = vector.extract_strided_slice %15 {offsets = [0, 96], sizes = [2, 8], strides = [1, 1]} : vector<2x128xf32> to vector<2x8xf32>
    %c24 = arith.constant 24 : index
    %c0_28 = arith.constant 0 : index
    %41 = vector.load %arg17[%c24, %c0_28] : memref<32x8xf32, #tpu.memory_space<vmem>>, vector<2x8xf32>
    tpu.vector_store %arg17[%c24, %c0_28], %40 {strides = array<i32>} : memref<32x8xf32, #tpu.memory_space<vmem>>, vector<2x8xf32>,
    %42 = vector.extract_strided_slice %15 {offsets = [0, 104], sizes = [2, 8], strides = [1, 1]} : vector<2x128xf32> to vector<2x8xf32>
    %c26 = arith.constant 26 : index
    %c0_29 = arith.constant 0 : index
    %43 = vector.load %arg17[%c26, %c0_29] : memref<32x8xf32, #tpu.memory_space<vmem>>, vector<2x8xf32>
    tpu.vector_store %arg17[%c26, %c0_29], %42 {strides = array<i32>} : memref<32x8xf32, #tpu.memory_space<vmem>>, vector<2x8xf32>,
    %44 = vector.extract_strided_slice %15 {offsets = [0, 112], sizes = [2, 8], strides = [1, 1]} : vector<2x128xf32> to vector<2x8xf32>
    %c28 = arith.constant 28 : index
    %c0_30 = arith.constant 0 : index
    %45 = vector.load %arg17[%c28, %c0_30] : memref<32x8xf32, #tpu.memory_space<vmem>>, vector<2x8xf32>
    tpu.vector_store %arg17[%c28, %c0_30], %44 {strides = array<i32>} : memref<32x8xf32, #tpu.memory_space<vmem>>, vector<2x8xf32>,
    %46 = vector.extract_strided_slice %15 {offsets = [0, 120], sizes = [2, 8], strides = [1, 1]} : vector<2x128xf32> to vector<2x8xf32>
    %c30 = arith.constant 30 : index
    %c0_31 = arith.constant 0 : index
    %47 = vector.load %arg17[%c30, %c0_31] : memref<32x8xf32, #tpu.memory_space<vmem>>, vector<2x8xf32>
    tpu.vector_store %arg17[%c30, %c0_31], %46 {strides = array<i32>} : memref<32x8xf32, #tpu.memory_space<vmem>>, vector<2x8xf32>,
    %c0_32 = arith.constant 0 : index
    %c0_33 = arith.constant 0 : index
    %48 = vector.load %arg17[%c0_32, %c0_33] : memref<32x8xf32, #tpu.memory_space<vmem>>, vector<32x8xf32>
    %c0_34 = arith.constant 0 : index
    %c0_35 = arith.constant 0 : index
    %49 = vector.load %arg6[%c0_34, %c0_35] : memref<8x128xf32, #tpu.memory_space<vmem>>, vector<8x128xf32>
    %c0_36 = arith.constant 0 : index
    %c0_37 = arith.constant 0 : index
    %50 = vector.load %arg7[%c0_36, %c0_37] : memref<32x128xf32, #tpu.memory_space<vmem>>, vector<32x128xf32>
    %c0_38 = arith.constant 0 : index
    %c0_39 = arith.constant 0 : index
    %51 = vector.load %arg8[%c0_38, %c0_39] : memref<1x128xf32, #tpu.memory_space<vmem>>, vector<1x128xf32>
    %cst_40 = arith.constant dense<0.000000e+00> : vector<32x128xf32>
    %52 = tpu.matmul %48, %49, %cst_40 {dimension_numbers = #tpu.dot_dimension_numbers<[1], [0], [0], [1], [0, 0, 1, 1], [], []>} : vector<32x8xf32>, vector<8x128xf32>, vector<32x128xf32> -> vector<32x128xf32>
    %53 = vector.broadcast %51 : vector<1x128xf32> to vector<32x128xf32>
    %54 = arith.addf %52, %53 : vector<32x128xf32>
    %cst_41 = arith.constant 0.000000e+00 : f32
    %55 = vector.broadcast %cst_41 : f32 to vector<2x32xf32>
    %cst_42 = arith.constant 0.000000e+00 : f32
    %56 = vector.broadcast %cst_42 : f32 to vector<2x32xf32>
    %57 = vector.extract_strided_slice %54 {offsets = [0, 0], sizes = [2, 128], strides = [1, 1]} : vector<32x128xf32> to vector<2x128xf32>
    %cst_43 = arith.constant dense<0.000000e+00> : vector<2x128xf32>
    %58 = tpu.matmul %55, %50, %cst_43 {dimension_numbers = #tpu.dot_dimension_numbers<[1], [0], [0], [1], [0, 0, 1, 1], [], []>} : vector<2x32xf32>, vector<32x128xf32>, vector<2x128xf32> -> vector<2x128xf32>
    %59 = arith.addf %57, %58 : vector<2x128xf32>
    %60 = arith.negf %59 : vector<2x128xf32>
    %61 = math.exp %60 : vector<2x128xf32>
    %cst_44 = arith.constant 1.000000e+00 : f32
    %62 = vector.broadcast %cst_44 : f32 to vector<2x128xf32>
    %63 = arith.addf %62, %61 : vector<2x128xf32>
    %64 = arith.divf %62, %63 : vector<2x128xf32>
    %65 = math.tanh %59 : vector<2x128xf32>
    %66 = vector.extract_strided_slice %64 {offsets = [0, 0], sizes = [2, 32], strides = [1, 1]} : vector<2x128xf32> to vector<2x32xf32>
    %67 = vector.extract_strided_slice %64 {offsets = [0, 32], sizes = [2, 32], strides = [1, 1]} : vector<2x128xf32> to vector<2x32xf32>
    %68 = vector.extract_strided_slice %65 {offsets = [0, 64], sizes = [2, 32], strides = [1, 1]} : vector<2x128xf32> to vector<2x32xf32>
    %69 = vector.extract_strided_slice %64 {offsets = [0, 96], sizes = [2, 32], strides = [1, 1]} : vector<2x128xf32> to vector<2x32xf32>
    %70 = arith.mulf %67, %56 : vector<2x32xf32>
    %71 = arith.mulf %66, %68 : vector<2x32xf32>
    %72 = arith.addf %70, %71 : vector<2x32xf32>
    %73 = math.tanh %72 : vector<2x32xf32>
    %74 = arith.mulf %69, %73 : vector<2x32xf32>
    %c0_45 = arith.constant 0 : index
    %c0_46 = arith.constant 0 : index
    %75 = vector.load %arg18[%c0_45, %c0_46] : memref<32x32xf32, #tpu.memory_space<vmem>>, vector<2x32xf32>
    tpu.vector_store %arg18[%c0_45, %c0_46], %74 {strides = array<i32>} : memref<32x32xf32, #tpu.memory_space<vmem>>, vector<2x32xf32>,
    %76 = vector.extract_strided_slice %54 {offsets = [2, 0], sizes = [2, 128], strides = [1, 1]} : vector<32x128xf32> to vector<2x128xf32>
    %cst_47 = arith.constant dense<0.000000e+00> : vector<2x128xf32>
    %77 = tpu.matmul %74, %50, %cst_47 {dimension_numbers = #tpu.dot_dimension_numbers<[1], [0], [0], [1], [0, 0, 1, 1], [], []>} : vector<2x32xf32>, vector<32x128xf32>, vector<2x128xf32> -> vector<2x128xf32>
    %78 = arith.addf %76, %77 : vector<2x128xf32>
    %79 = arith.negf %78 : vector<2x128xf32>
    %80 = math.exp %79 : vector<2x128xf32>
    %cst_48 = arith.constant 1.000000e+00 : f32
    %81 = vector.broadcast %cst_48 : f32 to vector<2x128xf32>
    %82 = arith.addf %81, %80 : vector<2x128xf32>
    %83 = arith.divf %81, %82 : vector<2x128xf32>
    %84 = math.tanh %78 : vector<2x128xf32>
    %85 = vector.extract_strided_slice %83 {offsets = [0, 0], sizes = [2, 32], strides = [1, 1]} : vector<2x128xf32> to vector<2x32xf32>
    %86 = vector.extract_strided_slice %83 {offsets = [0, 32], sizes = [2, 32], strides = [1, 1]} : vector<2x128xf32> to vector<2x32xf32>
    %87 = vector.extract_strided_slice %84 {offsets = [0, 64], sizes = [2, 32], strides = [1, 1]} : vector<2x128xf32> to vector<2x32xf32>
    %88 = vector.extract_strided_slice %83 {offsets = [0, 96], sizes = [2, 32], strides = [1, 1]} : vector<2x128xf32> to vector<2x32xf32>
    %89 = arith.mulf %86, %72 : vector<2x32xf32>
    %90 = arith.mulf %85, %87 : vector<2x32xf32>
    %91 = arith.addf %89, %90 : vector<2x32xf32>
    %92 = math.tanh %91 : vector<2x32xf32>
    %93 = arith.mulf %88, %92 : vector<2x32xf32>
    %c2_49 = arith.constant 2 : index
    %c0_50 = arith.constant 0 : index
    %94 = vector.load %arg18[%c2_49, %c0_50] : memref<32x32xf32, #tpu.memory_space<vmem>>, vector<2x32xf32>
    tpu.vector_store %arg18[%c2_49, %c0_50], %93 {strides = array<i32>} : memref<32x32xf32, #tpu.memory_space<vmem>>, vector<2x32xf32>,
    %95 = vector.extract_strided_slice %54 {offsets = [4, 0], sizes = [2, 128], strides = [1, 1]} : vector<32x128xf32> to vector<2x128xf32>
    %cst_51 = arith.constant dense<0.000000e+00> : vector<2x128xf32>
    %96 = tpu.matmul %93, %50, %cst_51 {dimension_numbers = #tpu.dot_dimension_numbers<[1], [0], [0], [1], [0, 0, 1, 1], [], []>} : vector<2x32xf32>, vector<32x128xf32>, vector<2x128xf32> -> vector<2x128xf32>
    %97 = arith.addf %95, %96 : vector<2x128xf32>
    %98 = arith.negf %97 : vector<2x128xf32>
    %99 = math.exp %98 : vector<2x128xf32>
    %cst_52 = arith.constant 1.000000e+00 : f32
    %100 = vector.broadcast %cst_52 : f32 to vector<2x128xf32>
    %101 = arith.addf %100, %99 : vector<2x128xf32>
    %102 = arith.divf %100, %101 : vector<2x128xf32>
    %103 = math.tanh %97 : vector<2x128xf32>
    %104 = vector.extract_strided_slice %102 {offsets = [0, 0], sizes = [2, 32], strides = [1, 1]} : vector<2x128xf32> to vector<2x32xf32>
    %105 = vector.extract_strided_slice %102 {offsets = [0, 32], sizes = [2, 32], strides = [1, 1]} : vector<2x128xf32> to vector<2x32xf32>
    %106 = vector.extract_strided_slice %103 {offsets = [0, 64], sizes = [2, 32], strides = [1, 1]} : vector<2x128xf32> to vector<2x32xf32>
    %107 = vector.extract_strided_slice %102 {offsets = [0, 96], sizes = [2, 32], strides = [1, 1]} : vector<2x128xf32> to vector<2x32xf32>
    %108 = arith.mulf %105, %91 : vector<2x32xf32>
    %109 = arith.mulf %104, %106 : vector<2x32xf32>
    %110 = arith.addf %108, %109 : vector<2x32xf32>
    %111 = math.tanh %110 : vector<2x32xf32>
    %112 = arith.mulf %107, %111 : vector<2x32xf32>
    %c4_53 = arith.constant 4 : index
    %c0_54 = arith.constant 0 : index
    %113 = vector.load %arg18[%c4_53, %c0_54] : memref<32x32xf32, #tpu.memory_space<vmem>>, vector<2x32xf32>
    tpu.vector_store %arg18[%c4_53, %c0_54], %112 {strides = array<i32>} : memref<32x32xf32, #tpu.memory_space<vmem>>, vector<2x32xf32>,
    %114 = vector.extract_strided_slice %54 {offsets = [6, 0], sizes = [2, 128], strides = [1, 1]} : vector<32x128xf32> to vector<2x128xf32>
    %cst_55 = arith.constant dense<0.000000e+00> : vector<2x128xf32>
    %115 = tpu.matmul %112, %50, %cst_55 {dimension_numbers = #tpu.dot_dimension_numbers<[1], [0], [0], [1], [0, 0, 1, 1], [], []>} : vector<2x32xf32>, vector<32x128xf32>, vector<2x128xf32> -> vector<2x128xf32>
    %116 = arith.addf %114, %115 : vector<2x128xf32>
    %117 = arith.negf %116 : vector<2x128xf32>
    %118 = math.exp %117 : vector<2x128xf32>
    %cst_56 = arith.constant 1.000000e+00 : f32
    %119 = vector.broadcast %cst_56 : f32 to vector<2x128xf32>
    %120 = arith.addf %119, %118 : vector<2x128xf32>
    %121 = arith.divf %119, %120 : vector<2x128xf32>
    %122 = math.tanh %116 : vector<2x128xf32>
    %123 = vector.extract_strided_slice %121 {offsets = [0, 0], sizes = [2, 32], strides = [1, 1]} : vector<2x128xf32> to vector<2x32xf32>
    %124 = vector.extract_strided_slice %121 {offsets = [0, 32], sizes = [2, 32], strides = [1, 1]} : vector<2x128xf32> to vector<2x32xf32>
    %125 = vector.extract_strided_slice %122 {offsets = [0, 64], sizes = [2, 32], strides = [1, 1]} : vector<2x128xf32> to vector<2x32xf32>
    %126 = vector.extract_strided_slice %121 {offsets = [0, 96], sizes = [2, 32], strides = [1, 1]} : vector<2x128xf32> to vector<2x32xf32>
    %127 = arith.mulf %124, %110 : vector<2x32xf32>
    %128 = arith.mulf %123, %125 : vector<2x32xf32>
    %129 = arith.addf %127, %128 : vector<2x32xf32>
    %130 = math.tanh %129 : vector<2x32xf32>
    %131 = arith.mulf %126, %130 : vector<2x32xf32>
    %c6_57 = arith.constant 6 : index
    %c0_58 = arith.constant 0 : index
    %132 = vector.load %arg18[%c6_57, %c0_58] : memref<32x32xf32, #tpu.memory_space<vmem>>, vector<2x32xf32>
    tpu.vector_store %arg18[%c6_57, %c0_58], %131 {strides = array<i32>} : memref<32x32xf32, #tpu.memory_space<vmem>>, vector<2x32xf32>,
    %133 = vector.extract_strided_slice %54 {offsets = [8, 0], sizes = [2, 128], strides = [1, 1]} : vector<32x128xf32> to vector<2x128xf32>
    %cst_59 = arith.constant dense<0.000000e+00> : vector<2x128xf32>
    %134 = tpu.matmul %131, %50, %cst_59 {dimension_numbers = #tpu.dot_dimension_numbers<[1], [0], [0], [1], [0, 0, 1, 1], [], []>} : vector<2x32xf32>, vector<32x128xf32>, vector<2x128xf32> -> vector<2x128xf32>
    %135 = arith.addf %133, %134 : vector<2x128xf32>
    %136 = arith.negf %135 : vector<2x128xf32>
    %137 = math.exp %136 : vector<2x128xf32>
    %cst_60 = arith.constant 1.000000e+00 : f32
    %138 = vector.broadcast %cst_60 : f32 to vector<2x128xf32>
    %139 = arith.addf %138, %137 : vector<2x128xf32>
    %140 = arith.divf %138, %139 : vector<2x128xf32>
    %141 = math.tanh %135 : vector<2x128xf32>
    %142 = vector.extract_strided_slice %140 {offsets = [0, 0], sizes = [2, 32], strides = [1, 1]} : vector<2x128xf32> to vector<2x32xf32>
    %143 = vector.extract_strided_slice %140 {offsets = [0, 32], sizes = [2, 32], strides = [1, 1]} : vector<2x128xf32> to vector<2x32xf32>
    %144 = vector.extract_strided_slice %141 {offsets = [0, 64], sizes = [2, 32], strides = [1, 1]} : vector<2x128xf32> to vector<2x32xf32>
    %145 = vector.extract_strided_slice %140 {offsets = [0, 96], sizes = [2, 32], strides = [1, 1]} : vector<2x128xf32> to vector<2x32xf32>
    %146 = arith.mulf %143, %129 : vector<2x32xf32>
    %147 = arith.mulf %142, %144 : vector<2x32xf32>
    %148 = arith.addf %146, %147 : vector<2x32xf32>
    %149 = math.tanh %148 : vector<2x32xf32>
    %150 = arith.mulf %145, %149 : vector<2x32xf32>
    %c8_61 = arith.constant 8 : index
    %c0_62 = arith.constant 0 : index
    %151 = vector.load %arg18[%c8_61, %c0_62] : memref<32x32xf32, #tpu.memory_space<vmem>>, vector<2x32xf32>
    tpu.vector_store %arg18[%c8_61, %c0_62], %150 {strides = array<i32>} : memref<32x32xf32, #tpu.memory_space<vmem>>, vector<2x32xf32>,
    %152 = vector.extract_strided_slice %54 {offsets = [10, 0], sizes = [2, 128], strides = [1, 1]} : vector<32x128xf32> to vector<2x128xf32>
    %cst_63 = arith.constant dense<0.000000e+00> : vector<2x128xf32>
    %153 = tpu.matmul %150, %50, %cst_63 {dimension_numbers = #tpu.dot_dimension_numbers<[1], [0], [0], [1], [0, 0, 1, 1], [], []>} : vector<2x32xf32>, vector<32x128xf32>, vector<2x128xf32> -> vector<2x128xf32>
    %154 = arith.addf %152, %153 : vector<2x128xf32>
    %155 = arith.negf %154 : vector<2x128xf32>
    %156 = math.exp %155 : vector<2x128xf32>
    %cst_64 = arith.constant 1.000000e+00 : f32
    %157 = vector.broadcast %cst_64 : f32 to vector<2x128xf32>
    %158 = arith.addf %157, %156 : vector<2x128xf32>
    %159 = arith.divf %157, %158 : vector<2x128xf32>
    %160 = math.tanh %154 : vector<2x128xf32>
    %161 = vector.extract_strided_slice %159 {offsets = [0, 0], sizes = [2, 32], strides = [1, 1]} : vector<2x128xf32> to vector<2x32xf32>
    %162 = vector.extract_strided_slice %159 {offsets = [0, 32], sizes = [2, 32], strides = [1, 1]} : vector<2x128xf32> to vector<2x32xf32>
    %163 = vector.extract_strided_slice %160 {offsets = [0, 64], sizes = [2, 32], strides = [1, 1]} : vector<2x128xf32> to vector<2x32xf32>
    %164 = vector.extract_strided_slice %159 {offsets = [0, 96], sizes = [2, 32], strides = [1, 1]} : vector<2x128xf32> to vector<2x32xf32>
    %165 = arith.mulf %162, %148 : vector<2x32xf32>
    %166 = arith.mulf %161, %163 : vector<2x32xf32>
    %167 = arith.addf %165, %166 : vector<2x32xf32>
    %168 = math.tanh %167 : vector<2x32xf32>
    %169 = arith.mulf %164, %168 : vector<2x32xf32>
    %c10_65 = arith.constant 10 : index
    %c0_66 = arith.constant 0 : index
    %170 = vector.load %arg18[%c10_65, %c0_66] : memref<32x32xf32, #tpu.memory_space<vmem>>, vector<2x32xf32>
    tpu.vector_store %arg18[%c10_65, %c0_66], %169 {strides = array<i32>} : memref<32x32xf32, #tpu.memory_space<vmem>>, vector<2x32xf32>,
    %171 = vector.extract_strided_slice %54 {offsets = [12, 0], sizes = [2, 128], strides = [1, 1]} : vector<32x128xf32> to vector<2x128xf32>
    %cst_67 = arith.constant dense<0.000000e+00> : vector<2x128xf32>
    %172 = tpu.matmul %169, %50, %cst_67 {dimension_numbers = #tpu.dot_dimension_numbers<[1], [0], [0], [1], [0, 0, 1, 1], [], []>} : vector<2x32xf32>, vector<32x128xf32>, vector<2x128xf32> -> vector<2x128xf32>
    %173 = arith.addf %171, %172 : vector<2x128xf32>
    %174 = arith.negf %173 : vector<2x128xf32>
    %175 = math.exp %174 : vector<2x128xf32>
    %cst_68 = arith.constant 1.000000e+00 : f32
    %176 = vector.broadcast %cst_68 : f32 to vector<2x128xf32>
    %177 = arith.addf %176, %175 : vector<2x128xf32>
    %178 = arith.divf %176, %177 : vector<2x128xf32>
    %179 = math.tanh %173 : vector<2x128xf32>
    %180 = vector.extract_strided_slice %178 {offsets = [0, 0], sizes = [2, 32], strides = [1, 1]} : vector<2x128xf32> to vector<2x32xf32>
    %181 = vector.extract_strided_slice %178 {offsets = [0, 32], sizes = [2, 32], strides = [1, 1]} : vector<2x128xf32> to vector<2x32xf32>
    %182 = vector.extract_strided_slice %179 {offsets = [0, 64], sizes = [2, 32], strides = [1, 1]} : vector<2x128xf32> to vector<2x32xf32>
    %183 = vector.extract_strided_slice %178 {offsets = [0, 96], sizes = [2, 32], strides = [1, 1]} : vector<2x128xf32> to vector<2x32xf32>
    %184 = arith.mulf %181, %167 : vector<2x32xf32>
    %185 = arith.mulf %180, %182 : vector<2x32xf32>
    %186 = arith.addf %184, %185 : vector<2x32xf32>
    %187 = math.tanh %186 : vector<2x32xf32>
    %188 = arith.mulf %183, %187 : vector<2x32xf32>
    %c12_69 = arith.constant 12 : index
    %c0_70 = arith.constant 0 : index
    %189 = vector.load %arg18[%c12_69, %c0_70] : memref<32x32xf32, #tpu.memory_space<vmem>>, vector<2x32xf32>
    tpu.vector_store %arg18[%c12_69, %c0_70], %188 {strides = array<i32>} : memref<32x32xf32, #tpu.memory_space<vmem>>, vector<2x32xf32>,
    %190 = vector.extract_strided_slice %54 {offsets = [14, 0], sizes = [2, 128], strides = [1, 1]} : vector<32x128xf32> to vector<2x128xf32>
    %cst_71 = arith.constant dense<0.000000e+00> : vector<2x128xf32>
    %191 = tpu.matmul %188, %50, %cst_71 {dimension_numbers = #tpu.dot_dimension_numbers<[1], [0], [0], [1], [0, 0, 1, 1], [], []>} : vector<2x32xf32>, vector<32x128xf32>, vector<2x128xf32> -> vector<2x128xf32>
    %192 = arith.addf %190, %191 : vector<2x128xf32>
    %193 = arith.negf %192 : vector<2x128xf32>
    %194 = math.exp %193 : vector<2x128xf32>
    %cst_72 = arith.constant 1.000000e+00 : f32
    %195 = vector.broadcast %cst_72 : f32 to vector<2x128xf32>
    %196 = arith.addf %195, %194 : vector<2x128xf32>
    %197 = arith.divf %195, %196 : vector<2x128xf32>
    %198 = math.tanh %192 : vector<2x128xf32>
    %199 = vector.extract_strided_slice %197 {offsets = [0, 0], sizes = [2, 32], strides = [1, 1]} : vector<2x128xf32> to vector<2x32xf32>
    %200 = vector.extract_strided_slice %197 {offsets = [0, 32], sizes = [2, 32], strides = [1, 1]} : vector<2x128xf32> to vector<2x32xf32>
    %201 = vector.extract_strided_slice %198 {offsets = [0, 64], sizes = [2, 32], strides = [1, 1]} : vector<2x128xf32> to vector<2x32xf32>
    %202 = vector.extract_strided_slice %197 {offsets = [0, 96], sizes = [2, 32], strides = [1, 1]} : vector<2x128xf32> to vector<2x32xf32>
    %203 = arith.mulf %200, %186 : vector<2x32xf32>
    %204 = arith.mulf %199, %201 : vector<2x32xf32>
    %205 = arith.addf %203, %204 : vector<2x32xf32>
    %206 = math.tanh %205 : vector<2x32xf32>
    %207 = arith.mulf %202, %206 : vector<2x32xf32>
    %c14_73 = arith.constant 14 : index
    %c0_74 = arith.constant 0 : index
    %208 = vector.load %arg18[%c14_73, %c0_74] : memref<32x32xf32, #tpu.memory_space<vmem>>, vector<2x32xf32>
    tpu.vector_store %arg18[%c14_73, %c0_74], %207 {strides = array<i32>} : memref<32x32xf32, #tpu.memory_space<vmem>>, vector<2x32xf32>,
    %209 = vector.extract_strided_slice %54 {offsets = [16, 0], sizes = [2, 128], strides = [1, 1]} : vector<32x128xf32> to vector<2x128xf32>
    %cst_75 = arith.constant dense<0.000000e+00> : vector<2x128xf32>
    %210 = tpu.matmul %207, %50, %cst_75 {dimension_numbers = #tpu.dot_dimension_numbers<[1], [0], [0], [1], [0, 0, 1, 1], [], []>} : vector<2x32xf32>, vector<32x128xf32>, vector<2x128xf32> -> vector<2x128xf32>
    %211 = arith.addf %209, %210 : vector<2x128xf32>
    %212 = arith.negf %211 : vector<2x128xf32>
    %213 = math.exp %212 : vector<2x128xf32>
    %cst_76 = arith.constant 1.000000e+00 : f32
    %214 = vector.broadcast %cst_76 : f32 to vector<2x128xf32>
    %215 = arith.addf %214, %213 : vector<2x128xf32>
    %216 = arith.divf %214, %215 : vector<2x128xf32>
    %217 = math.tanh %211 : vector<2x128xf32>
    %218 = vector.extract_strided_slice %216 {offsets = [0, 0], sizes = [2, 32], strides = [1, 1]} : vector<2x128xf32> to vector<2x32xf32>
    %219 = vector.extract_strided_slice %216 {offsets = [0, 32], sizes = [2, 32], strides = [1, 1]} : vector<2x128xf32> to vector<2x32xf32>
    %220 = vector.extract_strided_slice %217 {offsets = [0, 64], sizes = [2, 32], strides = [1, 1]} : vector<2x128xf32> to vector<2x32xf32>
    %221 = vector.extract_strided_slice %216 {offsets = [0, 96], sizes = [2, 32], strides = [1, 1]} : vector<2x128xf32> to vector<2x32xf32>
    %222 = arith.mulf %219, %205 : vector<2x32xf32>
    %223 = arith.mulf %218, %220 : vector<2x32xf32>
    %224 = arith.addf %222, %223 : vector<2x32xf32>
    %225 = math.tanh %224 : vector<2x32xf32>
    %226 = arith.mulf %221, %225 : vector<2x32xf32>
    %c16_77 = arith.constant 16 : index
    %c0_78 = arith.constant 0 : index
    %227 = vector.load %arg18[%c16_77, %c0_78] : memref<32x32xf32, #tpu.memory_space<vmem>>, vector<2x32xf32>
    tpu.vector_store %arg18[%c16_77, %c0_78], %226 {strides = array<i32>} : memref<32x32xf32, #tpu.memory_space<vmem>>, vector<2x32xf32>,
    %228 = vector.extract_strided_slice %54 {offsets = [18, 0], sizes = [2, 128], strides = [1, 1]} : vector<32x128xf32> to vector<2x128xf32>
    %cst_79 = arith.constant dense<0.000000e+00> : vector<2x128xf32>
    %229 = tpu.matmul %226, %50, %cst_79 {dimension_numbers = #tpu.dot_dimension_numbers<[1], [0], [0], [1], [0, 0, 1, 1], [], []>} : vector<2x32xf32>, vector<32x128xf32>, vector<2x128xf32> -> vector<2x128xf32>
    %230 = arith.addf %228, %229 : vector<2x128xf32>
    %231 = arith.negf %230 : vector<2x128xf32>
    %232 = math.exp %231 : vector<2x128xf32>
    %cst_80 = arith.constant 1.000000e+00 : f32
    %233 = vector.broadcast %cst_80 : f32 to vector<2x128xf32>
    %234 = arith.addf %233, %232 : vector<2x128xf32>
    %235 = arith.divf %233, %234 : vector<2x128xf32>
    %236 = math.tanh %230 : vector<2x128xf32>
    %237 = vector.extract_strided_slice %235 {offsets = [0, 0], sizes = [2, 32], strides = [1, 1]} : vector<2x128xf32> to vector<2x32xf32>
    %238 = vector.extract_strided_slice %235 {offsets = [0, 32], sizes = [2, 32], strides = [1, 1]} : vector<2x128xf32> to vector<2x32xf32>
    %239 = vector.extract_strided_slice %236 {offsets = [0, 64], sizes = [2, 32], strides = [1, 1]} : vector<2x128xf32> to vector<2x32xf32>
    %240 = vector.extract_strided_slice %235 {offsets = [0, 96], sizes = [2, 32], strides = [1, 1]} : vector<2x128xf32> to vector<2x32xf32>
    %241 = arith.mulf %238, %224 : vector<2x32xf32>
    %242 = arith.mulf %237, %239 : vector<2x32xf32>
    %243 = arith.addf %241, %242 : vector<2x32xf32>
    %244 = math.tanh %243 : vector<2x32xf32>
    %245 = arith.mulf %240, %244 : vector<2x32xf32>
    %c18_81 = arith.constant 18 : index
    %c0_82 = arith.constant 0 : index
    %246 = vector.load %arg18[%c18_81, %c0_82] : memref<32x32xf32, #tpu.memory_space<vmem>>, vector<2x32xf32>
    tpu.vector_store %arg18[%c18_81, %c0_82], %245 {strides = array<i32>} : memref<32x32xf32, #tpu.memory_space<vmem>>, vector<2x32xf32>,
    %247 = vector.extract_strided_slice %54 {offsets = [20, 0], sizes = [2, 128], strides = [1, 1]} : vector<32x128xf32> to vector<2x128xf32>
    %cst_83 = arith.constant dense<0.000000e+00> : vector<2x128xf32>
    %248 = tpu.matmul %245, %50, %cst_83 {dimension_numbers = #tpu.dot_dimension_numbers<[1], [0], [0], [1], [0, 0, 1, 1], [], []>} : vector<2x32xf32>, vector<32x128xf32>, vector<2x128xf32> -> vector<2x128xf32>
    %249 = arith.addf %247, %248 : vector<2x128xf32>
    %250 = arith.negf %249 : vector<2x128xf32>
    %251 = math.exp %250 : vector<2x128xf32>
    %cst_84 = arith.constant 1.000000e+00 : f32
    %252 = vector.broadcast %cst_84 : f32 to vector<2x128xf32>
    %253 = arith.addf %252, %251 : vector<2x128xf32>
    %254 = arith.divf %252, %253 : vector<2x128xf32>
    %255 = math.tanh %249 : vector<2x128xf32>
    %256 = vector.extract_strided_slice %254 {offsets = [0, 0], sizes = [2, 32], strides = [1, 1]} : vector<2x128xf32> to vector<2x32xf32>
    %257 = vector.extract_strided_slice %254 {offsets = [0, 32], sizes = [2, 32], strides = [1, 1]} : vector<2x128xf32> to vector<2x32xf32>
    %258 = vector.extract_strided_slice %255 {offsets = [0, 64], sizes = [2, 32], strides = [1, 1]} : vector<2x128xf32> to vector<2x32xf32>
    %259 = vector.extract_strided_slice %254 {offsets = [0, 96], sizes = [2, 32], strides = [1, 1]} : vector<2x128xf32> to vector<2x32xf32>
    %260 = arith.mulf %257, %243 : vector<2x32xf32>
    %261 = arith.mulf %256, %258 : vector<2x32xf32>
    %262 = arith.addf %260, %261 : vector<2x32xf32>
    %263 = math.tanh %262 : vector<2x32xf32>
    %264 = arith.mulf %259, %263 : vector<2x32xf32>
    %c20_85 = arith.constant 20 : index
    %c0_86 = arith.constant 0 : index
    %265 = vector.load %arg18[%c20_85, %c0_86] : memref<32x32xf32, #tpu.memory_space<vmem>>, vector<2x32xf32>
    tpu.vector_store %arg18[%c20_85, %c0_86], %264 {strides = array<i32>} : memref<32x32xf32, #tpu.memory_space<vmem>>, vector<2x32xf32>,
    %266 = vector.extract_strided_slice %54 {offsets = [22, 0], sizes = [2, 128], strides = [1, 1]} : vector<32x128xf32> to vector<2x128xf32>
    %cst_87 = arith.constant dense<0.000000e+00> : vector<2x128xf32>
    %267 = tpu.matmul %264, %50, %cst_87 {dimension_numbers = #tpu.dot_dimension_numbers<[1], [0], [0], [1], [0, 0, 1, 1], [], []>} : vector<2x32xf32>, vector<32x128xf32>, vector<2x128xf32> -> vector<2x128xf32>
    %268 = arith.addf %266, %267 : vector<2x128xf32>
    %269 = arith.negf %268 : vector<2x128xf32>
    %270 = math.exp %269 : vector<2x128xf32>
    %cst_88 = arith.constant 1.000000e+00 : f32
    %271 = vector.broadcast %cst_88 : f32 to vector<2x128xf32>
    %272 = arith.addf %271, %270 : vector<2x128xf32>
    %273 = arith.divf %271, %272 : vector<2x128xf32>
    %274 = math.tanh %268 : vector<2x128xf32>
    %275 = vector.extract_strided_slice %273 {offsets = [0, 0], sizes = [2, 32], strides = [1, 1]} : vector<2x128xf32> to vector<2x32xf32>
    %276 = vector.extract_strided_slice %273 {offsets = [0, 32], sizes = [2, 32], strides = [1, 1]} : vector<2x128xf32> to vector<2x32xf32>
    %277 = vector.extract_strided_slice %274 {offsets = [0, 64], sizes = [2, 32], strides = [1, 1]} : vector<2x128xf32> to vector<2x32xf32>
    %278 = vector.extract_strided_slice %273 {offsets = [0, 96], sizes = [2, 32], strides = [1, 1]} : vector<2x128xf32> to vector<2x32xf32>
    %279 = arith.mulf %276, %262 : vector<2x32xf32>
    %280 = arith.mulf %275, %277 : vector<2x32xf32>
    %281 = arith.addf %279, %280 : vector<2x32xf32>
    %282 = math.tanh %281 : vector<2x32xf32>
    %283 = arith.mulf %278, %282 : vector<2x32xf32>
    %c22_89 = arith.constant 22 : index
    %c0_90 = arith.constant 0 : index
    %284 = vector.load %arg18[%c22_89, %c0_90] : memref<32x32xf32, #tpu.memory_space<vmem>>, vector<2x32xf32>
    tpu.vector_store %arg18[%c22_89, %c0_90], %283 {strides = array<i32>} : memref<32x32xf32, #tpu.memory_space<vmem>>, vector<2x32xf32>,
    %285 = vector.extract_strided_slice %54 {offsets = [24, 0], sizes = [2, 128], strides = [1, 1]} : vector<32x128xf32> to vector<2x128xf32>
    %cst_91 = arith.constant dense<0.000000e+00> : vector<2x128xf32>
    %286 = tpu.matmul %283, %50, %cst_91 {dimension_numbers = #tpu.dot_dimension_numbers<[1], [0], [0], [1], [0, 0, 1, 1], [], []>} : vector<2x32xf32>, vector<32x128xf32>, vector<2x128xf32> -> vector<2x128xf32>
    %287 = arith.addf %285, %286 : vector<2x128xf32>
    %288 = arith.negf %287 : vector<2x128xf32>
    %289 = math.exp %288 : vector<2x128xf32>
    %cst_92 = arith.constant 1.000000e+00 : f32
    %290 = vector.broadcast %cst_92 : f32 to vector<2x128xf32>
    %291 = arith.addf %290, %289 : vector<2x128xf32>
    %292 = arith.divf %290, %291 : vector<2x128xf32>
    %293 = math.tanh %287 : vector<2x128xf32>
    %294 = vector.extract_strided_slice %292 {offsets = [0, 0], sizes = [2, 32], strides = [1, 1]} : vector<2x128xf32> to vector<2x32xf32>
    %295 = vector.extract_strided_slice %292 {offsets = [0, 32], sizes = [2, 32], strides = [1, 1]} : vector<2x128xf32> to vector<2x32xf32>
    %296 = vector.extract_strided_slice %293 {offsets = [0, 64], sizes = [2, 32], strides = [1, 1]} : vector<2x128xf32> to vector<2x32xf32>
    %297 = vector.extract_strided_slice %292 {offsets = [0, 96], sizes = [2, 32], strides = [1, 1]} : vector<2x128xf32> to vector<2x32xf32>
    %298 = arith.mulf %295, %281 : vector<2x32xf32>
    %299 = arith.mulf %294, %296 : vector<2x32xf32>
    %300 = arith.addf %298, %299 : vector<2x32xf32>
    %301 = math.tanh %300 : vector<2x32xf32>
    %302 = arith.mulf %297, %301 : vector<2x32xf32>
    %c24_93 = arith.constant 24 : index
    %c0_94 = arith.constant 0 : index
    %303 = vector.load %arg18[%c24_93, %c0_94] : memref<32x32xf32, #tpu.memory_space<vmem>>, vector<2x32xf32>
    tpu.vector_store %arg18[%c24_93, %c0_94], %302 {strides = array<i32>} : memref<32x32xf32, #tpu.memory_space<vmem>>, vector<2x32xf32>,
    %304 = vector.extract_strided_slice %54 {offsets = [26, 0], sizes = [2, 128], strides = [1, 1]} : vector<32x128xf32> to vector<2x128xf32>
    %cst_95 = arith.constant dense<0.000000e+00> : vector<2x128xf32>
    %305 = tpu.matmul %302, %50, %cst_95 {dimension_numbers = #tpu.dot_dimension_numbers<[1], [0], [0], [1], [0, 0, 1, 1], [], []>} : vector<2x32xf32>, vector<32x128xf32>, vector<2x128xf32> -> vector<2x128xf32>
    %306 = arith.addf %304, %305 : vector<2x128xf32>
    %307 = arith.negf %306 : vector<2x128xf32>
    %308 = math.exp %307 : vector<2x128xf32>
    %cst_96 = arith.constant 1.000000e+00 : f32
    %309 = vector.broadcast %cst_96 : f32 to vector<2x128xf32>
    %310 = arith.addf %309, %308 : vector<2x128xf32>
    %311 = arith.divf %309, %310 : vector<2x128xf32>
    %312 = math.tanh %306 : vector<2x128xf32>
    %313 = vector.extract_strided_slice %311 {offsets = [0, 0], sizes = [2, 32], strides = [1, 1]} : vector<2x128xf32> to vector<2x32xf32>
    %314 = vector.extract_strided_slice %311 {offsets = [0, 32], sizes = [2, 32], strides = [1, 1]} : vector<2x128xf32> to vector<2x32xf32>
    %315 = vector.extract_strided_slice %312 {offsets = [0, 64], sizes = [2, 32], strides = [1, 1]} : vector<2x128xf32> to vector<2x32xf32>
    %316 = vector.extract_strided_slice %311 {offsets = [0, 96], sizes = [2, 32], strides = [1, 1]} : vector<2x128xf32> to vector<2x32xf32>
    %317 = arith.mulf %314, %300 : vector<2x32xf32>
    %318 = arith.mulf %313, %315 : vector<2x32xf32>
    %319 = arith.addf %317, %318 : vector<2x32xf32>
    %320 = math.tanh %319 : vector<2x32xf32>
    %321 = arith.mulf %316, %320 : vector<2x32xf32>
    %c26_97 = arith.constant 26 : index
    %c0_98 = arith.constant 0 : index
    %322 = vector.load %arg18[%c26_97, %c0_98] : memref<32x32xf32, #tpu.memory_space<vmem>>, vector<2x32xf32>
    tpu.vector_store %arg18[%c26_97, %c0_98], %321 {strides = array<i32>} : memref<32x32xf32, #tpu.memory_space<vmem>>, vector<2x32xf32>,
    %323 = vector.extract_strided_slice %54 {offsets = [28, 0], sizes = [2, 128], strides = [1, 1]} : vector<32x128xf32> to vector<2x128xf32>
    %cst_99 = arith.constant dense<0.000000e+00> : vector<2x128xf32>
    %324 = tpu.matmul %321, %50, %cst_99 {dimension_numbers = #tpu.dot_dimension_numbers<[1], [0], [0], [1], [0, 0, 1, 1], [], []>} : vector<2x32xf32>, vector<32x128xf32>, vector<2x128xf32> -> vector<2x128xf32>
    %325 = arith.addf %323, %324 : vector<2x128xf32>
    %326 = arith.negf %325 : vector<2x128xf32>
    %327 = math.exp %326 : vector<2x128xf32>
    %cst_100 = arith.constant 1.000000e+00 : f32
    %328 = vector.broadcast %cst_100 : f32 to vector<2x128xf32>
    %329 = arith.addf %328, %327 : vector<2x128xf32>
    %330 = arith.divf %328, %329 : vector<2x128xf32>
    %331 = math.tanh %325 : vector<2x128xf32>
    %332 = vector.extract_strided_slice %330 {offsets = [0, 0], sizes = [2, 32], strides = [1, 1]} : vector<2x128xf32> to vector<2x32xf32>
    %333 = vector.extract_strided_slice %330 {offsets = [0, 32], sizes = [2, 32], strides = [1, 1]} : vector<2x128xf32> to vector<2x32xf32>
    %334 = vector.extract_strided_slice %331 {offsets = [0, 64], sizes = [2, 32], strides = [1, 1]} : vector<2x128xf32> to vector<2x32xf32>
    %335 = vector.extract_strided_slice %330 {offsets = [0, 96], sizes = [2, 32], strides = [1, 1]} : vector<2x128xf32> to vector<2x32xf32>
    %336 = arith.mulf %333, %319 : vector<2x32xf32>
    %337 = arith.mulf %332, %334 : vector<2x32xf32>
    %338 = arith.addf %336, %337 : vector<2x32xf32>
    %339 = math.tanh %338 : vector<2x32xf32>
    %340 = arith.mulf %335, %339 : vector<2x32xf32>
    %c28_101 = arith.constant 28 : index
    %c0_102 = arith.constant 0 : index
    %341 = vector.load %arg18[%c28_101, %c0_102] : memref<32x32xf32, #tpu.memory_space<vmem>>, vector<2x32xf32>
    tpu.vector_store %arg18[%c28_101, %c0_102], %340 {strides = array<i32>} : memref<32x32xf32, #tpu.memory_space<vmem>>, vector<2x32xf32>,
    %342 = vector.extract_strided_slice %54 {offsets = [30, 0], sizes = [2, 128], strides = [1, 1]} : vector<32x128xf32> to vector<2x128xf32>
    %cst_103 = arith.constant dense<0.000000e+00> : vector<2x128xf32>
    %343 = tpu.matmul %340, %50, %cst_103 {dimension_numbers = #tpu.dot_dimension_numbers<[1], [0], [0], [1], [0, 0, 1, 1], [], []>} : vector<2x32xf32>, vector<32x128xf32>, vector<2x128xf32> -> vector<2x128xf32>
    %344 = arith.addf %342, %343 : vector<2x128xf32>
    %345 = arith.negf %344 : vector<2x128xf32>
    %346 = math.exp %345 : vector<2x128xf32>
    %cst_104 = arith.constant 1.000000e+00 : f32
    %347 = vector.broadcast %cst_104 : f32 to vector<2x128xf32>
    %348 = arith.addf %347, %346 : vector<2x128xf32>
    %349 = arith.divf %347, %348 : vector<2x128xf32>
    %350 = math.tanh %344 : vector<2x128xf32>
    %351 = vector.extract_strided_slice %349 {offsets = [0, 0], sizes = [2, 32], strides = [1, 1]} : vector<2x128xf32> to vector<2x32xf32>
    %352 = vector.extract_strided_slice %349 {offsets = [0, 32], sizes = [2, 32], strides = [1, 1]} : vector<2x128xf32> to vector<2x32xf32>
    %353 = vector.extract_strided_slice %350 {offsets = [0, 64], sizes = [2, 32], strides = [1, 1]} : vector<2x128xf32> to vector<2x32xf32>
    %354 = vector.extract_strided_slice %349 {offsets = [0, 96], sizes = [2, 32], strides = [1, 1]} : vector<2x128xf32> to vector<2x32xf32>
    %355 = arith.mulf %352, %338 : vector<2x32xf32>
    %356 = arith.mulf %351, %353 : vector<2x32xf32>
    %357 = arith.addf %355, %356 : vector<2x32xf32>
    %358 = math.tanh %357 : vector<2x32xf32>
    %359 = arith.mulf %354, %358 : vector<2x32xf32>
    %c30_105 = arith.constant 30 : index
    %c0_106 = arith.constant 0 : index
    %360 = vector.load %arg18[%c30_105, %c0_106] : memref<32x32xf32, #tpu.memory_space<vmem>>, vector<2x32xf32>
    tpu.vector_store %arg18[%c30_105, %c0_106], %359 {strides = array<i32>} : memref<32x32xf32, #tpu.memory_space<vmem>>, vector<2x32xf32>,
    %c0_107 = arith.constant 0 : index
    %c0_108 = arith.constant 0 : index
    %361 = vector.load %arg18[%c0_107, %c0_108] : memref<32x32xf32, #tpu.memory_space<vmem>>, vector<32x32xf32>
    %c0_109 = arith.constant 0 : index
    %c0_110 = arith.constant 0 : index
    %362 = vector.load %arg9[%c0_109, %c0_110] : memref<32x128xf32, #tpu.memory_space<vmem>>, vector<32x128xf32>
    %c0_111 = arith.constant 0 : index
    %c0_112 = arith.constant 0 : index
    %363 = vector.load %arg10[%c0_111, %c0_112] : memref<32x128xf32, #tpu.memory_space<vmem>>, vector<32x128xf32>
    %c0_113 = arith.constant 0 : index
    %c0_114 = arith.constant 0 : index
    %364 = vector.load %arg11[%c0_113, %c0_114] : memref<1x128xf32, #tpu.memory_space<vmem>>, vector<1x128xf32>
    %cst_115 = arith.constant dense<0.000000e+00> : vector<32x128xf32>
    %365 = tpu.matmul %361, %362, %cst_115 {dimension_numbers = #tpu.dot_dimension_numbers<[1], [0], [0], [1], [0, 0, 1, 1], [], []>} : vector<32x32xf32>, vector<32x128xf32>, vector<32x128xf32> -> vector<32x128xf32>
    %366 = vector.broadcast %364 : vector<1x128xf32> to vector<32x128xf32>
    %367 = arith.addf %365, %366 : vector<32x128xf32>
    %cst_116 = arith.constant 0.000000e+00 : f32
    %368 = vector.broadcast %cst_116 : f32 to vector<2x32xf32>
    %cst_117 = arith.constant 0.000000e+00 : f32
    %369 = vector.broadcast %cst_117 : f32 to vector<2x32xf32>
    %370 = vector.extract_strided_slice %367 {offsets = [0, 0], sizes = [2, 128], strides = [1, 1]} : vector<32x128xf32> to vector<2x128xf32>
    %cst_118 = arith.constant dense<0.000000e+00> : vector<2x128xf32>
    %371 = tpu.matmul %368, %363, %cst_118 {dimension_numbers = #tpu.dot_dimension_numbers<[1], [0], [0], [1], [0, 0, 1, 1], [], []>} : vector<2x32xf32>, vector<32x128xf32>, vector<2x128xf32> -> vector<2x128xf32>
    %372 = arith.addf %370, %371 : vector<2x128xf32>
    %373 = arith.negf %372 : vector<2x128xf32>
    %374 = math.exp %373 : vector<2x128xf32>
    %cst_119 = arith.constant 1.000000e+00 : f32
    %375 = vector.broadcast %cst_119 : f32 to vector<2x128xf32>
    %376 = arith.addf %375, %374 : vector<2x128xf32>
    %377 = arith.divf %375, %376 : vector<2x128xf32>
    %378 = math.tanh %372 : vector<2x128xf32>
    %379 = vector.extract_strided_slice %377 {offsets = [0, 0], sizes = [2, 32], strides = [1, 1]} : vector<2x128xf32> to vector<2x32xf32>
    %380 = vector.extract_strided_slice %377 {offsets = [0, 32], sizes = [2, 32], strides = [1, 1]} : vector<2x128xf32> to vector<2x32xf32>
    %381 = vector.extract_strided_slice %378 {offsets = [0, 64], sizes = [2, 32], strides = [1, 1]} : vector<2x128xf32> to vector<2x32xf32>
    %382 = vector.extract_strided_slice %377 {offsets = [0, 96], sizes = [2, 32], strides = [1, 1]} : vector<2x128xf32> to vector<2x32xf32>
    %383 = arith.mulf %380, %369 : vector<2x32xf32>
    %384 = arith.mulf %379, %381 : vector<2x32xf32>
    %385 = arith.addf %383, %384 : vector<2x32xf32>
    %386 = math.tanh %385 : vector<2x32xf32>
    %387 = arith.mulf %382, %386 : vector<2x32xf32>
    %c0_120 = arith.constant 0 : index
    %c0_121 = arith.constant 0 : index
    %388 = vector.load %arg18[%c0_120, %c0_121] : memref<32x32xf32, #tpu.memory_space<vmem>>, vector<2x32xf32>
    tpu.vector_store %arg18[%c0_120, %c0_121], %387 {strides = array<i32>} : memref<32x32xf32, #tpu.memory_space<vmem>>, vector<2x32xf32>,
    %389 = vector.extract_strided_slice %367 {offsets = [2, 0], sizes = [2, 128], strides = [1, 1]} : vector<32x128xf32> to vector<2x128xf32>
    %cst_122 = arith.constant dense<0.000000e+00> : vector<2x128xf32>
    %390 = tpu.matmul %387, %363, %cst_122 {dimension_numbers = #tpu.dot_dimension_numbers<[1], [0], [0], [1], [0, 0, 1, 1], [], []>} : vector<2x32xf32>, vector<32x128xf32>, vector<2x128xf32> -> vector<2x128xf32>
    %391 = arith.addf %389, %390 : vector<2x128xf32>
    %392 = arith.negf %391 : vector<2x128xf32>
    %393 = math.exp %392 : vector<2x128xf32>
    %cst_123 = arith.constant 1.000000e+00 : f32
    %394 = vector.broadcast %cst_123 : f32 to vector<2x128xf32>
    %395 = arith.addf %394, %393 : vector<2x128xf32>
    %396 = arith.divf %394, %395 : vector<2x128xf32>
    %397 = math.tanh %391 : vector<2x128xf32>
    %398 = vector.extract_strided_slice %396 {offsets = [0, 0], sizes = [2, 32], strides = [1, 1]} : vector<2x128xf32> to vector<2x32xf32>
    %399 = vector.extract_strided_slice %396 {offsets = [0, 32], sizes = [2, 32], strides = [1, 1]} : vector<2x128xf32> to vector<2x32xf32>
    %400 = vector.extract_strided_slice %397 {offsets = [0, 64], sizes = [2, 32], strides = [1, 1]} : vector<2x128xf32> to vector<2x32xf32>
    %401 = vector.extract_strided_slice %396 {offsets = [0, 96], sizes = [2, 32], strides = [1, 1]} : vector<2x128xf32> to vector<2x32xf32>
    %402 = arith.mulf %399, %385 : vector<2x32xf32>
    %403 = arith.mulf %398, %400 : vector<2x32xf32>
    %404 = arith.addf %402, %403 : vector<2x32xf32>
    %405 = math.tanh %404 : vector<2x32xf32>
    %406 = arith.mulf %401, %405 : vector<2x32xf32>
    %c2_124 = arith.constant 2 : index
    %c0_125 = arith.constant 0 : index
    %407 = vector.load %arg18[%c2_124, %c0_125] : memref<32x32xf32, #tpu.memory_space<vmem>>, vector<2x32xf32>
    tpu.vector_store %arg18[%c2_124, %c0_125], %406 {strides = array<i32>} : memref<32x32xf32, #tpu.memory_space<vmem>>, vector<2x32xf32>,
    %408 = vector.extract_strided_slice %367 {offsets = [4, 0], sizes = [2, 128], strides = [1, 1]} : vector<32x128xf32> to vector<2x128xf32>
    %cst_126 = arith.constant dense<0.000000e+00> : vector<2x128xf32>
    %409 = tpu.matmul %406, %363, %cst_126 {dimension_numbers = #tpu.dot_dimension_numbers<[1], [0], [0], [1], [0, 0, 1, 1], [], []>} : vector<2x32xf32>, vector<32x128xf32>, vector<2x128xf32> -> vector<2x128xf32>
    %410 = arith.addf %408, %409 : vector<2x128xf32>
    %411 = arith.negf %410 : vector<2x128xf32>
    %412 = math.exp %411 : vector<2x128xf32>
    %cst_127 = arith.constant 1.000000e+00 : f32
    %413 = vector.broadcast %cst_127 : f32 to vector<2x128xf32>
    %414 = arith.addf %413, %412 : vector<2x128xf32>
    %415 = arith.divf %413, %414 : vector<2x128xf32>
    %416 = math.tanh %410 : vector<2x128xf32>
    %417 = vector.extract_strided_slice %415 {offsets = [0, 0], sizes = [2, 32], strides = [1, 1]} : vector<2x128xf32> to vector<2x32xf32>
    %418 = vector.extract_strided_slice %415 {offsets = [0, 32], sizes = [2, 32], strides = [1, 1]} : vector<2x128xf32> to vector<2x32xf32>
    %419 = vector.extract_strided_slice %416 {offsets = [0, 64], sizes = [2, 32], strides = [1, 1]} : vector<2x128xf32> to vector<2x32xf32>
    %420 = vector.extract_strided_slice %415 {offsets = [0, 96], sizes = [2, 32], strides = [1, 1]} : vector<2x128xf32> to vector<2x32xf32>
    %421 = arith.mulf %418, %404 : vector<2x32xf32>
    %422 = arith.mulf %417, %419 : vector<2x32xf32>
    %423 = arith.addf %421, %422 : vector<2x32xf32>
    %424 = math.tanh %423 : vector<2x32xf32>
    %425 = arith.mulf %420, %424 : vector<2x32xf32>
    %c4_128 = arith.constant 4 : index
    %c0_129 = arith.constant 0 : index
    %426 = vector.load %arg18[%c4_128, %c0_129] : memref<32x32xf32, #tpu.memory_space<vmem>>, vector<2x32xf32>
    tpu.vector_store %arg18[%c4_128, %c0_129], %425 {strides = array<i32>} : memref<32x32xf32, #tpu.memory_space<vmem>>, vector<2x32xf32>,
    %427 = vector.extract_strided_slice %367 {offsets = [6, 0], sizes = [2, 128], strides = [1, 1]} : vector<32x128xf32> to vector<2x128xf32>
    %cst_130 = arith.constant dense<0.000000e+00> : vector<2x128xf32>
    %428 = tpu.matmul %425, %363, %cst_130 {dimension_numbers = #tpu.dot_dimension_numbers<[1], [0], [0], [1], [0, 0, 1, 1], [], []>} : vector<2x32xf32>, vector<32x128xf32>, vector<2x128xf32> -> vector<2x128xf32>
    %429 = arith.addf %427, %428 : vector<2x128xf32>
    %430 = arith.negf %429 : vector<2x128xf32>
    %431 = math.exp %430 : vector<2x128xf32>
    %cst_131 = arith.constant 1.000000e+00 : f32
    %432 = vector.broadcast %cst_131 : f32 to vector<2x128xf32>
    %433 = arith.addf %432, %431 : vector<2x128xf32>
    %434 = arith.divf %432, %433 : vector<2x128xf32>
    %435 = math.tanh %429 : vector<2x128xf32>
    %436 = vector.extract_strided_slice %434 {offsets = [0, 0], sizes = [2, 32], strides = [1, 1]} : vector<2x128xf32> to vector<2x32xf32>
    %437 = vector.extract_strided_slice %434 {offsets = [0, 32], sizes = [2, 32], strides = [1, 1]} : vector<2x128xf32> to vector<2x32xf32>
    %438 = vector.extract_strided_slice %435 {offsets = [0, 64], sizes = [2, 32], strides = [1, 1]} : vector<2x128xf32> to vector<2x32xf32>
    %439 = vector.extract_strided_slice %434 {offsets = [0, 96], sizes = [2, 32], strides = [1, 1]} : vector<2x128xf32> to vector<2x32xf32>
    %440 = arith.mulf %437, %423 : vector<2x32xf32>
    %441 = arith.mulf %436, %438 : vector<2x32xf32>
    %442 = arith.addf %440, %441 : vector<2x32xf32>
    %443 = math.tanh %442 : vector<2x32xf32>
    %444 = arith.mulf %439, %443 : vector<2x32xf32>
    %c6_132 = arith.constant 6 : index
    %c0_133 = arith.constant 0 : index
    %445 = vector.load %arg18[%c6_132, %c0_133] : memref<32x32xf32, #tpu.memory_space<vmem>>, vector<2x32xf32>
    tpu.vector_store %arg18[%c6_132, %c0_133], %444 {strides = array<i32>} : memref<32x32xf32, #tpu.memory_space<vmem>>, vector<2x32xf32>,
    %446 = vector.extract_strided_slice %367 {offsets = [8, 0], sizes = [2, 128], strides = [1, 1]} : vector<32x128xf32> to vector<2x128xf32>
    %cst_134 = arith.constant dense<0.000000e+00> : vector<2x128xf32>
    %447 = tpu.matmul %444, %363, %cst_134 {dimension_numbers = #tpu.dot_dimension_numbers<[1], [0], [0], [1], [0, 0, 1, 1], [], []>} : vector<2x32xf32>, vector<32x128xf32>, vector<2x128xf32> -> vector<2x128xf32>
    %448 = arith.addf %446, %447 : vector<2x128xf32>
    %449 = arith.negf %448 : vector<2x128xf32>
    %450 = math.exp %449 : vector<2x128xf32>
    %cst_135 = arith.constant 1.000000e+00 : f32
    %451 = vector.broadcast %cst_135 : f32 to vector<2x128xf32>
    %452 = arith.addf %451, %450 : vector<2x128xf32>
    %453 = arith.divf %451, %452 : vector<2x128xf32>
    %454 = math.tanh %448 : vector<2x128xf32>
    %455 = vector.extract_strided_slice %453 {offsets = [0, 0], sizes = [2, 32], strides = [1, 1]} : vector<2x128xf32> to vector<2x32xf32>
    %456 = vector.extract_strided_slice %453 {offsets = [0, 32], sizes = [2, 32], strides = [1, 1]} : vector<2x128xf32> to vector<2x32xf32>
    %457 = vector.extract_strided_slice %454 {offsets = [0, 64], sizes = [2, 32], strides = [1, 1]} : vector<2x128xf32> to vector<2x32xf32>
    %458 = vector.extract_strided_slice %453 {offsets = [0, 96], sizes = [2, 32], strides = [1, 1]} : vector<2x128xf32> to vector<2x32xf32>
    %459 = arith.mulf %456, %442 : vector<2x32xf32>
    %460 = arith.mulf %455, %457 : vector<2x32xf32>
    %461 = arith.addf %459, %460 : vector<2x32xf32>
    %462 = math.tanh %461 : vector<2x32xf32>
    %463 = arith.mulf %458, %462 : vector<2x32xf32>
    %c8_136 = arith.constant 8 : index
    %c0_137 = arith.constant 0 : index
    %464 = vector.load %arg18[%c8_136, %c0_137] : memref<32x32xf32, #tpu.memory_space<vmem>>, vector<2x32xf32>
    tpu.vector_store %arg18[%c8_136, %c0_137], %463 {strides = array<i32>} : memref<32x32xf32, #tpu.memory_space<vmem>>, vector<2x32xf32>,
    %465 = vector.extract_strided_slice %367 {offsets = [10, 0], sizes = [2, 128], strides = [1, 1]} : vector<32x128xf32> to vector<2x128xf32>
    %cst_138 = arith.constant dense<0.000000e+00> : vector<2x128xf32>
    %466 = tpu.matmul %463, %363, %cst_138 {dimension_numbers = #tpu.dot_dimension_numbers<[1], [0], [0], [1], [0, 0, 1, 1], [], []>} : vector<2x32xf32>, vector<32x128xf32>, vector<2x128xf32> -> vector<2x128xf32>
    %467 = arith.addf %465, %466 : vector<2x128xf32>
    %468 = arith.negf %467 : vector<2x128xf32>
    %469 = math.exp %468 : vector<2x128xf32>
    %cst_139 = arith.constant 1.000000e+00 : f32
    %470 = vector.broadcast %cst_139 : f32 to vector<2x128xf32>
    %471 = arith.addf %470, %469 : vector<2x128xf32>
    %472 = arith.divf %470, %471 : vector<2x128xf32>
    %473 = math.tanh %467 : vector<2x128xf32>
    %474 = vector.extract_strided_slice %472 {offsets = [0, 0], sizes = [2, 32], strides = [1, 1]} : vector<2x128xf32> to vector<2x32xf32>
    %475 = vector.extract_strided_slice %472 {offsets = [0, 32], sizes = [2, 32], strides = [1, 1]} : vector<2x128xf32> to vector<2x32xf32>
    %476 = vector.extract_strided_slice %473 {offsets = [0, 64], sizes = [2, 32], strides = [1, 1]} : vector<2x128xf32> to vector<2x32xf32>
    %477 = vector.extract_strided_slice %472 {offsets = [0, 96], sizes = [2, 32], strides = [1, 1]} : vector<2x128xf32> to vector<2x32xf32>
    %478 = arith.mulf %475, %461 : vector<2x32xf32>
    %479 = arith.mulf %474, %476 : vector<2x32xf32>
    %480 = arith.addf %478, %479 : vector<2x32xf32>
    %481 = math.tanh %480 : vector<2x32xf32>
    %482 = arith.mulf %477, %481 : vector<2x32xf32>
    %c10_140 = arith.constant 10 : index
    %c0_141 = arith.constant 0 : index
    %483 = vector.load %arg18[%c10_140, %c0_141] : memref<32x32xf32, #tpu.memory_space<vmem>>, vector<2x32xf32>
    tpu.vector_store %arg18[%c10_140, %c0_141], %482 {strides = array<i32>} : memref<32x32xf32, #tpu.memory_space<vmem>>, vector<2x32xf32>,
    %484 = vector.extract_strided_slice %367 {offsets = [12, 0], sizes = [2, 128], strides = [1, 1]} : vector<32x128xf32> to vector<2x128xf32>
    %cst_142 = arith.constant dense<0.000000e+00> : vector<2x128xf32>
    %485 = tpu.matmul %482, %363, %cst_142 {dimension_numbers = #tpu.dot_dimension_numbers<[1], [0], [0], [1], [0, 0, 1, 1], [], []>} : vector<2x32xf32>, vector<32x128xf32>, vector<2x128xf32> -> vector<2x128xf32>
    %486 = arith.addf %484, %485 : vector<2x128xf32>
    %487 = arith.negf %486 : vector<2x128xf32>
    %488 = math.exp %487 : vector<2x128xf32>
    %cst_143 = arith.constant 1.000000e+00 : f32
    %489 = vector.broadcast %cst_143 : f32 to vector<2x128xf32>
    %490 = arith.addf %489, %488 : vector<2x128xf32>
    %491 = arith.divf %489, %490 : vector<2x128xf32>
    %492 = math.tanh %486 : vector<2x128xf32>
    %493 = vector.extract_strided_slice %491 {offsets = [0, 0], sizes = [2, 32], strides = [1, 1]} : vector<2x128xf32> to vector<2x32xf32>
    %494 = vector.extract_strided_slice %491 {offsets = [0, 32], sizes = [2, 32], strides = [1, 1]} : vector<2x128xf32> to vector<2x32xf32>
    %495 = vector.extract_strided_slice %492 {offsets = [0, 64], sizes = [2, 32], strides = [1, 1]} : vector<2x128xf32> to vector<2x32xf32>
    %496 = vector.extract_strided_slice %491 {offsets = [0, 96], sizes = [2, 32], strides = [1, 1]} : vector<2x128xf32> to vector<2x32xf32>
    %497 = arith.mulf %494, %480 : vector<2x32xf32>
    %498 = arith.mulf %493, %495 : vector<2x32xf32>
    %499 = arith.addf %497, %498 : vector<2x32xf32>
    %500 = math.tanh %499 : vector<2x32xf32>
    %501 = arith.mulf %496, %500 : vector<2x32xf32>
    %c12_144 = arith.constant 12 : index
    %c0_145 = arith.constant 0 : index
    %502 = vector.load %arg18[%c12_144, %c0_145] : memref<32x32xf32, #tpu.memory_space<vmem>>, vector<2x32xf32>
    tpu.vector_store %arg18[%c12_144, %c0_145], %501 {strides = array<i32>} : memref<32x32xf32, #tpu.memory_space<vmem>>, vector<2x32xf32>,
    %503 = vector.extract_strided_slice %367 {offsets = [14, 0], sizes = [2, 128], strides = [1, 1]} : vector<32x128xf32> to vector<2x128xf32>
    %cst_146 = arith.constant dense<0.000000e+00> : vector<2x128xf32>
    %504 = tpu.matmul %501, %363, %cst_146 {dimension_numbers = #tpu.dot_dimension_numbers<[1], [0], [0], [1], [0, 0, 1, 1], [], []>} : vector<2x32xf32>, vector<32x128xf32>, vector<2x128xf32> -> vector<2x128xf32>
    %505 = arith.addf %503, %504 : vector<2x128xf32>
    %506 = arith.negf %505 : vector<2x128xf32>
    %507 = math.exp %506 : vector<2x128xf32>
    %cst_147 = arith.constant 1.000000e+00 : f32
    %508 = vector.broadcast %cst_147 : f32 to vector<2x128xf32>
    %509 = arith.addf %508, %507 : vector<2x128xf32>
    %510 = arith.divf %508, %509 : vector<2x128xf32>
    %511 = math.tanh %505 : vector<2x128xf32>
    %512 = vector.extract_strided_slice %510 {offsets = [0, 0], sizes = [2, 32], strides = [1, 1]} : vector<2x128xf32> to vector<2x32xf32>
    %513 = vector.extract_strided_slice %510 {offsets = [0, 32], sizes = [2, 32], strides = [1, 1]} : vector<2x128xf32> to vector<2x32xf32>
    %514 = vector.extract_strided_slice %511 {offsets = [0, 64], sizes = [2, 32], strides = [1, 1]} : vector<2x128xf32> to vector<2x32xf32>
    %515 = vector.extract_strided_slice %510 {offsets = [0, 96], sizes = [2, 32], strides = [1, 1]} : vector<2x128xf32> to vector<2x32xf32>
    %516 = arith.mulf %513, %499 : vector<2x32xf32>
    %517 = arith.mulf %512, %514 : vector<2x32xf32>
    %518 = arith.addf %516, %517 : vector<2x32xf32>
    %519 = math.tanh %518 : vector<2x32xf32>
    %520 = arith.mulf %515, %519 : vector<2x32xf32>
    %c14_148 = arith.constant 14 : index
    %c0_149 = arith.constant 0 : index
    %521 = vector.load %arg18[%c14_148, %c0_149] : memref<32x32xf32, #tpu.memory_space<vmem>>, vector<2x32xf32>
    tpu.vector_store %arg18[%c14_148, %c0_149], %520 {strides = array<i32>} : memref<32x32xf32, #tpu.memory_space<vmem>>, vector<2x32xf32>,
    %522 = vector.extract_strided_slice %367 {offsets = [16, 0], sizes = [2, 128], strides = [1, 1]} : vector<32x128xf32> to vector<2x128xf32>
    %cst_150 = arith.constant dense<0.000000e+00> : vector<2x128xf32>
    %523 = tpu.matmul %520, %363, %cst_150 {dimension_numbers = #tpu.dot_dimension_numbers<[1], [0], [0], [1], [0, 0, 1, 1], [], []>} : vector<2x32xf32>, vector<32x128xf32>, vector<2x128xf32> -> vector<2x128xf32>
    %524 = arith.addf %522, %523 : vector<2x128xf32>
    %525 = arith.negf %524 : vector<2x128xf32>
    %526 = math.exp %525 : vector<2x128xf32>
    %cst_151 = arith.constant 1.000000e+00 : f32
    %527 = vector.broadcast %cst_151 : f32 to vector<2x128xf32>
    %528 = arith.addf %527, %526 : vector<2x128xf32>
    %529 = arith.divf %527, %528 : vector<2x128xf32>
    %530 = math.tanh %524 : vector<2x128xf32>
    %531 = vector.extract_strided_slice %529 {offsets = [0, 0], sizes = [2, 32], strides = [1, 1]} : vector<2x128xf32> to vector<2x32xf32>
    %532 = vector.extract_strided_slice %529 {offsets = [0, 32], sizes = [2, 32], strides = [1, 1]} : vector<2x128xf32> to vector<2x32xf32>
    %533 = vector.extract_strided_slice %530 {offsets = [0, 64], sizes = [2, 32], strides = [1, 1]} : vector<2x128xf32> to vector<2x32xf32>
    %534 = vector.extract_strided_slice %529 {offsets = [0, 96], sizes = [2, 32], strides = [1, 1]} : vector<2x128xf32> to vector<2x32xf32>
    %535 = arith.mulf %532, %518 : vector<2x32xf32>
    %536 = arith.mulf %531, %533 : vector<2x32xf32>
    %537 = arith.addf %535, %536 : vector<2x32xf32>
    %538 = math.tanh %537 : vector<2x32xf32>
    %539 = arith.mulf %534, %538 : vector<2x32xf32>
    %c16_152 = arith.constant 16 : index
    %c0_153 = arith.constant 0 : index
    %540 = vector.load %arg18[%c16_152, %c0_153] : memref<32x32xf32, #tpu.memory_space<vmem>>, vector<2x32xf32>
    tpu.vector_store %arg18[%c16_152, %c0_153], %539 {strides = array<i32>} : memref<32x32xf32, #tpu.memory_space<vmem>>, vector<2x32xf32>,
    %541 = vector.extract_strided_slice %367 {offsets = [18, 0], sizes = [2, 128], strides = [1, 1]} : vector<32x128xf32> to vector<2x128xf32>
    %cst_154 = arith.constant dense<0.000000e+00> : vector<2x128xf32>
    %542 = tpu.matmul %539, %363, %cst_154 {dimension_numbers = #tpu.dot_dimension_numbers<[1], [0], [0], [1], [0, 0, 1, 1], [], []>} : vector<2x32xf32>, vector<32x128xf32>, vector<2x128xf32> -> vector<2x128xf32>
    %543 = arith.addf %541, %542 : vector<2x128xf32>
    %544 = arith.negf %543 : vector<2x128xf32>
    %545 = math.exp %544 : vector<2x128xf32>
    %cst_155 = arith.constant 1.000000e+00 : f32
    %546 = vector.broadcast %cst_155 : f32 to vector<2x128xf32>
    %547 = arith.addf %546, %545 : vector<2x128xf32>
    %548 = arith.divf %546, %547 : vector<2x128xf32>
    %549 = math.tanh %543 : vector<2x128xf32>
    %550 = vector.extract_strided_slice %548 {offsets = [0, 0], sizes = [2, 32], strides = [1, 1]} : vector<2x128xf32> to vector<2x32xf32>
    %551 = vector.extract_strided_slice %548 {offsets = [0, 32], sizes = [2, 32], strides = [1, 1]} : vector<2x128xf32> to vector<2x32xf32>
    %552 = vector.extract_strided_slice %549 {offsets = [0, 64], sizes = [2, 32], strides = [1, 1]} : vector<2x128xf32> to vector<2x32xf32>
    %553 = vector.extract_strided_slice %548 {offsets = [0, 96], sizes = [2, 32], strides = [1, 1]} : vector<2x128xf32> to vector<2x32xf32>
    %554 = arith.mulf %551, %537 : vector<2x32xf32>
    %555 = arith.mulf %550, %552 : vector<2x32xf32>
    %556 = arith.addf %554, %555 : vector<2x32xf32>
    %557 = math.tanh %556 : vector<2x32xf32>
    %558 = arith.mulf %553, %557 : vector<2x32xf32>
    %c18_156 = arith.constant 18 : index
    %c0_157 = arith.constant 0 : index
    %559 = vector.load %arg18[%c18_156, %c0_157] : memref<32x32xf32, #tpu.memory_space<vmem>>, vector<2x32xf32>
    tpu.vector_store %arg18[%c18_156, %c0_157], %558 {strides = array<i32>} : memref<32x32xf32, #tpu.memory_space<vmem>>, vector<2x32xf32>,
    %560 = vector.extract_strided_slice %367 {offsets = [20, 0], sizes = [2, 128], strides = [1, 1]} : vector<32x128xf32> to vector<2x128xf32>
    %cst_158 = arith.constant dense<0.000000e+00> : vector<2x128xf32>
    %561 = tpu.matmul %558, %363, %cst_158 {dimension_numbers = #tpu.dot_dimension_numbers<[1], [0], [0], [1], [0, 0, 1, 1], [], []>} : vector<2x32xf32>, vector<32x128xf32>, vector<2x128xf32> -> vector<2x128xf32>
    %562 = arith.addf %560, %561 : vector<2x128xf32>
    %563 = arith.negf %562 : vector<2x128xf32>
    %564 = math.exp %563 : vector<2x128xf32>
    %cst_159 = arith.constant 1.000000e+00 : f32
    %565 = vector.broadcast %cst_159 : f32 to vector<2x128xf32>
    %566 = arith.addf %565, %564 : vector<2x128xf32>
    %567 = arith.divf %565, %566 : vector<2x128xf32>
    %568 = math.tanh %562 : vector<2x128xf32>
    %569 = vector.extract_strided_slice %567 {offsets = [0, 0], sizes = [2, 32], strides = [1, 1]} : vector<2x128xf32> to vector<2x32xf32>
    %570 = vector.extract_strided_slice %567 {offsets = [0, 32], sizes = [2, 32], strides = [1, 1]} : vector<2x128xf32> to vector<2x32xf32>
    %571 = vector.extract_strided_slice %568 {offsets = [0, 64], sizes = [2, 32], strides = [1, 1]} : vector<2x128xf32> to vector<2x32xf32>
    %572 = vector.extract_strided_slice %567 {offsets = [0, 96], sizes = [2, 32], strides = [1, 1]} : vector<2x128xf32> to vector<2x32xf32>
    %573 = arith.mulf %570, %556 : vector<2x32xf32>
    %574 = arith.mulf %569, %571 : vector<2x32xf32>
    %575 = arith.addf %573, %574 : vector<2x32xf32>
    %576 = math.tanh %575 : vector<2x32xf32>
    %577 = arith.mulf %572, %576 : vector<2x32xf32>
    %c20_160 = arith.constant 20 : index
    %c0_161 = arith.constant 0 : index
    %578 = vector.load %arg18[%c20_160, %c0_161] : memref<32x32xf32, #tpu.memory_space<vmem>>, vector<2x32xf32>
    tpu.vector_store %arg18[%c20_160, %c0_161], %577 {strides = array<i32>} : memref<32x32xf32, #tpu.memory_space<vmem>>, vector<2x32xf32>,
    %579 = vector.extract_strided_slice %367 {offsets = [22, 0], sizes = [2, 128], strides = [1, 1]} : vector<32x128xf32> to vector<2x128xf32>
    %cst_162 = arith.constant dense<0.000000e+00> : vector<2x128xf32>
    %580 = tpu.matmul %577, %363, %cst_162 {dimension_numbers = #tpu.dot_dimension_numbers<[1], [0], [0], [1], [0, 0, 1, 1], [], []>} : vector<2x32xf32>, vector<32x128xf32>, vector<2x128xf32> -> vector<2x128xf32>
    %581 = arith.addf %579, %580 : vector<2x128xf32>
    %582 = arith.negf %581 : vector<2x128xf32>
    %583 = math.exp %582 : vector<2x128xf32>
    %cst_163 = arith.constant 1.000000e+00 : f32
    %584 = vector.broadcast %cst_163 : f32 to vector<2x128xf32>
    %585 = arith.addf %584, %583 : vector<2x128xf32>
    %586 = arith.divf %584, %585 : vector<2x128xf32>
    %587 = math.tanh %581 : vector<2x128xf32>
    %588 = vector.extract_strided_slice %586 {offsets = [0, 0], sizes = [2, 32], strides = [1, 1]} : vector<2x128xf32> to vector<2x32xf32>
    %589 = vector.extract_strided_slice %586 {offsets = [0, 32], sizes = [2, 32], strides = [1, 1]} : vector<2x128xf32> to vector<2x32xf32>
    %590 = vector.extract_strided_slice %587 {offsets = [0, 64], sizes = [2, 32], strides = [1, 1]} : vector<2x128xf32> to vector<2x32xf32>
    %591 = vector.extract_strided_slice %586 {offsets = [0, 96], sizes = [2, 32], strides = [1, 1]} : vector<2x128xf32> to vector<2x32xf32>
    %592 = arith.mulf %589, %575 : vector<2x32xf32>
    %593 = arith.mulf %588, %590 : vector<2x32xf32>
    %594 = arith.addf %592, %593 : vector<2x32xf32>
    %595 = math.tanh %594 : vector<2x32xf32>
    %596 = arith.mulf %591, %595 : vector<2x32xf32>
    %c22_164 = arith.constant 22 : index
    %c0_165 = arith.constant 0 : index
    %597 = vector.load %arg18[%c22_164, %c0_165] : memref<32x32xf32, #tpu.memory_space<vmem>>, vector<2x32xf32>
    tpu.vector_store %arg18[%c22_164, %c0_165], %596 {strides = array<i32>} : memref<32x32xf32, #tpu.memory_space<vmem>>, vector<2x32xf32>,
    %598 = vector.extract_strided_slice %367 {offsets = [24, 0], sizes = [2, 128], strides = [1, 1]} : vector<32x128xf32> to vector<2x128xf32>
    %cst_166 = arith.constant dense<0.000000e+00> : vector<2x128xf32>
    %599 = tpu.matmul %596, %363, %cst_166 {dimension_numbers = #tpu.dot_dimension_numbers<[1], [0], [0], [1], [0, 0, 1, 1], [], []>} : vector<2x32xf32>, vector<32x128xf32>, vector<2x128xf32> -> vector<2x128xf32>
    %600 = arith.addf %598, %599 : vector<2x128xf32>
    %601 = arith.negf %600 : vector<2x128xf32>
    %602 = math.exp %601 : vector<2x128xf32>
    %cst_167 = arith.constant 1.000000e+00 : f32
    %603 = vector.broadcast %cst_167 : f32 to vector<2x128xf32>
    %604 = arith.addf %603, %602 : vector<2x128xf32>
    %605 = arith.divf %603, %604 : vector<2x128xf32>
    %606 = math.tanh %600 : vector<2x128xf32>
    %607 = vector.extract_strided_slice %605 {offsets = [0, 0], sizes = [2, 32], strides = [1, 1]} : vector<2x128xf32> to vector<2x32xf32>
    %608 = vector.extract_strided_slice %605 {offsets = [0, 32], sizes = [2, 32], strides = [1, 1]} : vector<2x128xf32> to vector<2x32xf32>
    %609 = vector.extract_strided_slice %606 {offsets = [0, 64], sizes = [2, 32], strides = [1, 1]} : vector<2x128xf32> to vector<2x32xf32>
    %610 = vector.extract_strided_slice %605 {offsets = [0, 96], sizes = [2, 32], strides = [1, 1]} : vector<2x128xf32> to vector<2x32xf32>
    %611 = arith.mulf %608, %594 : vector<2x32xf32>
    %612 = arith.mulf %607, %609 : vector<2x32xf32>
    %613 = arith.addf %611, %612 : vector<2x32xf32>
    %614 = math.tanh %613 : vector<2x32xf32>
    %615 = arith.mulf %610, %614 : vector<2x32xf32>
    %c24_168 = arith.constant 24 : index
    %c0_169 = arith.constant 0 : index
    %616 = vector.load %arg18[%c24_168, %c0_169] : memref<32x32xf32, #tpu.memory_space<vmem>>, vector<2x32xf32>
    tpu.vector_store %arg18[%c24_168, %c0_169], %615 {strides = array<i32>} : memref<32x32xf32, #tpu.memory_space<vmem>>, vector<2x32xf32>,
    %617 = vector.extract_strided_slice %367 {offsets = [26, 0], sizes = [2, 128], strides = [1, 1]} : vector<32x128xf32> to vector<2x128xf32>
    %cst_170 = arith.constant dense<0.000000e+00> : vector<2x128xf32>
    %618 = tpu.matmul %615, %363, %cst_170 {dimension_numbers = #tpu.dot_dimension_numbers<[1], [0], [0], [1], [0, 0, 1, 1], [], []>} : vector<2x32xf32>, vector<32x128xf32>, vector<2x128xf32> -> vector<2x128xf32>
    %619 = arith.addf %617, %618 : vector<2x128xf32>
    %620 = arith.negf %619 : vector<2x128xf32>
    %621 = math.exp %620 : vector<2x128xf32>
    %cst_171 = arith.constant 1.000000e+00 : f32
    %622 = vector.broadcast %cst_171 : f32 to vector<2x128xf32>
    %623 = arith.addf %622, %621 : vector<2x128xf32>
    %624 = arith.divf %622, %623 : vector<2x128xf32>
    %625 = math.tanh %619 : vector<2x128xf32>
    %626 = vector.extract_strided_slice %624 {offsets = [0, 0], sizes = [2, 32], strides = [1, 1]} : vector<2x128xf32> to vector<2x32xf32>
    %627 = vector.extract_strided_slice %624 {offsets = [0, 32], sizes = [2, 32], strides = [1, 1]} : vector<2x128xf32> to vector<2x32xf32>
    %628 = vector.extract_strided_slice %625 {offsets = [0, 64], sizes = [2, 32], strides = [1, 1]} : vector<2x128xf32> to vector<2x32xf32>
    %629 = vector.extract_strided_slice %624 {offsets = [0, 96], sizes = [2, 32], strides = [1, 1]} : vector<2x128xf32> to vector<2x32xf32>
    %630 = arith.mulf %627, %613 : vector<2x32xf32>
    %631 = arith.mulf %626, %628 : vector<2x32xf32>
    %632 = arith.addf %630, %631 : vector<2x32xf32>
    %633 = math.tanh %632 : vector<2x32xf32>
    %634 = arith.mulf %629, %633 : vector<2x32xf32>
    %c26_172 = arith.constant 26 : index
    %c0_173 = arith.constant 0 : index
    %635 = vector.load %arg18[%c26_172, %c0_173] : memref<32x32xf32, #tpu.memory_space<vmem>>, vector<2x32xf32>
    tpu.vector_store %arg18[%c26_172, %c0_173], %634 {strides = array<i32>} : memref<32x32xf32, #tpu.memory_space<vmem>>, vector<2x32xf32>,
    %636 = vector.extract_strided_slice %367 {offsets = [28, 0], sizes = [2, 128], strides = [1, 1]} : vector<32x128xf32> to vector<2x128xf32>
    %cst_174 = arith.constant dense<0.000000e+00> : vector<2x128xf32>
    %637 = tpu.matmul %634, %363, %cst_174 {dimension_numbers = #tpu.dot_dimension_numbers<[1], [0], [0], [1], [0, 0, 1, 1], [], []>} : vector<2x32xf32>, vector<32x128xf32>, vector<2x128xf32> -> vector<2x128xf32>
    %638 = arith.addf %636, %637 : vector<2x128xf32>
    %639 = arith.negf %638 : vector<2x128xf32>
    %640 = math.exp %639 : vector<2x128xf32>
    %cst_175 = arith.constant 1.000000e+00 : f32
    %641 = vector.broadcast %cst_175 : f32 to vector<2x128xf32>
    %642 = arith.addf %641, %640 : vector<2x128xf32>
    %643 = arith.divf %641, %642 : vector<2x128xf32>
    %644 = math.tanh %638 : vector<2x128xf32>
    %645 = vector.extract_strided_slice %643 {offsets = [0, 0], sizes = [2, 32], strides = [1, 1]} : vector<2x128xf32> to vector<2x32xf32>
    %646 = vector.extract_strided_slice %643 {offsets = [0, 32], sizes = [2, 32], strides = [1, 1]} : vector<2x128xf32> to vector<2x32xf32>
    %647 = vector.extract_strided_slice %644 {offsets = [0, 64], sizes = [2, 32], strides = [1, 1]} : vector<2x128xf32> to vector<2x32xf32>
    %648 = vector.extract_strided_slice %643 {offsets = [0, 96], sizes = [2, 32], strides = [1, 1]} : vector<2x128xf32> to vector<2x32xf32>
    %649 = arith.mulf %646, %632 : vector<2x32xf32>
    %650 = arith.mulf %645, %647 : vector<2x32xf32>
    %651 = arith.addf %649, %650 : vector<2x32xf32>
    %652 = math.tanh %651 : vector<2x32xf32>
    %653 = arith.mulf %648, %652 : vector<2x32xf32>
    %c28_176 = arith.constant 28 : index
    %c0_177 = arith.constant 0 : index
    %654 = vector.load %arg18[%c28_176, %c0_177] : memref<32x32xf32, #tpu.memory_space<vmem>>, vector<2x32xf32>
    tpu.vector_store %arg18[%c28_176, %c0_177], %653 {strides = array<i32>} : memref<32x32xf32, #tpu.memory_space<vmem>>, vector<2x32xf32>,
    %655 = vector.extract_strided_slice %367 {offsets = [30, 0], sizes = [2, 128], strides = [1, 1]} : vector<32x128xf32> to vector<2x128xf32>
    %cst_178 = arith.constant dense<0.000000e+00> : vector<2x128xf32>
    %656 = tpu.matmul %653, %363, %cst_178 {dimension_numbers = #tpu.dot_dimension_numbers<[1], [0], [0], [1], [0, 0, 1, 1], [], []>} : vector<2x32xf32>, vector<32x128xf32>, vector<2x128xf32> -> vector<2x128xf32>
    %657 = arith.addf %655, %656 : vector<2x128xf32>
    %658 = arith.negf %657 : vector<2x128xf32>
    %659 = math.exp %658 : vector<2x128xf32>
    %cst_179 = arith.constant 1.000000e+00 : f32
    %660 = vector.broadcast %cst_179 : f32 to vector<2x128xf32>
    %661 = arith.addf %660, %659 : vector<2x128xf32>
    %662 = arith.divf %660, %661 : vector<2x128xf32>
    %663 = math.tanh %657 : vector<2x128xf32>
    %664 = vector.extract_strided_slice %662 {offsets = [0, 0], sizes = [2, 32], strides = [1, 1]} : vector<2x128xf32> to vector<2x32xf32>
    %665 = vector.extract_strided_slice %662 {offsets = [0, 32], sizes = [2, 32], strides = [1, 1]} : vector<2x128xf32> to vector<2x32xf32>
    %666 = vector.extract_strided_slice %663 {offsets = [0, 64], sizes = [2, 32], strides = [1, 1]} : vector<2x128xf32> to vector<2x32xf32>
    %667 = vector.extract_strided_slice %662 {offsets = [0, 96], sizes = [2, 32], strides = [1, 1]} : vector<2x128xf32> to vector<2x32xf32>
    %668 = arith.mulf %665, %651 : vector<2x32xf32>
    %669 = arith.mulf %664, %666 : vector<2x32xf32>
    %670 = arith.addf %668, %669 : vector<2x32xf32>
    %671 = math.tanh %670 : vector<2x32xf32>
    %672 = arith.mulf %667, %671 : vector<2x32xf32>
    %c30_180 = arith.constant 30 : index
    %c0_181 = arith.constant 0 : index
    %673 = vector.load %arg18[%c30_180, %c0_181] : memref<32x32xf32, #tpu.memory_space<vmem>>, vector<2x32xf32>
    tpu.vector_store %arg18[%c30_180, %c0_181], %672 {strides = array<i32>} : memref<32x32xf32, #tpu.memory_space<vmem>>, vector<2x32xf32>,
    %c0_182 = arith.constant 0 : index
    %c0_183 = arith.constant 0 : index
    %674 = vector.load %arg18[%c0_182, %c0_183] : memref<32x32xf32, #tpu.memory_space<vmem>>, vector<32x32xf32>
    %c0_184 = arith.constant 0 : index
    %c0_185 = arith.constant 0 : index
    %675 = vector.load %arg12[%c0_184, %c0_185] : memref<32x16xf32, #tpu.memory_space<vmem>>, vector<32x16xf32>
    %c0_186 = arith.constant 0 : index
    %c0_187 = arith.constant 0 : index
    %676 = vector.load %arg13[%c0_186, %c0_187] : memref<1x16xf32, #tpu.memory_space<vmem>>, vector<1x16xf32>
    %cst_188 = arith.constant dense<0.000000e+00> : vector<32x16xf32>
    %677 = tpu.matmul %674, %675, %cst_188 {dimension_numbers = #tpu.dot_dimension_numbers<[1], [0], [0], [1], [0, 0, 1, 1], [], []>} : vector<32x32xf32>, vector<32x16xf32>, vector<32x16xf32> -> vector<32x16xf32>
    %678 = vector.broadcast %676 : vector<1x16xf32> to vector<32x16xf32>
    %679 = arith.addf %677, %678 : vector<32x16xf32>
    %cst_189 = arith.constant 0.000000e+00 : f32
    %680 = vector.broadcast %cst_189 : f32 to vector<32x16xf32>
    %681 = arith.maximumf %679, %680 : vector<32x16xf32>
    %c0_190 = arith.constant 0 : index
    %c0_191 = arith.constant 0 : index
    %682 = vector.load %arg14[%c0_190, %c0_191] : memref<16x1xf32, #tpu.memory_space<vmem>>, vector<16x1xf32>
    %c0_192 = arith.constant 0 : index
    %c0_193 = arith.constant 0 : index
    %683 = vector.load %arg15[%c0_192, %c0_193] : memref<1x1xf32, #tpu.memory_space<vmem>>, vector<1x1xf32>
    %cst_194 = arith.constant dense<0.000000e+00> : vector<32x1xf32>
    %684 = tpu.matmul %681, %682, %cst_194 {dimension_numbers = #tpu.dot_dimension_numbers<[1], [0], [0], [1], [0, 0, 1, 1], [], []>} : vector<32x16xf32>, vector<16x1xf32>, vector<32x1xf32> -> vector<32x1xf32>
    %685 = vector.broadcast %683 : vector<1x1xf32> to vector<32x1xf32>
    %686 = arith.addf %684, %685 : vector<32x1xf32>
    %c0_195 = arith.constant 0 : index
    %c0_196 = arith.constant 0 : index
    %687 = vector.load %arg16[%c0_195, %c0_196] : memref<32x1xf32, #tpu.memory_space<vmem>>, vector<32x1xf32>
    tpu.vector_store %arg16[%c0_195, %c0_196], %686 {strides = array<i32>} : memref<32x1xf32, #tpu.memory_space<vmem>>, vector<32x1xf32>,
    return
  }
}

</mosaic_0001>

<llo_original>
// kernel: convlstm_forward.1
$region0: #{convlstm_forward.1}
  #allocation0 [shape = 'u32[]', space=smem, size = 0x4, offset = 0x4, fixed_abs, tag = 'smem constant byte address 0x4 - core index']
  #allocation1 [shape = 'u32[144,128]{1,0:T(1,128)}', space=vmem, size = 0x12000, scoped, tag = 'internal scratch']
  #allocation2 [shape = 'f32[32,8]{1,0:T(8,128)}', space=vmem, size = 0x4000, scoped, tag = 'scratch operand']
  #allocation3 [shape = 'f32[32,32]{1,0:T(8,128)}', space=vmem, size = 0x4000, scoped, tag = 'scratch operand']
  #allocation4 [shape = 'f32[1,1]{1,0:T(1,128)S(1)}', space=vmem, size = 0x200, scoped, tag = 'scoped memory for convlstm_forward.1']
  %s0 = inlined_call_operand.vmem [shape: f32[2,16], index: 0, kind: input, shape index: {}]
  %s1 = inlined_call_operand.vmem [shape: f32[2,4], index: 1, kind: input, shape index: {}]
  %s2 = inlined_call_operand.vmem [shape: f32[16,36], index: 2, kind: input, shape index: {}]
  %s3 = inlined_call_operand.vmem [shape: f32[36,128], index: 3, kind: input, shape index: {}]
  %s4 = inlined_call_operand.vmem [shape: f32[4,128], index: 4, kind: input, shape index: {}]
  %s5 = inlined_call_operand.vmem [shape: f32[1,128], index: 5, kind: input, shape index: {}]
  %s6 = inlined_call_operand.vmem [shape: f32[8,128], index: 6, kind: input, shape index: {}]
  %s7 = inlined_call_operand.vmem [shape: f32[32,128], index: 7, kind: input, shape index: {}]
  %s8 = inlined_call_operand.vmem [shape: f32[1,128], index: 8, kind: input, shape index: {}]
  %s9 = inlined_call_operand.vmem [shape: f32[32,128], index: 9, kind: input, shape index: {}]
  %s10 = inlined_call_operand.vmem [shape: f32[32,128], index: 10, kind: input, shape index: {}]
  %s11 = inlined_call_operand.vmem [shape: f32[1,128], index: 11, kind: input, shape index: {}]
  %s12 = inlined_call_operand.vmem [shape: f32[32,16], index: 12, kind: input, shape index: {}]
  %s13 = inlined_call_operand.vmem [shape: f32[1,16], index: 13, kind: input, shape index: {}]
  %s14 = inlined_call_operand.vmem [shape: f32[16,1], index: 14, kind: input, shape index: {}]
  %s15 = inlined_call_operand.<no memory space> [shape: f32[1,1], index: 15, kind: input, shape index: {}]
  %s16 = inlined_call_operand.vmem [shape: f32[32,1], index: 16, kind: output, shape index: {}]
  %s17 = sld [smem:[#allocation0]]
  $region74: #{convlstm_forward.1} parent=0
    _
  %s19 = ssub.s32 1, %s17
  %s20 = scalar_select 0, %s19, %s17
  %v21 = vstv %s15
  %22 = vst [vmem:[#allocation4] sm:$0x1] %v21
  // Predicated region
  $region2: #{convlstm_forward.1} parent=0 // pred_check
    _
  $region3: #{convlstm_forward.1} parent=0 // pred_check_branch
    %24 = sbr.rel (0) target = $region5
  $region4: #{convlstm_forward.1} parent=0 // pred_region
    _
  $region5: #{convlstm_forward.1} parent=0 // pred_fallthru
    _
  // Predicated region
  $region6: #{convlstm_forward.1} parent=0 // pred_check
    _
  $region7: #{convlstm_forward.1} parent=0 // pred_check_branch
    %26 = sbr.rel (0) target = $region9
  $region8: #{convlstm_forward.1} parent=0 // pred_region
    _
  $region9: #{convlstm_forward.1} parent=0 // pred_fallthru
    _
  // Predicated region
  $region10: #{convlstm_forward.1} parent=0 // pred_check
    _
  $region11: #{convlstm_forward.1} parent=0 // pred_check_branch
    %28 = sbr.rel (0) target = $region13
  $region12: #{convlstm_forward.1} parent=0 // pred_region
    _
  $region13: #{convlstm_forward.1} parent=0 // pred_fallthru
    _
  // Predicated region
  $region14: #{convlstm_forward.1} parent=0 // pred_check
    _
  $region15: #{convlstm_forward.1} parent=0 // pred_check_branch
    %30 = sbr.rel (0) target = $region17
  $region16: #{convlstm_forward.1} parent=0 // pred_region
    _
  $region17: #{convlstm_forward.1} parent=0 // pred_fallthru
    _
  // Predicated region
  $region18: #{convlstm_forward.1} parent=0 // pred_check
    _
  $region19: #{convlstm_forward.1} parent=0 // pred_check_branch
    %32 = sbr.rel (0) target = $region21
  $region20: #{convlstm_forward.1} parent=0 // pred_region
    _
  $region21: #{convlstm_forward.1} parent=0 // pred_fallthru
    _
  // Predicated region
  $region22: #{convlstm_forward.1} parent=0 // pred_check
    _
  $region23: #{convlstm_forward.1} parent=0 // pred_check_branch
    %34 = sbr.rel (0) target = $region25
  $region24: #{convlstm_forward.1} parent=0 // pred_region
    _
  $region25: #{convlstm_forward.1} parent=0 // pred_fallthru
    _
  // Predicated region
  $region26: #{convlstm_forward.1} parent=0 // pred_check
    _
  $region27: #{convlstm_forward.1} parent=0 // pred_check_branch
    %36 = sbr.rel (0) target = $region29
  $region28: #{convlstm_forward.1} parent=0 // pred_region
    _
  $region29: #{convlstm_forward.1} parent=0 // pred_fallthru
    _
  // Predicated region
  $region30: #{convlstm_forward.1} parent=0 // pred_check
    _
  $region31: #{convlstm_forward.1} parent=0 // pred_check_branch
    %38 = sbr.rel (0) target = $region33
  $region32: #{convlstm_forward.1} parent=0 // pred_region
    _
  $region33: #{convlstm_forward.1} parent=0 // pred_fallthru
    _
  // Predicated region
  $region34: #{convlstm_forward.1} parent=0 // pred_check
    _
  $region35: #{convlstm_forward.1} parent=0 // pred_check_branch
    %40 = sbr.rel (0) target = $region37
  $region36: #{convlstm_forward.1} parent=0 // pred_region
    _
  $region37: #{convlstm_forward.1} parent=0 // pred_fallthru
    _
  // Predicated region
  $region38: #{convlstm_forward.1} parent=0 // pred_check
    _
  $region39: #{convlstm_forward.1} parent=0 // pred_check_branch
    %42 = sbr.rel (0) target = $region41
  $region40: #{convlstm_forward.1} parent=0 // pred_region
    _
  $region41: #{convlstm_forward.1} parent=0 // pred_fallthru
    _
  // Predicated region
  $region42: #{convlstm_forward.1} parent=0 // pred_check
    _
  $region43: #{convlstm_forward.1} parent=0 // pred_check_branch
    %44 = sbr.rel (0) target = $region45
  $region44: #{convlstm_forward.1} parent=0 // pred_region
    _
  $region45: #{convlstm_forward.1} parent=0 // pred_fallthru
    _
  // Predicated region
  $region46: #{convlstm_forward.1} parent=0 // pred_check
    _
  $region47: #{convlstm_forward.1} parent=0 // pred_check_branch
    %46 = sbr.rel (0) target = $region49
  $region48: #{convlstm_forward.1} parent=0 // pred_region
    _
  $region49: #{convlstm_forward.1} parent=0 // pred_fallthru
    _
  // Predicated region
  $region50: #{convlstm_forward.1} parent=0 // pred_check
    _
  $region51: #{convlstm_forward.1} parent=0 // pred_check_branch
    %48 = sbr.rel (0) target = $region53
  $region52: #{convlstm_forward.1} parent=0 // pred_region
    _
  $region53: #{convlstm_forward.1} parent=0 // pred_fallthru
    _
  // Predicated region
  $region54: #{convlstm_forward.1} parent=0 // pred_check
    _
  $region55: #{convlstm_forward.1} parent=0 // pred_check_branch
    %50 = sbr.rel (0) target = $region57
  $region56: #{convlstm_forward.1} parent=0 // pred_region
    _
  $region57: #{convlstm_forward.1} parent=0 // pred_fallthru
    _
  // Predicated region
  $region58: #{convlstm_forward.1} parent=0 // pred_check
    _
  $region59: #{convlstm_forward.1} parent=0 // pred_check_branch
    %52 = sbr.rel (0) target = $region61
  $region60: #{convlstm_forward.1} parent=0 // pred_region
    _
  $region61: #{convlstm_forward.1} parent=0 // pred_fallthru
    _
  // Predicated region
  $region62: #{convlstm_forward.1} parent=0 // pred_check
    _
  $region63: #{convlstm_forward.1} parent=0 // pred_check_branch
    %54 = sbr.rel (0) target = $region65
  $region64: #{convlstm_forward.1} parent=0 // pred_region
    _
  $region65: #{convlstm_forward.1} parent=0 // pred_fallthru
    _
  %v55 = vld [vmem:[%s0] sm:$0x3]
  %v56 = vld [vmem:[%s2] sm:$0xff]
  %v57 = vld [vmem:[%s2 + $0x8] sm:$0xff]
  %vm58 = vcmask 130048
  %v60 = vsel %vm58, %v55, 0
  %62 = vmatprep.subr.mxu0 0.0
  %63 = vmatpush1.msra.mxu0 0.0
  %64 = vmatprep.subr.mxu0 0.0
  %65 = vmatpush1.msra.mxu0 0.0
  %66 = vmatprep.subr.mxu0 0.0
  %67 = vmatpush1.msra.mxu0 0.0
  %68 = vmatprep.subr.mxu0 0.0
  %69 = vmatpush1.msra.mxu0 0.0
  %70 = vmatprep.subr.mxu0 0.0
  %71 = vmatpush1.msra.mxu0 0.0
  %72 = vmatprep.subr.mxu0 0.0
  %73 = vmatpush1.msra.mxu0 0.0
  %74 = vmatprep.subr.mxu0 0.0
  %75 = vmatpush1.msra.mxu0 0.0
  %76 = vmatprep.subr.mxu0 0.0
  %77 = vmatpush1.msra.mxu0 0.0
  %78 = vmatprep.subr.mxu0 0.0
  %79 = vmatpush1.msra.mxu0 0.0
  %80 = vmatprep.subr.mxu0 0.0
  %81 = vmatpush1.msra.mxu0 0.0
  %82 = vmatprep.subr.mxu0 0.0
  %83 = vmatpush1.msra.mxu0 0.0
  %84 = vmatprep.subr.mxu0 0.0
  %85 = vmatpush1.msra.mxu0 0.0
  %86 = vmatprep.subr.mxu0 0.0
  %87 = vmatpush1.msra.mxu0 0.0
  %88 = vmatprep.subr.mxu0 0.0
  %89 = vmatpush1.msra.mxu0 0.0
  %90 = vmatprep.subr.mxu0 0.0
  %91 = vmatpush1.msra.mxu0 %v57
  %92 = vmatprep.subr.mxu0 0.0
  %93 = vmatpush1.msra.mxu0 %v56
  %94 = vmatprep.subr.mxu0 0.0
  %95 = vmatpush2.msra.mxu0 0.0
  %96 = vmatprep.subr.mxu0 0.0
  %97 = vmatpush2.msra.mxu0 0.0
  %98 = vmatprep.subr.mxu0 0.0
  %99 = vmatpush2.msra.mxu0 0.0
  %100 = vmatprep.subr.mxu0 0.0
  %101 = vmatpush2.msra.mxu0 0.0
  %102 = vmatprep.subr.mxu0 0.0
  %103 = vmatpush2.msra.mxu0 0.0
  %104 = vmatprep.subr.mxu0 0.0
  %105 = vmatpush2.msra.mxu0 0.0
  %106 = vmatprep.subr.mxu0 0.0
  %107 = vmatpush2.msra.mxu0 0.0
  %108 = vmatprep.subr.mxu0 0.0
  %109 = vmatpush2.msra.mxu0 0.0
  %110 = vmatprep.subr.mxu0 0.0
  %111 = vmatpush2.msra.mxu0 0.0
  %112 = vmatprep.subr.mxu0 0.0
  %113 = vmatpush2.msra.mxu0 0.0
  %114 = vmatprep.subr.mxu0 0.0
  %115 = vmatpush2.msra.mxu0 0.0
  %116 = vmatprep.subr.mxu0 0.0
  %117 = vmatpush2.msra.mxu0 0.0
  %118 = vmatprep.subr.mxu0 0.0
  %119 = vmatpush2.msra.mxu0 0.0
  %120 = vmatprep.subr.mxu0 0.0
  %121 = vmatpush2.msra.mxu0 0.0
  %122 = vmatprep.subr.mxu0 0.0
  %123 = vmatpush2.msra.mxu0 0.0
  %124 = vmatprep.subr.mxu0 0.0
  %125 = vmatpush2.msra.mxu0 0.0
  %126 = vmatprep.mubr.f32.mxu0 0.0
  %127 = vmatmul.mubr.f32.gmra.mxu0 %v60
  %v128 = vpop.f32.mrf.mxu0
  %v129 = vadd.f32 0.0, %v128
  %v130 = vpop.f32.mrf.mxu0
  %131 = vdwg.mxu0
  %v132 = vmax.f32 %v129, 0.0
  %v133 = vld [vmem:[%s3] sm:$0xff]
  %v134 = vld [vmem:[%s3 + $0x8] sm:$0xff]
  %v135 = vld [vmem:[%s3 + $0x10] sm:$0xff]
  %v136 = vld [vmem:[%s3 + $0x18] sm:$0xff]
  %v137 = vld [vmem:[%s3 + $0x20] sm:$0xf]
  %v138 = vld [vmem:[%s1] sm:$0x3]
  %v139 = vld [vmem:[%s4] sm:$0xf]
  %vm140 = vcmask 31744
  %v142 = vsel %vm140, %v138, 0
  %vm144 = vcmask 1043456
  %v146 = vsel %vm144, %v139, 0
  %148 = vmatprep.subr.mxu0 0.0
  %149 = vmatpush1.msra.mxu0 0.0
  %150 = vmatprep.subr.mxu0 0.0
  %151 = vmatpush1.msra.mxu0 0.0
  %152 = vmatprep.subr.mxu0 0.0
  %153 = vmatpush1.msra.mxu0 0.0
  %154 = vmatprep.subr.mxu0 0.0
  %155 = vmatpush1.msra.mxu0 0.0
  %156 = vmatprep.subr.mxu0 0.0
  %157 = vmatpush1.msra.mxu0 0.0
  %158 = vmatprep.subr.mxu0 0.0
  %159 = vmatpush1.msra.mxu0 0.0
  %160 = vmatprep.subr.mxu0 0.0
  %161 = vmatpush1.msra.mxu0 0.0
  %162 = vmatprep.subr.mxu0 0.0
  %163 = vmatpush1.msra.mxu0 0.0
  %164 = vmatprep.subr.mxu0 0.0
  %165 = vmatpush1.msra.mxu0 0.0
  %166 = vmatprep.subr.mxu0 0.0
  %167 = vmatpush1.msra.mxu0 0.0
  %168 = vmatprep.subr.mxu0 0.0
  %169 = vmatpush1.msra.mxu0 0.0
  %170 = vmatprep.subr.mxu0 0.0
  %171 = vmatpush1.msra.mxu0 0.0
  %172 = vmatprep.subr.mxu0 0.0
  %173 = vmatpush1.msra.mxu0 0.0
  %174 = vmatprep.subr.mxu0 0.0
  %175 = vmatpush1.msra.mxu0 0.0
  %176 = vmatprep.subr.mxu0 0.0
  %177 = vmatpush1.msra.mxu0 0.0
  %178 = vmatprep.subr.mxu0 0.0
  %179 = vmatpush1.msra.mxu0 %v146
  %180 = vmatprep.subr.mxu0 0.0
  %181 = vmatpush2.msra.mxu0 0.0
  %182 = vmatprep.subr.mxu0 0.0
  %183 = vmatpush2.msra.mxu0 0.0
  %184 = vmatprep.subr.mxu0 0.0
  %185 = vmatpush2.msra.mxu0 0.0
  %186 = vmatprep.subr.mxu0 0.0
  %187 = vmatpush2.msra.mxu0 0.0
  %188 = vmatprep.subr.mxu0 0.0
  %189 = vmatpush2.msra.mxu0 0.0
  %190 = vmatprep.subr.mxu0 0.0
  %191 = vmatpush2.msra.mxu0 0.0
  %192 = vmatprep.subr.mxu0 0.0
  %193 = vmatpush2.msra.mxu0 0.0
  %194 = vmatprep.subr.mxu0 0.0
  %195 = vmatpush2.msra.mxu0 0.0
  %196 = vmatprep.subr.mxu0 0.0
  %197 = vmatpush2.msra.mxu0 0.0
  %198 = vmatprep.subr.mxu0 0.0
  %199 = vmatpush2.msra.mxu0 0.0
  %200 = vmatprep.subr.mxu0 0.0
  %201 = vmatpush2.msra.mxu0 0.0
  %202 = vmatprep.subr.mxu0 0.0
  %203 = vmatpush2.msra.mxu0 0.0
  %204 = vmatprep.subr.mxu0 0.0
  %205 = vmatpush2.msra.mxu0 0.0
  %206 = vmatprep.subr.mxu0 0.0
  %207 = vmatpush2.msra.mxu0 0.0
  %208 = vmatprep.subr.mxu0 0.0
  %209 = vmatpush2.msra.mxu0 0.0
  %210 = vmatprep.subr.mxu0 0.0
  %211 = vmatpush2.msra.mxu0 0.0
  %212 = vmatprep.mubr.f32.mxu0 0.0
  %213 = vmatmul.mubr.f32.gmra.mxu0 %v142
  %v214 = vpop.f32.mrf.mxu0
  %v215 = vadd.f32 0.0, %v214
  %v216 = vpop.f32.mrf.mxu0
  %217 = vdwg.mxu0
  %vm218 = vcmask 293888
  %v220 = vsel %vm218, %v132, 0
  %v223 = vsel %vm144, %v137, 0
  %225 = vmatprep.subr.mxu0 0.0
  %226 = vmatpush1.msra.mxu0 0.0
  %227 = vmatprep.subr.mxu0 0.0
  %228 = vmatpush1.msra.mxu0 0.0
  %229 = vmatprep.subr.mxu0 0.0
  %230 = vmatpush1.msra.mxu0 0.0
  %231 = vmatprep.subr.mxu0 0.0
  %232 = vmatpush1.msra.mxu0 0.0
  %233 = vmatprep.subr.mxu0 0.0
  %234 = vmatpush1.msra.mxu0 0.0
  %235 = vmatprep.subr.mxu0 0.0
  %236 = vmatpush1.msra.mxu0 0.0
  %237 = vmatprep.subr.mxu0 0.0
  %238 = vmatpush1.msra.mxu0 0.0
  %239 = vmatprep.subr.mxu0 0.0
  %240 = vmatpush1.msra.mxu0 0.0
  %241 = vmatprep.subr.mxu0 0.0
  %242 = vmatpush1.msra.mxu0 0.0
  %243 = vmatprep.subr.mxu0 0.0
  %244 = vmatpush1.msra.mxu0 0.0
  %245 = vmatprep.subr.mxu0 0.0
  %246 = vmatpush1.msra.mxu0 0.0
  %247 = vmatprep.subr.mxu0 0.0
  %248 = vmatpush1.msra.mxu0 %v223
  %249 = vmatprep.subr.mxu0 0.0
  %250 = vmatpush1.msra.mxu0 %v136
  %251 = vmatprep.subr.mxu0 0.0
  %252 = vmatpush1.msra.mxu0 %v135
  %253 = vmatprep.subr.mxu0 0.0
  %254 = vmatpush1.msra.mxu0 %v134
  %255 = vmatprep.subr.mxu0 0.0
  %256 = vmatpush1.msra.mxu0 %v133
  %257 = vmatprep.subr.mxu0 0.0
  %258 = vmatpush2.msra.mxu0 0.0
  %259 = vmatprep.subr.mxu0 0.0
  %260 = vmatpush2.msra.mxu0 0.0
  %261 = vmatprep.subr.mxu0 0.0
  %262 = vmatpush2.msra.mxu0 0.0
  %263 = vmatprep.subr.mxu0 0.0
  %264 = vmatpush2.msra.mxu0 0.0
  %265 = vmatprep.subr.mxu0 0.0
  %266 = vmatpush2.msra.mxu0 0.0
  %267 = vmatprep.subr.mxu0 0.0
  %268 = vmatpush2.msra.mxu0 0.0
  %269 = vmatprep.subr.mxu0 0.0
  %270 = vmatpush2.msra.mxu0 0.0
  %271 = vmatprep.subr.mxu0 0.0
  %272 = vmatpush2.msra.mxu0 0.0
  %273 = vmatprep.subr.mxu0 0.0
  %274 = vmatpush2.msra.mxu0 0.0
  %275 = vmatprep.subr.mxu0 0.0
  %276 = vmatpush2.msra.mxu0 0.0
  %277 = vmatprep.subr.mxu0 0.0
  %278 = vmatpush2.msra.mxu0 0.0
  %279 = vmatprep.subr.mxu0 0.0
  %280 = vmatpush2.msra.mxu0 0.0
  %281 = vmatprep.subr.mxu0 0.0
  %282 = vmatpush2.msra.mxu0 0.0
  %283 = vmatprep.subr.mxu0 0.0
  %284 = vmatpush2.msra.mxu0 0.0
  %285 = vmatprep.subr.mxu0 0.0
  %286 = vmatpush2.msra.mxu0 0.0
  %287 = vmatprep.subr.mxu0 0.0
  %288 = vmatpush2.msra.mxu0 0.0
  %289 = vmatprep.mubr.f32.mxu0 0.0
  %290 = vmatmul.mubr.f32.gmra.mxu0 %v220
  %v291 = vpop.f32.mrf.mxu0
  %v292 = vadd.f32 %v215, %v291
  %v293 = vpop.f32.mrf.mxu0
  %294 = vdwg.mxu0
  %v295 = vld [vmem:[%s5] sm:$0x1]
  %v297 = vlaneseq
  %v298 = vshrl.u32 %v297, 7
  %v299 = vsub.s32 0, %v298
  %v300 = vrot.slane %v295, %v299
  %v302 = vadd.f32 %v292, %v300
  %v303 = vmax.f32 %v302, 0.0
  %vm304 = vcmask 58368
  %305 = vst.msk [vmem:[#allocation2] sm:$0x3] %vm304, %v303
  %307 = vrot.lane.b32.xlu0 %v303, 120
  %v308 = vpop.permute.xlu0 %307
  %310 = vst.msk [vmem:[#allocation2 + $0x2] sm:$0x3] %vm304, %v308
  %311 = vrot.lane.b32.xlu0 %v303, 112
  %v312 = vpop.permute.xlu0 %311
  %314 = vst.msk [vmem:[#allocation2 + $0x4] sm:$0x3] %vm304, %v312
  %315 = vrot.lane.b32.xlu0 %v303, 104
  %v316 = vpop.permute.xlu0 %315
  %318 = vst.msk [vmem:[#allocation2 + $0x6] sm:$0x3] %vm304, %v316
  %319 = vrot.lane.b32.xlu0 %v303, 96
  %v320 = vpop.permute.xlu0 %319
  %322 = vst.msk [vmem:[#allocation2 + $0x8] sm:$0x3] %vm304, %v320
  %323 = vrot.lane.b32.xlu0 %v303, 88
  %v324 = vpop.permute.xlu0 %323
  %326 = vst.msk [vmem:[#allocation2 + $0xa] sm:$0x3] %vm304, %v324
  %327 = vrot.lane.b32.xlu0 %v303, 80
  %v328 = vpop.permute.xlu0 %327
  %330 = vst.msk [vmem:[#allocation2 + $0xc] sm:$0x3] %vm304, %v328
  %331 = vrot.lane.b32.xlu0 %v303, 72
  %v332 = vpop.permute.xlu0 %331
  %334 = vst.msk [vmem:[#allocation2 + $0xe] sm:$0x3] %vm304, %v332
  %335 = vrot.lane.b32.xlu0 %v303, 64
  %v336 = vpop.permute.xlu0 %335
  %338 = vst.msk [vmem:[#allocation2 + $0x10] sm:$0x3] %vm304, %v336
  %339 = vrot.lane.b32.xlu0 %v303, 56
  %v340 = vpop.permute.xlu0 %339
  %342 = vst.msk [vmem:[#allocation2 + $0x12] sm:$0x3] %vm304, %v340
  %343 = vrot.lane.b32.xlu0 %v303, 48
  %v344 = vpop.permute.xlu0 %343
  %346 = vst.msk [vmem:[#allocation2 + $0x14] sm:$0x3] %vm304, %v344
  %347 = vrot.lane.b32.xlu0 %v303, 40
  %v348 = vpop.permute.xlu0 %347
  %350 = vst.msk [vmem:[#allocation2 + $0x16] sm:$0x3] %vm304, %v348
  %351 = vrot.lane.b32.xlu0 %v303, 32
  %v352 = vpop.permute.xlu0 %351
  %354 = vst.msk [vmem:[#allocation2 + $0x18] sm:$0x3] %vm304, %v352
  %355 = vrot.lane.b32.xlu0 %v303, 24
  %v356 = vpop.permute.xlu0 %355
  %358 = vst.msk [vmem:[#allocation2 + $0x1a] sm:$0x3] %vm304, %v356
  %359 = vrot.lane.b32.xlu0 %v303, 16
  %v360 = vpop.permute.xlu0 %359
  %362 = vst.msk [vmem:[#allocation2 + $0x1c] sm:$0x3] %vm304, %v360
  %363 = vrot.lane.b32.xlu0 %v303, 8
  %v364 = vpop.permute.xlu0 %363
  %366 = vst.msk [vmem:[#allocation2 + $0x1e] sm:$0x3] %vm304, %v364
  %v367 = vld [vmem:[#allocation2] sm:$0xff]
  %v368 = vld [vmem:[#allocation2 + $0x8] sm:$0xff]
  %v369 = vld [vmem:[#allocation2 + $0x10] sm:$0xff]
  %v370 = vld [vmem:[#allocation2 + $0x18] sm:$0xff]
  %v371 = vld [vmem:[%s6] sm:$0xff]
  %v372 = vld [vmem:[%s7] sm:$0xff]
  %v373 = vld [vmem:[%s7 + $0x8] sm:$0xff]
  %v374 = vld [vmem:[%s7 + $0x10] sm:$0xff]
  %v375 = vld [vmem:[%s7 + $0x18] sm:$0xff]
  %v376 = vld [vmem:[%s8] sm:$0x1]
  %v378 = vlaneseq
  %v379 = vshrl.u32 %v378, 7
  %v380 = vsub.s32 0, %v379
  %v381 = vrot.slane %v376, %v380
  %vm383 = vcmask 64512
  %v385 = vsel %vm383, %v367, 0
  %v388 = vsel %vm383, %v368, 0
  %v391 = vsel %vm383, %v369, 0
  %v394 = vsel %vm383, %v370, 0
  %396 = vmatprep.subr.mxu0 0.0
  %397 = vmatpush1.msra.mxu0 0.0
  %398 = vmatprep.subr.mxu0 0.0
  %399 = vmatpush1.msra.mxu0 0.0
  %400 = vmatprep.subr.mxu0 0.0
  %401 = vmatpush1.msra.mxu0 0.0
  %402 = vmatprep.subr.mxu0 0.0
  %403 = vmatpush1.msra.mxu0 0.0
  %404 = vmatprep.subr.mxu0 0.0
  %405 = vmatpush1.msra.mxu0 0.0
  %406 = vmatprep.subr.mxu0 0.0
  %407 = vmatpush1.msra.mxu0 0.0
  %408 = vmatprep.subr.mxu0 0.0
  %409 = vmatpush1.msra.mxu0 0.0
  %410 = vmatprep.subr.mxu0 0.0
  %411 = vmatpush1.msra.mxu0 0.0
  %412 = vmatprep.subr.mxu0 0.0
  %413 = vmatpush1.msra.mxu0 0.0
  %414 = vmatprep.subr.mxu0 0.0
  %415 = vmatpush1.msra.mxu0 0.0
  %416 = vmatprep.subr.mxu0 0.0
  %417 = vmatpush1.msra.mxu0 0.0
  %418 = vmatprep.subr.mxu0 0.0
  %419 = vmatpush1.msra.mxu0 0.0
  %420 = vmatprep.subr.mxu0 0.0
  %421 = vmatpush1.msra.mxu0 0.0
  %422 = vmatprep.subr.mxu0 0.0
  %423 = vmatpush1.msra.mxu0 0.0
  %424 = vmatprep.subr.mxu0 0.0
  %425 = vmatpush1.msra.mxu0 0.0
  %426 = vmatprep.subr.mxu0 0.0
  %427 = vmatpush1.msra.mxu0 %v371
  %428 = vmatprep.subr.mxu0 0.0
  %429 = vmatpush2.msra.mxu0 0.0
  %430 = vmatprep.subr.mxu0 0.0
  %431 = vmatpush2.msra.mxu0 0.0
  %432 = vmatprep.subr.mxu0 0.0
  %433 = vmatpush2.msra.mxu0 0.0
  %434 = vmatprep.subr.mxu0 0.0
  %435 = vmatpush2.msra.mxu0 0.0
  %436 = vmatprep.subr.mxu0 0.0
  %437 = vmatpush2.msra.mxu0 0.0
  %438 = vmatprep.subr.mxu0 0.0
  %439 = vmatpush2.msra.mxu0 0.0
  %440 = vmatprep.subr.mxu0 0.0
  %441 = vmatpush2.msra.mxu0 0.0
  %442 = vmatprep.subr.mxu0 0.0
  %443 = vmatpush2.msra.mxu0 0.0
  %444 = vmatprep.subr.mxu0 0.0
  %445 = vmatpush2.msra.mxu0 0.0
  %446 = vmatprep.subr.mxu0 0.0
  %447 = vmatpush2.msra.mxu0 0.0
  %448 = vmatprep.subr.mxu0 0.0
  %449 = vmatpush2.msra.mxu0 0.0
  %450 = vmatprep.subr.mxu0 0.0
  %451 = vmatpush2.msra.mxu0 0.0
  %452 = vmatprep.subr.mxu0 0.0
  %453 = vmatpush2.msra.mxu0 0.0
  %454 = vmatprep.subr.mxu0 0.0
  %455 = vmatpush2.msra.mxu0 0.0
  %456 = vmatprep.subr.mxu0 0.0
  %457 = vmatpush2.msra.mxu0 0.0
  %458 = vmatprep.subr.mxu0 0.0
  %459 = vmatpush2.msra.mxu0 0.0
  %460 = vmatprep.mubr.f32.mxu0 0.0
  %461 = vmatmul.mubr.f32.gmra.mxu0 %v385
  %v462 = vpop.f32.mrf.mxu0
  %v463 = vadd.f32 %v381, %v462
  %v464 = vpop.f32.mrf.mxu0
  %465 = vmatprep.mubr.f32.mxu0 0.0
  %466 = vmatmul.mubr.f32.gmra.mxu0 %v388
  %v467 = vpop.f32.mrf.mxu0
  %v468 = vadd.f32 %v381, %v467
  %v469 = vpop.f32.mrf.mxu0
  %470 = vmatprep.mubr.f32.mxu0 0.0
  %471 = vmatmul.mubr.f32.gmra.mxu0 %v391
  %v472 = vpop.f32.mrf.mxu0
  %v473 = vadd.f32 %v381, %v472
  %v474 = vpop.f32.mrf.mxu0
  %475 = vmatprep.mubr.f32.mxu0 0.0
  %476 = vmatmul.mubr.f32.gmra.mxu0 %v394
  %v477 = vpop.f32.mrf.mxu0
  %v478 = vadd.f32 %v381, %v477
  %v479 = vpop.f32.mrf.mxu0
  %480 = vdwg.mxu0
  %vm481 = vcmask 261120
  %v483 = vsel %vm481, 0.0, 0
  %485 = vmatprep.subr.mxu0 0.0
  %486 = vmatpush1.msra.mxu0 0.0
  %487 = vmatprep.subr.mxu0 0.0
  %488 = vmatpush1.msra.mxu0 0.0
  %489 = vmatprep.subr.mxu0 0.0
  %490 = vmatpush1.msra.mxu0 0.0
  %491 = vmatprep.subr.mxu0 0.0
  %492 = vmatpush1.msra.mxu0 0.0
  %493 = vmatprep.subr.mxu0 0.0
  %494 = vmatpush1.msra.mxu0 0.0
  %495 = vmatprep.subr.mxu0 0.0
  %496 = vmatpush1.msra.mxu0 0.0
  %497 = vmatprep.subr.mxu0 0.0
  %498 = vmatpush1.msra.mxu0 0.0
  %499 = vmatprep.subr.mxu0 0.0
  %500 = vmatpush1.msra.mxu0 0.0
  %501 = vmatprep.subr.mxu0 0.0
  %502 = vmatpush1.msra.mxu0 0.0
  %503 = vmatprep.subr.mxu0 0.0
  %504 = vmatpush1.msra.mxu0 0.0
  %505 = vmatprep.subr.mxu0 0.0
  %506 = vmatpush1.msra.mxu0 0.0
  %507 = vmatprep.subr.mxu0 0.0
  %508 = vmatpush1.msra.mxu0 0.0
  %509 = vmatprep.subr.mxu0 0.0
  %510 = vmatpush1.msra.mxu0 %v375
  %511 = vmatprep.subr.mxu0 0.0
  %512 = vmatpush1.msra.mxu0 %v374
  %513 = vmatprep.subr.mxu0 0.0
  %514 = vmatpush1.msra.mxu0 %v373
  %515 = vmatprep.subr.mxu0 0.0
  %516 = vmatpush1.msra.mxu0 %v372
  %517 = vmatprep.subr.mxu0 0.0
  %518 = vmatpush2.msra.mxu0 0.0
  %519 = vmatprep.subr.mxu0 0.0
  %520 = vmatpush2.msra.mxu0 0.0
  %521 = vmatprep.subr.mxu0 0.0
  %522 = vmatpush2.msra.mxu0 0.0
  %523 = vmatprep.subr.mxu0 0.0
  %524 = vmatpush2.msra.mxu0 0.0
  %525 = vmatprep.subr.mxu0 0.0
  %526 = vmatpush2.msra.mxu0 0.0
  %527 = vmatprep.subr.mxu0 0.0
  %528 = vmatpush2.msra.mxu0 0.0
  %529 = vmatprep.subr.mxu0 0.0
  %530 = vmatpush2.msra.mxu0 0.0
  %531 = vmatprep.subr.mxu0 0.0
  %532 = vmatpush2.msra.mxu0 0.0
  %533 = vmatprep.subr.mxu0 0.0
  %534 = vmatpush2.msra.mxu0 0.0
  %535 = vmatprep.subr.mxu0 0.0
  %536 = vmatpush2.msra.mxu0 0.0
  %537 = vmatprep.subr.mxu0 0.0
  %538 = vmatpush2.msra.mxu0 0.0
  %539 = vmatprep.subr.mxu0 0.0
  %540 = vmatpush2.msra.mxu0 0.0
  %541 = vmatprep.subr.mxu0 0.0
  %542 = vmatpush2.msra.mxu0 0.0
  %543 = vmatprep.subr.mxu0 0.0
  %544 = vmatpush2.msra.mxu0 0.0
  %545 = vmatprep.subr.mxu0 0.0
  %546 = vmatpush2.msra.mxu0 0.0
  %547 = vmatprep.subr.mxu0 0.0
  %548 = vmatpush2.msra.mxu0 0.0
  %549 = vmatprep.mubr.f32.mxu0 0.0
  %550 = vmatmul.mubr.f32.gmra.mxu0 %v483
  %v551 = vpop.f32.mrf.mxu0
  %v552 = vadd.f32 0.0, %v551
  %v553 = vpop.f32.mrf.mxu0
  %554 = vdwg.mxu0
  %v555 = vadd.f32 %v463, %v552
  %v556 = vxor.u32 %v555, 2147483648
  %v557 = vmul.f32 %v556, 1.442695
  %v558 = vpow.pop %v557
  %v559 = vadd.f32 %v558, 1.0
  %v560 = vrcp.pop %v559
  %v561 = vmul.f32 1.0, %v560
  %v562 = vtanh.pop %v555
  %v563 = vmul.f32 %v561, 0.0
  %565 = vrot.lane.b32.xlu0 %v562, 64
  %v566 = vpop.permute.xlu0 %565
  %v568 = vmul.f32 %v561, %v566
  %570 = vrot.lane.b32.xlu0 %v568, 32
  %v571 = vpop.permute.xlu0 %570
  %v573 = vadd.f32 %v563, %v571
  %v574 = vtanh.pop %v573
  %576 = vrot.lane.b32.xlu0 %v574, 64
  %v577 = vpop.permute.xlu0 %576
  %v579 = vmul.f32 %v561, %v577
  %581 = vrot.lane.b32.xlu0 %v579, 32
  %v582 = vpop.permute.xlu0 %581
  %vm584 = vcmask 254976
  %585 = vst.msk [vmem:[#allocation3] sm:$0x3] %vm584, %v582
  %v586 = vsel %vm481, %v582, 0
  %588 = vmatprep.subr.mxu0 0.0
  %589 = vmatpush1.msra.mxu0 0.0
  %590 = vmatprep.subr.mxu0 0.0
  %591 = vmatpush1.msra.mxu0 0.0
  %592 = vmatprep.subr.mxu0 0.0
  %593 = vmatpush1.msra.mxu0 0.0
  %594 = vmatprep.subr.mxu0 0.0
  %595 = vmatpush1.msra.mxu0 0.0
  %596 = vmatprep.subr.mxu0 0.0
  %597 = vmatpush1.msra.mxu0 0.0
  %598 = vmatprep.subr.mxu0 0.0
  %599 = vmatpush1.msra.mxu0 0.0
  %600 = vmatprep.subr.mxu0 0.0
  %601 = vmatpush1.msra.mxu0 0.0
  %602 = vmatprep.subr.mxu0 0.0
  %603 = vmatpush1.msra.mxu0 0.0
  %604 = vmatprep.subr.mxu0 0.0
  %605 = vmatpush1.msra.mxu0 0.0
  %606 = vmatprep.subr.mxu0 0.0
  %607 = vmatpush1.msra.mxu0 0.0
  %608 = vmatprep.subr.mxu0 0.0
  %609 = vmatpush1.msra.mxu0 0.0
  %610 = vmatprep.subr.mxu0 0.0
  %611 = vmatpush1.msra.mxu0 0.0
  %612 = vmatprep.subr.mxu0 0.0
  %613 = vmatpush1.msra.mxu0 %v375
  %614 = vmatprep.subr.mxu0 0.0
  %615 = vmatpush1.msra.mxu0 %v374
  %616 = vmatprep.subr.mxu0 0.0
  %617 = vmatpush1.msra.mxu0 %v373
  %618 = vmatprep.subr.mxu0 0.0
  %619 = vmatpush1.msra.mxu0 %v372
  %620 = vmatprep.subr.mxu0 0.0
  %621 = vmatpush2.msra.mxu0 0.0
  %622 = vmatprep.subr.mxu0 0.0
  %623 = vmatpush2.msra.mxu0 0.0
  %624 = vmatprep.subr.mxu0 0.0
  %625 = vmatpush2.msra.mxu0 0.0
  %626 = vmatprep.subr.mxu0 0.0
  %627 = vmatpush2.msra.mxu0 0.0
  %628 = vmatprep.subr.mxu0 0.0
  %629 = vmatpush2.msra.mxu0 0.0
  %630 = vmatprep.subr.mxu0 0.0
  %631 = vmatpush2.msra.mxu0 0.0
  %632 = vmatprep.subr.mxu0 0.0
  %633 = vmatpush2.msra.mxu0 0.0
  %634 = vmatprep.subr.mxu0 0.0
  %635 = vmatpush2.msra.mxu0 0.0
  %636 = vmatprep.subr.mxu0 0.0
  %637 = vmatpush2.msra.mxu0 0.0
  %638 = vmatprep.subr.mxu0 0.0
  %639 = vmatpush2.msra.mxu0 0.0
  %640 = vmatprep.subr.mxu0 0.0
  %641 = vmatpush2.msra.mxu0 0.0
  %642 = vmatprep.subr.mxu0 0.0
  %643 = vmatpush2.msra.mxu0 0.0
  %644 = vmatprep.subr.mxu0 0.0
  %645 = vmatpush2.msra.mxu0 0.0
  %646 = vmatprep.subr.mxu0 0.0
  %647 = vmatpush2.msra.mxu0 0.0
  %648 = vmatprep.subr.mxu0 0.0
  %649 = vmatpush2.msra.mxu0 0.0
  %650 = vmatprep.subr.mxu0 0.0
  %651 = vmatpush2.msra.mxu0 0.0
  %652 = vmatprep.mubr.f32.mxu0 0.0
  %653 = vmatmul.mubr.f32.gmra.mxu0 %v586
  %v654 = vpop.f32.mrf.mxu0
  %v655 = vadd.f32 0.0, %v654
  %v656 = vpop.f32.mrf.mxu0
  %657 = vdwg.mxu0
  %v659 = vrot.slane %v655, 6
  %v661 = vadd.f32 %v463, %v659
  %v662 = vxor.u32 %v661, 2147483648
  %v663 = vmul.f32 %v662, 1.442695
  %v664 = vpow.pop %v663
  %v665 = vadd.f32 %v664, 1.0
  %v666 = vrcp.pop %v665
  %v667 = vmul.f32 1.0, %v666
  %v668 = vtanh.pop %v661
  %v670 = vrot.slane %v573, 6
  %v672 = vmul.f32 %v667, %v670
  %674 = vrot.lane.b32.xlu0 %v668, 64
  %v675 = vpop.permute.xlu0 %674
  %v677 = vmul.f32 %v667, %v675
  %679 = vrot.lane.b32.xlu0 %v677, 32
  %v680 = vpop.permute.xlu0 %679
  %v682 = vadd.f32 %v672, %v680
  %v683 = vtanh.pop %v682
  %685 = vrot.lane.b32.xlu0 %v683, 64
  %v686 = vpop.permute.xlu0 %685
  %v688 = vmul.f32 %v667, %v686
  %690 = vrot.lane.b32.xlu0 %v688, 32
  %v691 = vpop.permute.xlu0 %690
  %vm693 = vcmask 257026
  %694 = vst.msk [vmem:[#allocation3] sm:$0xc] %vm693, %v691
  %v695 = vrot.slane %v688, 2
  %696 = vrot.lane.b32.xlu0 %v695, 32
  %v697 = vpop.permute.xlu0 %696
  %v698 = vsel %vm481, %v697, 0
  %700 = vmatprep.subr.mxu0 0.0
  %701 = vmatpush1.msra.mxu0 0.0
  %702 = vmatprep.subr.mxu0 0.0
  %703 = vmatpush1.msra.mxu0 0.0
  %704 = vmatprep.subr.mxu0 0.0
  %705 = vmatpush1.msra.mxu0 0.0
  %706 = vmatprep.subr.mxu0 0.0
  %707 = vmatpush1.msra.mxu0 0.0
  %708 = vmatprep.subr.mxu0 0.0
  %709 = vmatpush1.msra.mxu0 0.0
  %710 = vmatprep.subr.mxu0 0.0
  %711 = vmatpush1.msra.mxu0 0.0
  %712 = vmatprep.subr.mxu0 0.0
  %713 = vmatpush1.msra.mxu0 0.0
  %714 = vmatprep.subr.mxu0 0.0
  %715 = vmatpush1.msra.mxu0 0.0
  %716 = vmatprep.subr.mxu0 0.0
  %717 = vmatpush1.msra.mxu0 0.0
  %718 = vmatprep.subr.mxu0 0.0
  %719 = vmatpush1.msra.mxu0 0.0
  %720 = vmatprep.subr.mxu0 0.0
  %721 = vmatpush1.msra.mxu0 0.0
  %722 = vmatprep.subr.mxu0 0.0
  %723 = vmatpush1.msra.mxu0 0.0
  %724 = vmatprep.subr.mxu0 0.0
  %725 = vmatpush1.msra.mxu0 %v375
  %726 = vmatprep.subr.mxu0 0.0
  %727 = vmatpush1.msra.mxu0 %v374
  %728 = vmatprep.subr.mxu0 0.0
  %729 = vmatpush1.msra.mxu0 %v373
  %730 = vmatprep.subr.mxu0 0.0
  %731 = vmatpush1.msra.mxu0 %v372
  %732 = vmatprep.subr.mxu0 0.0
  %733 = vmatpush2.msra.mxu0 0.0
  %734 = vmatprep.subr.mxu0 0.0
  %735 = vmatpush2.msra.mxu0 0.0
  %736 = vmatprep.subr.mxu0 0.0
  %737 = vmatpush2.msra.mxu0 0.0
  %738 = vmatprep.subr.mxu0 0.0
  %739 = vmatpush2.msra.mxu0 0.0
  %740 = vmatprep.subr.mxu0 0.0
  %741 = vmatpush2.msra.mxu0 0.0
  %742 = vmatprep.subr.mxu0 0.0
  %743 = vmatpush2.msra.mxu0 0.0
  %744 = vmatprep.subr.mxu0 0.0
  %745 = vmatpush2.msra.mxu0 0.0
  %746 = vmatprep.subr.mxu0 0.0
  %747 = vmatpush2.msra.mxu0 0.0
  %748 = vmatprep.subr.mxu0 0.0
  %749 = vmatpush2.msra.mxu0 0.0
  %750 = vmatprep.subr.mxu0 0.0
  %751 = vmatpush2.msra.mxu0 0.0
  %752 = vmatprep.subr.mxu0 0.0
  %753 = vmatpush2.msra.mxu0 0.0
  %754 = vmatprep.subr.mxu0 0.0
  %755 = vmatpush2.msra.mxu0 0.0
  %756 = vmatprep.subr.mxu0 0.0
  %757 = vmatpush2.msra.mxu0 0.0
  %758 = vmatprep.subr.mxu0 0.0
  %759 = vmatpush2.msra.mxu0 0.0
  %760 = vmatprep.subr.mxu0 0.0
  %761 = vmatpush2.msra.mxu0 0.0
  %762 = vmatprep.subr.mxu0 0.0
  %763 = vmatpush2.msra.mxu0 0.0
  %764 = vmatprep.mubr.f32.mxu0 0.0
  %765 = vmatmul.mubr.f32.gmra.mxu0 %v698
  %v766 = vpop.f32.mrf.mxu0
  %v767 = vadd.f32 0.0, %v766
  %v768 = vpop.f32.mrf.mxu0
  %769 = vdwg.mxu0
  %v771 = vrot.slane %v767, 4
  %v773 = vadd.f32 %v463, %v771
  %v774 = vxor.u32 %v773, 2147483648
  %v775 = vmul.f32 %v774, 1.442695
  %v776 = vpow.pop %v775
  %v777 = vadd.f32 %v776, 1.0
  %v778 = vrcp.pop %v777
  %v779 = vmul.f32 1.0, %v778
  %v780 = vtanh.pop %v773
  %v782 = vrot.slane %v682, 6
  %v784 = vmul.f32 %v779, %v782
  %786 = vrot.lane.b32.xlu0 %v780, 64
  %v787 = vpop.permute.xlu0 %786
  %v789 = vmul.f32 %v779, %v787
  %791 = vrot.lane.b32.xlu0 %v789, 32
  %v792 = vpop.permute.xlu0 %791
  %v794 = vadd.f32 %v784, %v792
  %v795 = vtanh.pop %v794
  %797 = vrot.lane.b32.xlu0 %v795, 64
  %v798 = vpop.permute.xlu0 %797
  %v800 = vmul.f32 %v779, %v798
  %802 = vrot.lane.b32.xlu0 %v800, 32
  %v803 = vpop.permute.xlu0 %802
  %vm805 = vcmask 259076
  %806 = vst.msk [vmem:[#allocation3] sm:$0x30] %vm805, %v803
  %v807 = vrot.slane %v800, 4
  %808 = vrot.lane.b32.xlu0 %v807, 32
  %v809 = vpop.permute.xlu0 %808
  %v810 = vsel %vm481, %v809, 0
  %812 = vmatprep.subr.mxu0 0.0
  %813 = vmatpush1.msra.mxu0 0.0
  %814 = vmatprep.subr.mxu0 0.0
  %815 = vmatpush1.msra.mxu0 0.0
  %816 = vmatprep.subr.mxu0 0.0
  %817 = vmatpush1.msra.mxu0 0.0
  %818 = vmatprep.subr.mxu0 0.0
  %819 = vmatpush1.msra.mxu0 0.0
  %820 = vmatprep.subr.mxu0 0.0
  %821 = vmatpush1.msra.mxu0 0.0
  %822 = vmatprep.subr.mxu0 0.0
  %823 = vmatpush1.msra.mxu0 0.0
  %824 = vmatprep.subr.mxu0 0.0
  %825 = vmatpush1.msra.mxu0 0.0
  %826 = vmatprep.subr.mxu0 0.0
  %827 = vmatpush1.msra.mxu0 0.0
  %828 = vmatprep.subr.mxu0 0.0
  %829 = vmatpush1.msra.mxu0 0.0
  %830 = vmatprep.subr.mxu0 0.0
  %831 = vmatpush1.msra.mxu0 0.0
  %832 = vmatprep.subr.mxu0 0.0
  %833 = vmatpush1.msra.mxu0 0.0
  %834 = vmatprep.subr.mxu0 0.0
  %835 = vmatpush1.msra.mxu0 0.0
  %836 = vmatprep.subr.mxu0 0.0
  %837 = vmatpush1.msra.mxu0 %v375
  %838 = vmatprep.subr.mxu0 0.0
  %839 = vmatpush1.msra.mxu0 %v374
  %840 = vmatprep.subr.mxu0 0.0
  %841 = vmatpush1.msra.mxu0 %v373
  %842 = vmatprep.subr.mxu0 0.0
  %843 = vmatpush1.msra.mxu0 %v372
  %844 = vmatprep.subr.mxu0 0.0
  %845 = vmatpush2.msra.mxu0 0.0
  %846 = vmatprep.subr.mxu0 0.0
  %847 = vmatpush2.msra.mxu0 0.0
  %848 = vmatprep.subr.mxu0 0.0
  %849 = vmatpush2.msra.mxu0 0.0
  %850 = vmatprep.subr.mxu0 0.0
  %851 = vmatpush2.msra.mxu0 0.0
  %852 = vmatprep.subr.mxu0 0.0
  %853 = vmatpush2.msra.mxu0 0.0
  %854 = vmatprep.subr.mxu0 0.0
  %855 = vmatpush2.msra.mxu0 0.0
  %856 = vmatprep.subr.mxu0 0.0
  %857 = vmatpush2.msra.mxu0 0.0
  %858 = vmatprep.subr.mxu0 0.0
  %859 = vmatpush2.msra.mxu0 0.0
  %860 = vmatprep.subr.mxu0 0.0
  %861 = vmatpush2.msra.mxu0 0.0
  %862 = vmatprep.subr.mxu0 0.0
  %863 = vmatpush2.msra.mxu0 0.0
  %864 = vmatprep.subr.mxu0 0.0
  %865 = vmatpush2.msra.mxu0 0.0
  %866 = vmatprep.subr.mxu0 0.0
  %867 = vmatpush2.msra.mxu0 0.0
  %868 = vmatprep.subr.mxu0 0.0
  %869 = vmatpush2.msra.mxu0 0.0
  %870 = vmatprep.subr.mxu0 0.0
  %871 = vmatpush2.msra.mxu0 0.0
  %872 = vmatprep.subr.mxu0 0.0
  %873 = vmatpush2.msra.mxu0 0.0
  %874 = vmatprep.subr.mxu0 0.0
  %875 = vmatpush2.msra.mxu0 0.0
  %876 = vmatprep.mubr.f32.mxu0 0.0
  %877 = vmatmul.mubr.f32.gmra.mxu0 %v810
  %v878 = vpop.f32.mrf.mxu0
  %v879 = vadd.f32 0.0, %v878
  %v880 = vpop.f32.mrf.mxu0
  %881 = vdwg.mxu0
  %v883 = vrot.slane %v879, 2
  %v885 = vadd.f32 %v463, %v883
  %v886 = vxor.u32 %v885, 2147483648
  %v887 = vmul.f32 %v886, 1.442695
  %v888 = vpow.pop %v887
  %v889 = vadd.f32 %v888, 1.0
  %v890 = vrcp.pop %v889
  %v891 = vmul.f32 1.0, %v890
  %v892 = vtanh.pop %v885
  %v894 = vrot.slane %v794, 6
  %v896 = vmul.f32 %v891, %v894
  %898 = vrot.lane.b32.xlu0 %v892, 64
  %v899 = vpop.permute.xlu0 %898
  %v901 = vmul.f32 %v891, %v899
  %903 = vrot.lane.b32.xlu0 %v901, 32
  %v904 = vpop.permute.xlu0 %903
  %v906 = vadd.f32 %v896, %v904
  %v907 = vtanh.pop %v906
  %909 = vrot.lane.b32.xlu0 %v907, 64
  %v910 = vpop.permute.xlu0 %909
  %v912 = vmul.f32 %v891, %v910
  %914 = vrot.lane.b32.xlu0 %v912, 32
  %v915 = vpop.permute.xlu0 %914
  %vm917 = vcmask 261126
  %918 = vst.msk [vmem:[#allocation3] sm:$0xc0] %vm917, %v915
  %v919 = vrot.slane %v912, 6
  %920 = vrot.lane.b32.xlu0 %v919, 32
  %v921 = vpop.permute.xlu0 %920
  %v922 = vsel %vm481, %v921, 0
  %924 = vmatprep.subr.mxu0 0.0
  %925 = vmatpush1.msra.mxu0 0.0
  %926 = vmatprep.subr.mxu0 0.0
  %927 = vmatpush1.msra.mxu0 0.0
  %928 = vmatprep.subr.mxu0 0.0
  %929 = vmatpush1.msra.mxu0 0.0
  %930 = vmatprep.subr.mxu0 0.0
  %931 = vmatpush1.msra.mxu0 0.0
  %932 = vmatprep.subr.mxu0 0.0
  %933 = vmatpush1.msra.mxu0 0.0
  %934 = vmatprep.subr.mxu0 0.0
  %935 = vmatpush1.msra.mxu0 0.0
  %936 = vmatprep.subr.mxu0 0.0
  %937 = vmatpush1.msra.mxu0 0.0
  %938 = vmatprep.subr.mxu0 0.0
  %939 = vmatpush1.msra.mxu0 0.0
  %940 = vmatprep.subr.mxu0 0.0
  %941 = vmatpush1.msra.mxu0 0.0
  %942 = vmatprep.subr.mxu0 0.0
  %943 = vmatpush1.msra.mxu0 0.0
  %944 = vmatprep.subr.mxu0 0.0
  %945 = vmatpush1.msra.mxu0 0.0
  %946 = vmatprep.subr.mxu0 0.0
  %947 = vmatpush1.msra.mxu0 0.0
  %948 = vmatprep.subr.mxu0 0.0
  %949 = vmatpush1.msra.mxu0 %v375
  %950 = vmatprep.subr.mxu0 0.0
  %951 = vmatpush1.msra.mxu0 %v374
  %952 = vmatprep.subr.mxu0 0.0
  %953 = vmatpush1.msra.mxu0 %v373
  %954 = vmatprep.subr.mxu0 0.0
  %955 = vmatpush1.msra.mxu0 %v372
  %956 = vmatprep.subr.mxu0 0.0
  %957 = vmatpush2.msra.mxu0 0.0
  %958 = vmatprep.subr.mxu0 0.0
  %959 = vmatpush2.msra.mxu0 0.0
  %960 = vmatprep.subr.mxu0 0.0
  %961 = vmatpush2.msra.mxu0 0.0
  %962 = vmatprep.subr.mxu0 0.0
  %963 = vmatpush2.msra.mxu0 0.0
  %964 = vmatprep.subr.mxu0 0.0
  %965 = vmatpush2.msra.mxu0 0.0
  %966 = vmatprep.subr.mxu0 0.0
  %967 = vmatpush2.msra.mxu0 0.0
  %968 = vmatprep.subr.mxu0 0.0
  %969 = vmatpush2.msra.mxu0 0.0
  %970 = vmatprep.subr.mxu0 0.0
  %971 = vmatpush2.msra.mxu0 0.0
  %972 = vmatprep.subr.mxu0 0.0
  %973 = vmatpush2.msra.mxu0 0.0
  %974 = vmatprep.subr.mxu0 0.0
  %975 = vmatpush2.msra.mxu0 0.0
  %976 = vmatprep.subr.mxu0 0.0
  %977 = vmatpush2.msra.mxu0 0.0
  %978 = vmatprep.subr.mxu0 0.0
  %979 = vmatpush2.msra.mxu0 0.0
  %980 = vmatprep.subr.mxu0 0.0
  %981 = vmatpush2.msra.mxu0 0.0
  %982 = vmatprep.subr.mxu0 0.0
  %983 = vmatpush2.msra.mxu0 0.0
  %984 = vmatprep.subr.mxu0 0.0
  %985 = vmatpush2.msra.mxu0 0.0
  %986 = vmatprep.subr.mxu0 0.0
  %987 = vmatpush2.msra.mxu0 0.0
  %988 = vmatprep.mubr.f32.mxu0 0.0
  %989 = vmatmul.mubr.f32.gmra.mxu0 %v922
  %v990 = vpop.f32.mrf.mxu0
  %v991 = vadd.f32 0.0, %v990
  %v992 = vpop.f32.mrf.mxu0
  %993 = vdwg.mxu0
  %v994 = vadd.f32 %v468, %v991
  %v995 = vxor.u32 %v994, 2147483648
  %v996 = vmul.f32 %v995, 1.442695
  %v997 = vpow.pop %v996
  %v998 = vadd.f32 %v997, 1.0
  %v999 = vrcp.pop %v998
  %v1000 = vmul.f32 1.0, %v999
  %v1001 = vtanh.pop %v994
  %v1003 = vrot.slane %v906, 6
  %v1005 = vmul.f32 %v1000, %v1003
  %1007 = vrot.lane.b32.xlu0 %v1001, 64
  %v1008 = vpop.permute.xlu0 %1007
  %v1010 = vmul.f32 %v1000, %v1008
  %1012 = vrot.lane.b32.xlu0 %v1010, 32
  %v1013 = vpop.permute.xlu0 %1012
  %v1015 = vadd.f32 %v1005, %v1013
  %v1016 = vtanh.pop %v1015
  %1018 = vrot.lane.b32.xlu0 %v1016, 64
  %v1019 = vpop.permute.xlu0 %1018
  %v1021 = vmul.f32 %v1000, %v1019
  %1023 = vrot.lane.b32.xlu0 %v1021, 32
  %v1024 = vpop.permute.xlu0 %1023
  %1026 = vst.msk [vmem:[#allocation3 + $0x8] sm:$0x3] %vm584, %v1024
  %v1027 = vsel %vm481, %v1024, 0
  %1029 = vmatprep.subr.mxu0 0.0
  %1030 = vmatpush1.msra.mxu0 0.0
  %1031 = vmatprep.subr.mxu0 0.0
  %1032 = vmatpush1.msra.mxu0 0.0
  %1033 = vmatprep.subr.mxu0 0.0
  %1034 = vmatpush1.msra.mxu0 0.0
  %1035 = vmatprep.subr.mxu0 0.0
  %1036 = vmatpush1.msra.mxu0 0.0
  %1037 = vmatprep.subr.mxu0 0.0
  %1038 = vmatpush1.msra.mxu0 0.0
  %1039 = vmatprep.subr.mxu0 0.0
  %1040 = vmatpush1.msra.mxu0 0.0
  %1041 = vmatprep.subr.mxu0 0.0
  %1042 = vmatpush1.msra.mxu0 0.0
  %1043 = vmatprep.subr.mxu0 0.0
  %1044 = vmatpush1.msra.mxu0 0.0
  %1045 = vmatprep.subr.mxu0 0.0
  %1046 = vmatpush1.msra.mxu0 0.0
  %1047 = vmatprep.subr.mxu0 0.0
  %1048 = vmatpush1.msra.mxu0 0.0
  %1049 = vmatprep.subr.mxu0 0.0
  %1050 = vmatpush1.msra.mxu0 0.0
  %1051 = vmatprep.subr.mxu0 0.0
  %1052 = vmatpush1.msra.mxu0 0.0
  %1053 = vmatprep.subr.mxu0 0.0
  %1054 = vmatpush1.msra.mxu0 %v375
  %1055 = vmatprep.subr.mxu0 0.0
  %1056 = vmatpush1.msra.mxu0 %v374
  %1057 = vmatprep.subr.mxu0 0.0
  %1058 = vmatpush1.msra.mxu0 %v373
  %1059 = vmatprep.subr.mxu0 0.0
  %1060 = vmatpush1.msra.mxu0 %v372
  %1061 = vmatprep.subr.mxu0 0.0
  %1062 = vmatpush2.msra.mxu0 0.0
  %1063 = vmatprep.subr.mxu0 0.0
  %1064 = vmatpush2.msra.mxu0 0.0
  %1065 = vmatprep.subr.mxu0 0.0
  %1066 = vmatpush2.msra.mxu0 0.0
  %1067 = vmatprep.subr.mxu0 0.0
  %1068 = vmatpush2.msra.mxu0 0.0
  %1069 = vmatprep.subr.mxu0 0.0
  %1070 = vmatpush2.msra.mxu0 0.0
  %1071 = vmatprep.subr.mxu0 0.0
  %1072 = vmatpush2.msra.mxu0 0.0
  %1073 = vmatprep.subr.mxu0 0.0
  %1074 = vmatpush2.msra.mxu0 0.0
  %1075 = vmatprep.subr.mxu0 0.0
  %1076 = vmatpush2.msra.mxu0 0.0
  %1077 = vmatprep.subr.mxu0 0.0
  %1078 = vmatpush2.msra.mxu0 0.0
  %1079 = vmatprep.subr.mxu0 0.0
  %1080 = vmatpush2.msra.mxu0 0.0
  %1081 = vmatprep.subr.mxu0 0.0
  %1082 = vmatpush2.msra.mxu0 0.0
  %1083 = vmatprep.subr.mxu0 0.0
  %1084 = vmatpush2.msra.mxu0 0.0
  %1085 = vmatprep.subr.mxu0 0.0
  %1086 = vmatpush2.msra.mxu0 0.0
  %1087 = vmatprep.subr.mxu0 0.0
  %1088 = vmatpush2.msra.mxu0 0.0
  %1089 = vmatprep.subr.mxu0 0.0
  %1090 = vmatpush2.msra.mxu0 0.0
  %1091 = vmatprep.subr.mxu0 0.0
  %1092 = vmatpush2.msra.mxu0 0.0
  %1093 = vmatprep.mubr.f32.mxu0 0.0
  %1094 = vmatmul.mubr.f32.gmra.mxu0 %v1027
  %v1095 = vpop.f32.mrf.mxu0
  %v1096 = vadd.f32 0.0, %v1095
  %v1097 = vpop.f32.mrf.mxu0
  %1098 = vdwg.mxu0
  %v1100 = vrot.slane %v1096, 6
  %v1102 = vadd.f32 %v468, %v1100
  %v1103 = vxor.u32 %v1102, 2147483648
  %v1104 = vmul.f32 %v1103, 1.442695
  %v1105 = vpow.pop %v1104
  %v1106 = vadd.f32 %v1105, 1.0
  %v1107 = vrcp.pop %v1106
  %v1108 = vmul.f32 1.0, %v1107
  %v1109 = vtanh.pop %v1102
  %v1111 = vrot.slane %v1015, 6
  %v1113 = vmul.f32 %v1108, %v1111
  %1115 = vrot.lane.b32.xlu0 %v1109, 64
  %v1116 = vpop.permute.xlu0 %1115
  %v1118 = vmul.f32 %v1108, %v1116
  %1120 = vrot.lane.b32.xlu0 %v1118, 32
  %v1121 = vpop.permute.xlu0 %1120
  %v1123 = vadd.f32 %v1113, %v1121
  %v1124 = vtanh.pop %v1123
  %1126 = vrot.lane.b32.xlu0 %v1124, 64
  %v1127 = vpop.permute.xlu0 %1126
  %v1129 = vmul.f32 %v1108, %v1127
  %1131 = vrot.lane.b32.xlu0 %v1129, 32
  %v1132 = vpop.permute.xlu0 %1131
  %1134 = vst.msk [vmem:[#allocation3 + $0x8] sm:$0xc] %vm693, %v1132
  %v1135 = vrot.slane %v1129, 2
  %1136 = vrot.lane.b32.xlu0 %v1135, 32
  %v1137 = vpop.permute.xlu0 %1136
  %v1138 = vsel %vm481, %v1137, 0
  %1140 = vmatprep.subr.mxu0 0.0
  %1141 = vmatpush1.msra.mxu0 0.0
  %1142 = vmatprep.subr.mxu0 0.0
  %1143 = vmatpush1.msra.mxu0 0.0
  %1144 = vmatprep.subr.mxu0 0.0
  %1145 = vmatpush1.msra.mxu0 0.0
  %1146 = vmatprep.subr.mxu0 0.0
  %1147 = vmatpush1.msra.mxu0 0.0
  %1148 = vmatprep.subr.mxu0 0.0
  %1149 = vmatpush1.msra.mxu0 0.0
  %1150 = vmatprep.subr.mxu0 0.0
  %1151 = vmatpush1.msra.mxu0 0.0
  %1152 = vmatprep.subr.mxu0 0.0
  %1153 = vmatpush1.msra.mxu0 0.0
  %1154 = vmatprep.subr.mxu0 0.0
  %1155 = vmatpush1.msra.mxu0 0.0
  %1156 = vmatprep.subr.mxu0 0.0
  %1157 = vmatpush1.msra.mxu0 0.0
  %1158 = vmatprep.subr.mxu0 0.0
  %1159 = vmatpush1.msra.mxu0 0.0
  %1160 = vmatprep.subr.mxu0 0.0
  %1161 = vmatpush1.msra.mxu0 0.0
  %1162 = vmatprep.subr.mxu0 0.0
  %1163 = vmatpush1.msra.mxu0 0.0
  %1164 = vmatprep.subr.mxu0 0.0
  %1165 = vmatpush1.msra.mxu0 %v375
  %1166 = vmatprep.subr.mxu0 0.0
  %1167 = vmatpush1.msra.mxu0 %v374
  %1168 = vmatprep.subr.mxu0 0.0
  %1169 = vmatpush1.msra.mxu0 %v373
  %1170 = vmatprep.subr.mxu0 0.0
  %1171 = vmatpush1.msra.mxu0 %v372
  %1172 = vmatprep.subr.mxu0 0.0
  %1173 = vmatpush2.msra.mxu0 0.0
  %1174 = vmatprep.subr.mxu0 0.0
  %1175 = vmatpush2.msra.mxu0 0.0
  %1176 = vmatprep.subr.mxu0 0.0
  %1177 = vmatpush2.msra.mxu0 0.0
  %1178 = vmatprep.subr.mxu0 0.0
  %1179 = vmatpush2.msra.mxu0 0.0
  %1180 = vmatprep.subr.mxu0 0.0
  %1181 = vmatpush2.msra.mxu0 0.0
  %1182 = vmatprep.subr.mxu0 0.0
  %1183 = vmatpush2.msra.mxu0 0.0
  %1184 = vmatprep.subr.mxu0 0.0
  %1185 = vmatpush2.msra.mxu0 0.0
  %1186 = vmatprep.subr.mxu0 0.0
  %1187 = vmatpush2.msra.mxu0 0.0
  %1188 = vmatprep.subr.mxu0 0.0
  %1189 = vmatpush2.msra.mxu0 0.0
  %1190 = vmatprep.subr.mxu0 0.0
  %1191 = vmatpush2.msra.mxu0 0.0
  %1192 = vmatprep.subr.mxu0 0.0
  %1193 = vmatpush2.msra.mxu0 0.0
  %1194 = vmatprep.subr.mxu0 0.0
  %1195 = vmatpush2.msra.mxu0 0.0
  %1196 = vmatprep.subr.mxu0 0.0
  %1197 = vmatpush2.msra.mxu0 0.0
  %1198 = vmatprep.subr.mxu0 0.0
  %1199 = vmatpush2.msra.mxu0 0.0
  %1200 = vmatprep.subr.mxu0 0.0
  %1201 = vmatpush2.msra.mxu0 0.0
  %1202 = vmatprep.subr.mxu0 0.0
  %1203 = vmatpush2.msra.mxu0 0.0
  %1204 = vmatprep.mubr.f32.mxu0 0.0
  %1205 = vmatmul.mubr.f32.gmra.mxu0 %v1138
  %v1206 = vpop.f32.mrf.mxu0
  %v1207 = vadd.f32 0.0, %v1206
  %v1208 = vpop.f32.mrf.mxu0
  %1209 = vdwg.mxu0
  %v1211 = vrot.slane %v1207, 4
  %v1213 = vadd.f32 %v468, %v1211
  %v1214 = vxor.u32 %v1213, 2147483648
  %v1215 = vmul.f32 %v1214, 1.442695
  %v1216 = vpow.pop %v1215
  %v1217 = vadd.f32 %v1216, 1.0
  %v1218 = vrcp.pop %v1217
  %v1219 = vmul.f32 1.0, %v1218
  %v1220 = vtanh.pop %v1213
  %v1222 = vrot.slane %v1123, 6
  %v1224 = vmul.f32 %v1219, %v1222
  %1226 = vrot.lane.b32.xlu0 %v1220, 64
  %v1227 = vpop.permute.xlu0 %1226
  %v1229 = vmul.f32 %v1219, %v1227
  %1231 = vrot.lane.b32.xlu0 %v1229, 32
  %v1232 = vpop.permute.xlu0 %1231
  %v1234 = vadd.f32 %v1224, %v1232
  %v1235 = vtanh.pop %v1234
  %1237 = vrot.lane.b32.xlu0 %v1235, 64
  %v1238 = vpop.permute.xlu0 %1237
  %v1240 = vmul.f32 %v1219, %v1238
  %1242 = vrot.lane.b32.xlu0 %v1240, 32
  %v1243 = vpop.permute.xlu0 %1242
  %1245 = vst.msk [vmem:[#allocation3 + $0x8] sm:$0x30] %vm805, %v1243
  %v1246 = vrot.slane %v1240, 4
  %1247 = vrot.lane.b32.xlu0 %v1246, 32
  %v1248 = vpop.permute.xlu0 %1247
  %v1249 = vsel %vm481, %v1248, 0
  %1251 = vmatprep.subr.mxu0 0.0
  %1252 = vmatpush1.msra.mxu0 0.0
  %1253 = vmatprep.subr.mxu0 0.0
  %1254 = vmatpush1.msra.mxu0 0.0
  %1255 = vmatprep.subr.mxu0 0.0
  %1256 = vmatpush1.msra.mxu0 0.0
  %1257 = vmatprep.subr.mxu0 0.0
  %1258 = vmatpush1.msra.mxu0 0.0
  %1259 = vmatprep.subr.mxu0 0.0
  %1260 = vmatpush1.msra.mxu0 0.0
  %1261 = vmatprep.subr.mxu0 0.0
  %1262 = vmatpush1.msra.mxu0 0.0
  %1263 = vmatprep.subr.mxu0 0.0
  %1264 = vmatpush1.msra.mxu0 0.0
  %1265 = vmatprep.subr.mxu0 0.0
  %1266 = vmatpush1.msra.mxu0 0.0
  %1267 = vmatprep.subr.mxu0 0.0
  %1268 = vmatpush1.msra.mxu0 0.0
  %1269 = vmatprep.subr.mxu0 0.0
  %1270 = vmatpush1.msra.mxu0 0.0
  %1271 = vmatprep.subr.mxu0 0.0
  %1272 = vmatpush1.msra.mxu0 0.0
  %1273 = vmatprep.subr.mxu0 0.0
  %1274 = vmatpush1.msra.mxu0 0.0
  %1275 = vmatprep.subr.mxu0 0.0
  %1276 = vmatpush1.msra.mxu0 %v375
  %1277 = vmatprep.subr.mxu0 0.0
  %1278 = vmatpush1.msra.mxu0 %v374
  %1279 = vmatprep.subr.mxu0 0.0
  %1280 = vmatpush1.msra.mxu0 %v373
  %1281 = vmatprep.subr.mxu0 0.0
  %1282 = vmatpush1.msra.mxu0 %v372
  %1283 = vmatprep.subr.mxu0 0.0
  %1284 = vmatpush2.msra.mxu0 0.0
  %1285 = vmatprep.subr.mxu0 0.0
  %1286 = vmatpush2.msra.mxu0 0.0
  %1287 = vmatprep.subr.mxu0 0.0
  %1288 = vmatpush2.msra.mxu0 0.0
  %1289 = vmatprep.subr.mxu0 0.0
  %1290 = vmatpush2.msra.mxu0 0.0
  %1291 = vmatprep.subr.mxu0 0.0
  %1292 = vmatpush2.msra.mxu0 0.0
  %1293 = vmatprep.subr.mxu0 0.0
  %1294 = vmatpush2.msra.mxu0 0.0
  %1295 = vmatprep.subr.mxu0 0.0
  %1296 = vmatpush2.msra.mxu0 0.0
  %1297 = vmatprep.subr.mxu0 0.0
  %1298 = vmatpush2.msra.mxu0 0.0
  %1299 = vmatprep.subr.mxu0 0.0
  %1300 = vmatpush2.msra.mxu0 0.0
  %1301 = vmatprep.subr.mxu0 0.0
  %1302 = vmatpush2.msra.mxu0 0.0
  %1303 = vmatprep.subr.mxu0 0.0
  %1304 = vmatpush2.msra.mxu0 0.0
  %1305 = vmatprep.subr.mxu0 0.0
  %1306 = vmatpush2.msra.mxu0 0.0
  %1307 = vmatprep.subr.mxu0 0.0
  %1308 = vmatpush2.msra.mxu0 0.0
  %1309 = vmatprep.subr.mxu0 0.0
  %1310 = vmatpush2.msra.mxu0 0.0
  %1311 = vmatprep.subr.mxu0 0.0
  %1312 = vmatpush2.msra.mxu0 0.0
  %1313 = vmatprep.subr.mxu0 0.0
  %1314 = vmatpush2.msra.mxu0 0.0
  %1315 = vmatprep.mubr.f32.mxu0 0.0
  %1316 = vmatmul.mubr.f32.gmra.mxu0 %v1249
  %v1317 = vpop.f32.mrf.mxu0
  %v1318 = vadd.f32 0.0, %v1317
  %v1319 = vpop.f32.mrf.mxu0
  %1320 = vdwg.mxu0
  %v1322 = vrot.slane %v1318, 2
  %v1324 = vadd.f32 %v468, %v1322
  %v1325 = vxor.u32 %v1324, 2147483648
  %v1326 = vmul.f32 %v1325, 1.442695
  %v1327 = vpow.pop %v1326
  %v1328 = vadd.f32 %v1327, 1.0
  %v1329 = vrcp.pop %v1328
  %v1330 = vmul.f32 1.0, %v1329
  %v1331 = vtanh.pop %v1324
  %v1333 = vrot.slane %v1234, 6
  %v1335 = vmul.f32 %v1330, %v1333
  %1337 = vrot.lane.b32.xlu0 %v1331, 64
  %v1338 = vpop.permute.xlu0 %1337
  %v1340 = vmul.f32 %v1330, %v1338
  %1342 = vrot.lane.b32.xlu0 %v1340, 32
  %v1343 = vpop.permute.xlu0 %1342
  %v1345 = vadd.f32 %v1335, %v1343
  %v1346 = vtanh.pop %v1345
  %1348 = vrot.lane.b32.xlu0 %v1346, 64
  %v1349 = vpop.permute.xlu0 %1348
  %v1351 = vmul.f32 %v1330, %v1349
  %1353 = vrot.lane.b32.xlu0 %v1351, 32
  %v1354 = vpop.permute.xlu0 %1353
  %1356 = vst.msk [vmem:[#allocation3 + $0x8] sm:$0xc0] %vm917, %v1354
  %v1357 = vrot.slane %v1351, 6
  %1358 = vrot.lane.b32.xlu0 %v1357, 32
  %v1359 = vpop.permute.xlu0 %1358
  %v1360 = vsel %vm481, %v1359, 0
  %1362 = vmatprep.subr.mxu0 0.0
  %1363 = vmatpush1.msra.mxu0 0.0
  %1364 = vmatprep.subr.mxu0 0.0
  %1365 = vmatpush1.msra.mxu0 0.0
  %1366 = vmatprep.subr.mxu0 0.0
  %1367 = vmatpush1.msra.mxu0 0.0
  %1368 = vmatprep.subr.mxu0 0.0
  %1369 = vmatpush1.msra.mxu0 0.0
  %1370 = vmatprep.subr.mxu0 0.0
  %1371 = vmatpush1.msra.mxu0 0.0
  %1372 = vmatprep.subr.mxu0 0.0
  %1373 = vmatpush1.msra.mxu0 0.0
  %1374 = vmatprep.subr.mxu0 0.0
  %1375 = vmatpush1.msra.mxu0 0.0
  %1376 = vmatprep.subr.mxu0 0.0
  %1377 = vmatpush1.msra.mxu0 0.0
  %1378 = vmatprep.subr.mxu0 0.0
  %1379 = vmatpush1.msra.mxu0 0.0
  %1380 = vmatprep.subr.mxu0 0.0
  %1381 = vmatpush1.msra.mxu0 0.0
  %1382 = vmatprep.subr.mxu0 0.0
  %1383 = vmatpush1.msra.mxu0 0.0
  %1384 = vmatprep.subr.mxu0 0.0
  %1385 = vmatpush1.msra.mxu0 0.0
  %1386 = vmatprep.subr.mxu0 0.0
  %1387 = vmatpush1.msra.mxu0 %v375
  %1388 = vmatprep.subr.mxu0 0.0
  %1389 = vmatpush1.msra.mxu0 %v374
  %1390 = vmatprep.subr.mxu0 0.0
  %1391 = vmatpush1.msra.mxu0 %v373
  %1392 = vmatprep.subr.mxu0 0.0
  %1393 = vmatpush1.msra.mxu0 %v372
  %1394 = vmatprep.subr.mxu0 0.0
  %1395 = vmatpush2.msra.mxu0 0.0
  %1396 = vmatprep.subr.mxu0 0.0
  %1397 = vmatpush2.msra.mxu0 0.0
  %1398 = vmatprep.subr.mxu0 0.0
  %1399 = vmatpush2.msra.mxu0 0.0
  %1400 = vmatprep.subr.mxu0 0.0
  %1401 = vmatpush2.msra.mxu0 0.0
  %1402 = vmatprep.subr.mxu0 0.0
  %1403 = vmatpush2.msra.mxu0 0.0
  %1404 = vmatprep.subr.mxu0 0.0
  %1405 = vmatpush2.msra.mxu0 0.0
  %1406 = vmatprep.subr.mxu0 0.0
  %1407 = vmatpush2.msra.mxu0 0.0
  %1408 = vmatprep.subr.mxu0 0.0
  %1409 = vmatpush2.msra.mxu0 0.0
  %1410 = vmatprep.subr.mxu0 0.0
  %1411 = vmatpush2.msra.mxu0 0.0
  %1412 = vmatprep.subr.mxu0 0.0
  %1413 = vmatpush2.msra.mxu0 0.0
  %1414 = vmatprep.subr.mxu0 0.0
  %1415 = vmatpush2.msra.mxu0 0.0
  %1416 = vmatprep.subr.mxu0 0.0
  %1417 = vmatpush2.msra.mxu0 0.0
  %1418 = vmatprep.subr.mxu0 0.0
  %1419 = vmatpush2.msra.mxu0 0.0
  %1420 = vmatprep.subr.mxu0 0.0
  %1421 = vmatpush2.msra.mxu0 0.0
  %1422 = vmatprep.subr.mxu0 0.0
  %1423 = vmatpush2.msra.mxu0 0.0
  %1424 = vmatprep.subr.mxu0 0.0
  %1425 = vmatpush2.msra.mxu0 0.0
  %1426 = vmatprep.mubr.f32.mxu0 0.0
  %1427 = vmatmul.mubr.f32.gmra.mxu0 %v1360
  %v1428 = vpop.f32.mrf.mxu0
  %v1429 = vadd.f32 0.0, %v1428
  %v1430 = vpop.f32.mrf.mxu0
  %1431 = vdwg.mxu0
  %v1432 = vadd.f32 %v473, %v1429
  %v1433 = vxor.u32 %v1432, 2147483648
  %v1434 = vmul.f32 %v1433, 1.442695
  %v1435 = vpow.pop %v1434
  %v1436 = vadd.f32 %v1435, 1.0
  %v1437 = vrcp.pop %v1436
  %v1438 = vmul.f32 1.0, %v1437
  %v1439 = vtanh.pop %v1432
  %v1441 = vrot.slane %v1345, 6
  %v1443 = vmul.f32 %v1438, %v1441
  %1445 = vrot.lane.b32.xlu0 %v1439, 64
  %v1446 = vpop.permute.xlu0 %1445
  %v1448 = vmul.f32 %v1438, %v1446
  %1450 = vrot.lane.b32.xlu0 %v1448, 32
  %v1451 = vpop.permute.xlu0 %1450
  %v1453 = vadd.f32 %v1443, %v1451
  %v1454 = vtanh.pop %v1453
  %1456 = vrot.lane.b32.xlu0 %v1454, 64
  %v1457 = vpop.permute.xlu0 %1456
  %v1459 = vmul.f32 %v1438, %v1457
  %1461 = vrot.lane.b32.xlu0 %v1459, 32
  %v1462 = vpop.permute.xlu0 %1461
  %1464 = vst.msk [vmem:[#allocation3 + $0x10] sm:$0x3] %vm584, %v1462
  %v1465 = vsel %vm481, %v1462, 0
  %1467 = vmatprep.subr.mxu0 0.0
  %1468 = vmatpush1.msra.mxu0 0.0
  %1469 = vmatprep.subr.mxu0 0.0
  %1470 = vmatpush1.msra.mxu0 0.0
  %1471 = vmatprep.subr.mxu0 0.0
  %1472 = vmatpush1.msra.mxu0 0.0
  %1473 = vmatprep.subr.mxu0 0.0
  %1474 = vmatpush1.msra.mxu0 0.0
  %1475 = vmatprep.subr.mxu0 0.0
  %1476 = vmatpush1.msra.mxu0 0.0
  %1477 = vmatprep.subr.mxu0 0.0
  %1478 = vmatpush1.msra.mxu0 0.0
  %1479 = vmatprep.subr.mxu0 0.0
  %1480 = vmatpush1.msra.mxu0 0.0
  %1481 = vmatprep.subr.mxu0 0.0
  %1482 = vmatpush1.msra.mxu0 0.0
  %1483 = vmatprep.subr.mxu0 0.0
  %1484 = vmatpush1.msra.mxu0 0.0
  %1485 = vmatprep.subr.mxu0 0.0
  %1486 = vmatpush1.msra.mxu0 0.0
  %1487 = vmatprep.subr.mxu0 0.0
  %1488 = vmatpush1.msra.mxu0 0.0
  %1489 = vmatprep.subr.mxu0 0.0
  %1490 = vmatpush1.msra.mxu0 0.0
  %1491 = vmatprep.subr.mxu0 0.0
  %1492 = vmatpush1.msra.mxu0 %v375
  %1493 = vmatprep.subr.mxu0 0.0
  %1494 = vmatpush1.msra.mxu0 %v374
  %1495 = vmatprep.subr.mxu0 0.0
  %1496 = vmatpush1.msra.mxu0 %v373
  %1497 = vmatprep.subr.mxu0 0.0
  %1498 = vmatpush1.msra.mxu0 %v372
  %1499 = vmatprep.subr.mxu0 0.0
  %1500 = vmatpush2.msra.mxu0 0.0
  %1501 = vmatprep.subr.mxu0 0.0
  %1502 = vmatpush2.msra.mxu0 0.0
  %1503 = vmatprep.subr.mxu0 0.0
  %1504 = vmatpush2.msra.mxu0 0.0
  %1505 = vmatprep.subr.mxu0 0.0
  %1506 = vmatpush2.msra.mxu0 0.0
  %1507 = vmatprep.subr.mxu0 0.0
  %1508 = vmatpush2.msra.mxu0 0.0
  %1509 = vmatprep.subr.mxu0 0.0
  %1510 = vmatpush2.msra.mxu0 0.0
  %1511 = vmatprep.subr.mxu0 0.0
  %1512 = vmatpush2.msra.mxu0 0.0
  %1513 = vmatprep.subr.mxu0 0.0
  %1514 = vmatpush2.msra.mxu0 0.0
  %1515 = vmatprep.subr.mxu0 0.0
  %1516 = vmatpush2.msra.mxu0 0.0
  %1517 = vmatprep.subr.mxu0 0.0
  %1518 = vmatpush2.msra.mxu0 0.0
  %1519 = vmatprep.subr.mxu0 0.0
  %1520 = vmatpush2.msra.mxu0 0.0
  %1521 = vmatprep.subr.mxu0 0.0
  %1522 = vmatpush2.msra.mxu0 0.0
  %1523 = vmatprep.subr.mxu0 0.0
  %1524 = vmatpush2.msra.mxu0 0.0
  %1525 = vmatprep.subr.mxu0 0.0
  %1526 = vmatpush2.msra.mxu0 0.0
  %1527 = vmatprep.subr.mxu0 0.0
  %1528 = vmatpush2.msra.mxu0 0.0
  %1529 = vmatprep.subr.mxu0 0.0
  %1530 = vmatpush2.msra.mxu0 0.0
  %1531 = vmatprep.mubr.f32.mxu0 0.0
  %1532 = vmatmul.mubr.f32.gmra.mxu0 %v1465
  %v1533 = vpop.f32.mrf.mxu0
  %v1534 = vadd.f32 0.0, %v1533
  %v1535 = vpop.f32.mrf.mxu0
  %1536 = vdwg.mxu0
  %v1538 = vrot.slane %v1534, 6
  %v1540 = vadd.f32 %v473, %v1538
  %v1541 = vxor.u32 %v1540, 2147483648
  %v1542 = vmul.f32 %v1541, 1.442695
  %v1543 = vpow.pop %v1542
  %v1544 = vadd.f32 %v1543, 1.0
  %v1545 = vrcp.pop %v1544
  %v1546 = vmul.f32 1.0, %v1545
  %v1547 = vtanh.pop %v1540
  %v1549 = vrot.slane %v1453, 6
  %v1551 = vmul.f32 %v1546, %v1549
  %1553 = vrot.lane.b32.xlu0 %v1547, 64
  %v1554 = vpop.permute.xlu0 %1553
  %v1556 = vmul.f32 %v1546, %v1554
  %1558 = vrot.lane.b32.xlu0 %v1556, 32
  %v1559 = vpop.permute.xlu0 %1558
  %v1561 = vadd.f32 %v1551, %v1559
  %v1562 = vtanh.pop %v1561
  %1564 = vrot.lane.b32.xlu0 %v1562, 64
  %v1565 = vpop.permute.xlu0 %1564
  %v1567 = vmul.f32 %v1546, %v1565
  %1569 = vrot.lane.b32.xlu0 %v1567, 32
  %v1570 = vpop.permute.xlu0 %1569
  %1572 = vst.msk [vmem:[#allocation3 + $0x10] sm:$0xc] %vm693, %v1570
  %v1573 = vrot.slane %v1567, 2
  %1574 = vrot.lane.b32.xlu0 %v1573, 32
  %v1575 = vpop.permute.xlu0 %1574
  %v1576 = vsel %vm481, %v1575, 0
  %1578 = vmatprep.subr.mxu0 0.0
  %1579 = vmatpush1.msra.mxu0 0.0
  %1580 = vmatprep.subr.mxu0 0.0
  %1581 = vmatpush1.msra.mxu0 0.0
  %1582 = vmatprep.subr.mxu0 0.0
  %1583 = vmatpush1.msra.mxu0 0.0
  %1584 = vmatprep.subr.mxu0 0.0
  %1585 = vmatpush1.msra.mxu0 0.0
  %1586 = vmatprep.subr.mxu0 0.0
  %1587 = vmatpush1.msra.mxu0 0.0
  %1588 = vmatprep.subr.mxu0 0.0
  %1589 = vmatpush1.msra.mxu0 0.0
  %1590 = vmatprep.subr.mxu0 0.0
  %1591 = vmatpush1.msra.mxu0 0.0
  %1592 = vmatprep.subr.mxu0 0.0
  %1593 = vmatpush1.msra.mxu0 0.0
  %1594 = vmatprep.subr.mxu0 0.0
  %1595 = vmatpush1.msra.mxu0 0.0
  %1596 = vmatprep.subr.mxu0 0.0
  %1597 = vmatpush1.msra.mxu0 0.0
  %1598 = vmatprep.subr.mxu0 0.0
  %1599 = vmatpush1.msra.mxu0 0.0
  %1600 = vmatprep.subr.mxu0 0.0
  %1601 = vmatpush1.msra.mxu0 0.0
  %1602 = vmatprep.subr.mxu0 0.0
  %1603 = vmatpush1.msra.mxu0 %v375
  %1604 = vmatprep.subr.mxu0 0.0
  %1605 = vmatpush1.msra.mxu0 %v374
  %1606 = vmatprep.subr.mxu0 0.0
  %1607 = vmatpush1.msra.mxu0 %v373
  %1608 = vmatprep.subr.mxu0 0.0
  %1609 = vmatpush1.msra.mxu0 %v372
  %1610 = vmatprep.subr.mxu0 0.0
  %1611 = vmatpush2.msra.mxu0 0.0
  %1612 = vmatprep.subr.mxu0 0.0
  %1613 = vmatpush2.msra.mxu0 0.0
  %1614 = vmatprep.subr.mxu0 0.0
  %1615 = vmatpush2.msra.mxu0 0.0
  %1616 = vmatprep.subr.mxu0 0.0
  %1617 = vmatpush2.msra.mxu0 0.0
  %1618 = vmatprep.subr.mxu0 0.0
  %1619 = vmatpush2.msra.mxu0 0.0
  %1620 = vmatprep.subr.mxu0 0.0
  %1621 = vmatpush2.msra.mxu0 0.0
  %1622 = vmatprep.subr.mxu0 0.0
  %1623 = vmatpush2.msra.mxu0 0.0
  %1624 = vmatprep.subr.mxu0 0.0
  %1625 = vmatpush2.msra.mxu0 0.0
  %1626 = vmatprep.subr.mxu0 0.0
  %1627 = vmatpush2.msra.mxu0 0.0
  %1628 = vmatprep.subr.mxu0 0.0
  %1629 = vmatpush2.msra.mxu0 0.0
  %1630 = vmatprep.subr.mxu0 0.0
  %1631 = vmatpush2.msra.mxu0 0.0
  %1632 = vmatprep.subr.mxu0 0.0
  %1633 = vmatpush2.msra.mxu0 0.0
  %1634 = vmatprep.subr.mxu0 0.0
  %1635 = vmatpush2.msra.mxu0 0.0
  %1636 = vmatprep.subr.mxu0 0.0
  %1637 = vmatpush2.msra.mxu0 0.0
  %1638 = vmatprep.subr.mxu0 0.0
  %1639 = vmatpush2.msra.mxu0 0.0
  %1640 = vmatprep.subr.mxu0 0.0
  %1641 = vmatpush2.msra.mxu0 0.0
  %1642 = vmatprep.mubr.f32.mxu0 0.0
  %1643 = vmatmul.mubr.f32.gmra.mxu0 %v1576
  %v1644 = vpop.f32.mrf.mxu0
  %v1645 = vadd.f32 0.0, %v1644
  %v1646 = vpop.f32.mrf.mxu0
  %1647 = vdwg.mxu0
  %v1649 = vrot.slane %v1645, 4
  %v1651 = vadd.f32 %v473, %v1649
  %v1652 = vxor.u32 %v1651, 2147483648
  %v1653 = vmul.f32 %v1652, 1.442695
  %v1654 = vpow.pop %v1653
  %v1655 = vadd.f32 %v1654, 1.0
  %v1656 = vrcp.pop %v1655
  %v1657 = vmul.f32 1.0, %v1656
  %v1658 = vtanh.pop %v1651
  %v1660 = vrot.slane %v1561, 6
  %v1662 = vmul.f32 %v1657, %v1660
  %1664 = vrot.lane.b32.xlu0 %v1658, 64
  %v1665 = vpop.permute.xlu0 %1664
  %v1667 = vmul.f32 %v1657, %v1665
  %1669 = vrot.lane.b32.xlu0 %v1667, 32
  %v1670 = vpop.permute.xlu0 %1669
  %v1672 = vadd.f32 %v1662, %v1670
  %v1673 = vtanh.pop %v1672
  %1675 = vrot.lane.b32.xlu0 %v1673, 64
  %v1676 = vpop.permute.xlu0 %1675
  %v1678 = vmul.f32 %v1657, %v1676
  %1680 = vrot.lane.b32.xlu0 %v1678, 32
  %v1681 = vpop.permute.xlu0 %1680
  %1683 = vst.msk [vmem:[#allocation3 + $0x10] sm:$0x30] %vm805, %v1681
  %v1684 = vrot.slane %v1678, 4
  %1685 = vrot.lane.b32.xlu0 %v1684, 32
  %v1686 = vpop.permute.xlu0 %1685
  %v1687 = vsel %vm481, %v1686, 0
  %1689 = vmatprep.subr.mxu0 0.0
  %1690 = vmatpush1.msra.mxu0 0.0
  %1691 = vmatprep.subr.mxu0 0.0
  %1692 = vmatpush1.msra.mxu0 0.0
  %1693 = vmatprep.subr.mxu0 0.0
  %1694 = vmatpush1.msra.mxu0 0.0
  %1695 = vmatprep.subr.mxu0 0.0
  %1696 = vmatpush1.msra.mxu0 0.0
  %1697 = vmatprep.subr.mxu0 0.0
  %1698 = vmatpush1.msra.mxu0 0.0
  %1699 = vmatprep.subr.mxu0 0.0
  %1700 = vmatpush1.msra.mxu0 0.0
  %1701 = vmatprep.subr.mxu0 0.0
  %1702 = vmatpush1.msra.mxu0 0.0
  %1703 = vmatprep.subr.mxu0 0.0
  %1704 = vmatpush1.msra.mxu0 0.0
  %1705 = vmatprep.subr.mxu0 0.0
  %1706 = vmatpush1.msra.mxu0 0.0
  %1707 = vmatprep.subr.mxu0 0.0
  %1708 = vmatpush1.msra.mxu0 0.0
  %1709 = vmatprep.subr.mxu0 0.0
  %1710 = vmatpush1.msra.mxu0 0.0
  %1711 = vmatprep.subr.mxu0 0.0
  %1712 = vmatpush1.msra.mxu0 0.0
  %1713 = vmatprep.subr.mxu0 0.0
  %1714 = vmatpush1.msra.mxu0 %v375
  %1715 = vmatprep.subr.mxu0 0.0
  %1716 = vmatpush1.msra.mxu0 %v374
  %1717 = vmatprep.subr.mxu0 0.0
  %1718 = vmatpush1.msra.mxu0 %v373
  %1719 = vmatprep.subr.mxu0 0.0
  %1720 = vmatpush1.msra.mxu0 %v372
  %1721 = vmatprep.subr.mxu0 0.0
  %1722 = vmatpush2.msra.mxu0 0.0
  %1723 = vmatprep.subr.mxu0 0.0
  %1724 = vmatpush2.msra.mxu0 0.0
  %1725 = vmatprep.subr.mxu0 0.0
  %1726 = vmatpush2.msra.mxu0 0.0
  %1727 = vmatprep.subr.mxu0 0.0
  %1728 = vmatpush2.msra.mxu0 0.0
  %1729 = vmatprep.subr.mxu0 0.0
  %1730 = vmatpush2.msra.mxu0 0.0
  %1731 = vmatprep.subr.mxu0 0.0
  %1732 = vmatpush2.msra.mxu0 0.0
  %1733 = vmatprep.subr.mxu0 0.0
  %1734 = vmatpush2.msra.mxu0 0.0
  %1735 = vmatprep.subr.mxu0 0.0
  %1736 = vmatpush2.msra.mxu0 0.0
  %1737 = vmatprep.subr.mxu0 0.0
  %1738 = vmatpush2.msra.mxu0 0.0
  %1739 = vmatprep.subr.mxu0 0.0
  %1740 = vmatpush2.msra.mxu0 0.0
  %1741 = vmatprep.subr.mxu0 0.0
  %1742 = vmatpush2.msra.mxu0 0.0
  %1743 = vmatprep.subr.mxu0 0.0
  %1744 = vmatpush2.msra.mxu0 0.0
  %1745 = vmatprep.subr.mxu0 0.0
  %1746 = vmatpush2.msra.mxu0 0.0
  %1747 = vmatprep.subr.mxu0 0.0
  %1748 = vmatpush2.msra.mxu0 0.0
  %1749 = vmatprep.subr.mxu0 0.0
  %1750 = vmatpush2.msra.mxu0 0.0
  %1751 = vmatprep.subr.mxu0 0.0
  %1752 = vmatpush2.msra.mxu0 0.0
  %1753 = vmatprep.mubr.f32.mxu0 0.0
  %1754 = vmatmul.mubr.f32.gmra.mxu0 %v1687
  %v1755 = vpop.f32.mrf.mxu0
  %v1756 = vadd.f32 0.0, %v1755
  %v1757 = vpop.f32.mrf.mxu0
  %1758 = vdwg.mxu0
  %v1760 = vrot.slane %v1756, 2
  %v1762 = vadd.f32 %v473, %v1760
  %v1763 = vxor.u32 %v1762, 2147483648
  %v1764 = vmul.f32 %v1763, 1.442695
  %v1765 = vpow.pop %v1764
  %v1766 = vadd.f32 %v1765, 1.0
  %v1767 = vrcp.pop %v1766
  %v1768 = vmul.f32 1.0, %v1767
  %v1769 = vtanh.pop %v1762
  %v1771 = vrot.slane %v1672, 6
  %v1773 = vmul.f32 %v1768, %v1771
  %1775 = vrot.lane.b32.xlu0 %v1769, 64
  %v1776 = vpop.permute.xlu0 %1775
  %v1778 = vmul.f32 %v1768, %v1776
  %1780 = vrot.lane.b32.xlu0 %v1778, 32
  %v1781 = vpop.permute.xlu0 %1780
  %v1783 = vadd.f32 %v1773, %v1781
  %v1784 = vtanh.pop %v1783
  %1786 = vrot.lane.b32.xlu0 %v1784, 64
  %v1787 = vpop.permute.xlu0 %1786
  %v1789 = vmul.f32 %v1768, %v1787
  %1791 = vrot.lane.b32.xlu0 %v1789, 32
  %v1792 = vpop.permute.xlu0 %1791
  %1794 = vst.msk [vmem:[#allocation3 + $0x10] sm:$0xc0] %vm917, %v1792
  %v1795 = vrot.slane %v1789, 6
  %1796 = vrot.lane.b32.xlu0 %v1795, 32
  %v1797 = vpop.permute.xlu0 %1796
  %v1798 = vsel %vm481, %v1797, 0
  %1800 = vmatprep.subr.mxu0 0.0
  %1801 = vmatpush1.msra.mxu0 0.0
  %1802 = vmatprep.subr.mxu0 0.0
  %1803 = vmatpush1.msra.mxu0 0.0
  %1804 = vmatprep.subr.mxu0 0.0
  %1805 = vmatpush1.msra.mxu0 0.0
  %1806 = vmatprep.subr.mxu0 0.0
  %1807 = vmatpush1.msra.mxu0 0.0
  %1808 = vmatprep.subr.mxu0 0.0
  %1809 = vmatpush1.msra.mxu0 0.0
  %1810 = vmatprep.subr.mxu0 0.0
  %1811 = vmatpush1.msra.mxu0 0.0
  %1812 = vmatprep.subr.mxu0 0.0
  %1813 = vmatpush1.msra.mxu0 0.0
  %1814 = vmatprep.subr.mxu0 0.0
  %1815 = vmatpush1.msra.mxu0 0.0
  %1816 = vmatprep.subr.mxu0 0.0
  %1817 = vmatpush1.msra.mxu0 0.0
  %1818 = vmatprep.subr.mxu0 0.0
  %1819 = vmatpush1.msra.mxu0 0.0
  %1820 = vmatprep.subr.mxu0 0.0
  %1821 = vmatpush1.msra.mxu0 0.0
  %1822 = vmatprep.subr.mxu0 0.0
  %1823 = vmatpush1.msra.mxu0 0.0
  %1824 = vmatprep.subr.mxu0 0.0
  %1825 = vmatpush1.msra.mxu0 %v375
  %1826 = vmatprep.subr.mxu0 0.0
  %1827 = vmatpush1.msra.mxu0 %v374
  %1828 = vmatprep.subr.mxu0 0.0
  %1829 = vmatpush1.msra.mxu0 %v373
  %1830 = vmatprep.subr.mxu0 0.0
  %1831 = vmatpush1.msra.mxu0 %v372
  %1832 = vmatprep.subr.mxu0 0.0
  %1833 = vmatpush2.msra.mxu0 0.0
  %1834 = vmatprep.subr.mxu0 0.0
  %1835 = vmatpush2.msra.mxu0 0.0
  %1836 = vmatprep.subr.mxu0 0.0
  %1837 = vmatpush2.msra.mxu0 0.0
  %1838 = vmatprep.subr.mxu0 0.0
  %1839 = vmatpush2.msra.mxu0 0.0
  %1840 = vmatprep.subr.mxu0 0.0
  %1841 = vmatpush2.msra.mxu0 0.0
  %1842 = vmatprep.subr.mxu0 0.0
  %1843 = vmatpush2.msra.mxu0 0.0
  %1844 = vmatprep.subr.mxu0 0.0
  %1845 = vmatpush2.msra.mxu0 0.0
  %1846 = vmatprep.subr.mxu0 0.0
  %1847 = vmatpush2.msra.mxu0 0.0
  %1848 = vmatprep.subr.mxu0 0.0
  %1849 = vmatpush2.msra.mxu0 0.0
  %1850 = vmatprep.subr.mxu0 0.0
  %1851 = vmatpush2.msra.mxu0 0.0
  %1852 = vmatprep.subr.mxu0 0.0
  %1853 = vmatpush2.msra.mxu0 0.0
  %1854 = vmatprep.subr.mxu0 0.0
  %1855 = vmatpush2.msra.mxu0 0.0
  %1856 = vmatprep.subr.mxu0 0.0
  %1857 = vmatpush2.msra.mxu0 0.0
  %1858 = vmatprep.subr.mxu0 0.0
  %1859 = vmatpush2.msra.mxu0 0.0
  %1860 = vmatprep.subr.mxu0 0.0
  %1861 = vmatpush2.msra.mxu0 0.0
  %1862 = vmatprep.subr.mxu0 0.0
  %1863 = vmatpush2.msra.mxu0 0.0
  %1864 = vmatprep.mubr.f32.mxu0 0.0
  %1865 = vmatmul.mubr.f32.gmra.mxu0 %v1798
  %v1866 = vpop.f32.mrf.mxu0
  %v1867 = vadd.f32 0.0, %v1866
  %v1868 = vpop.f32.mrf.mxu0
  %1869 = vdwg.mxu0
  %v1870 = vadd.f32 %v478, %v1867
  %v1871 = vxor.u32 %v1870, 2147483648
  %v1872 = vmul.f32 %v1871, 1.442695
  %v1873 = vpow.pop %v1872
  %v1874 = vadd.f32 %v1873, 1.0
  %v1875 = vrcp.pop %v1874
  %v1876 = vmul.f32 1.0, %v1875
  %v1877 = vtanh.pop %v1870
  %v1879 = vrot.slane %v1783, 6
  %v1881 = vmul.f32 %v1876, %v1879
  %1883 = vrot.lane.b32.xlu0 %v1877, 64
  %v1884 = vpop.permute.xlu0 %1883
  %v1886 = vmul.f32 %v1876, %v1884
  %1888 = vrot.lane.b32.xlu0 %v1886, 32
  %v1889 = vpop.permute.xlu0 %1888
  %v1891 = vadd.f32 %v1881, %v1889
  %v1892 = vtanh.pop %v1891
  %1894 = vrot.lane.b32.xlu0 %v1892, 64
  %v1895 = vpop.permute.xlu0 %1894
  %v1897 = vmul.f32 %v1876, %v1895
  %1899 = vrot.lane.b32.xlu0 %v1897, 32
  %v1900 = vpop.permute.xlu0 %1899
  %1902 = vst.msk [vmem:[#allocation3 + $0x18] sm:$0x3] %vm584, %v1900
  %v1903 = vsel %vm481, %v1900, 0
  %1905 = vmatprep.subr.mxu0 0.0
  %1906 = vmatpush1.msra.mxu0 0.0
  %1907 = vmatprep.subr.mxu0 0.0
  %1908 = vmatpush1.msra.mxu0 0.0
  %1909 = vmatprep.subr.mxu0 0.0
  %1910 = vmatpush1.msra.mxu0 0.0
  %1911 = vmatprep.subr.mxu0 0.0
  %1912 = vmatpush1.msra.mxu0 0.0
  %1913 = vmatprep.subr.mxu0 0.0
  %1914 = vmatpush1.msra.mxu0 0.0
  %1915 = vmatprep.subr.mxu0 0.0
  %1916 = vmatpush1.msra.mxu0 0.0
  %1917 = vmatprep.subr.mxu0 0.0
  %1918 = vmatpush1.msra.mxu0 0.0
  %1919 = vmatprep.subr.mxu0 0.0
  %1920 = vmatpush1.msra.mxu0 0.0
  %1921 = vmatprep.subr.mxu0 0.0
  %1922 = vmatpush1.msra.mxu0 0.0
  %1923 = vmatprep.subr.mxu0 0.0
  %1924 = vmatpush1.msra.mxu0 0.0
  %1925 = vmatprep.subr.mxu0 0.0
  %1926 = vmatpush1.msra.mxu0 0.0
  %1927 = vmatprep.subr.mxu0 0.0
  %1928 = vmatpush1.msra.mxu0 0.0
  %1929 = vmatprep.subr.mxu0 0.0
  %1930 = vmatpush1.msra.mxu0 %v375
  %1931 = vmatprep.subr.mxu0 0.0
  %1932 = vmatpush1.msra.mxu0 %v374
  %1933 = vmatprep.subr.mxu0 0.0
  %1934 = vmatpush1.msra.mxu0 %v373
  %1935 = vmatprep.subr.mxu0 0.0
  %1936 = vmatpush1.msra.mxu0 %v372
  %1937 = vmatprep.subr.mxu0 0.0
  %1938 = vmatpush2.msra.mxu0 0.0
  %1939 = vmatprep.subr.mxu0 0.0
  %1940 = vmatpush2.msra.mxu0 0.0
  %1941 = vmatprep.subr.mxu0 0.0
  %1942 = vmatpush2.msra.mxu0 0.0
  %1943 = vmatprep.subr.mxu0 0.0
  %1944 = vmatpush2.msra.mxu0 0.0
  %1945 = vmatprep.subr.mxu0 0.0
  %1946 = vmatpush2.msra.mxu0 0.0
  %1947 = vmatprep.subr.mxu0 0.0
  %1948 = vmatpush2.msra.mxu0 0.0
  %1949 = vmatprep.subr.mxu0 0.0
  %1950 = vmatpush2.msra.mxu0 0.0
  %1951 = vmatprep.subr.mxu0 0.0
  %1952 = vmatpush2.msra.mxu0 0.0
  %1953 = vmatprep.subr.mxu0 0.0
  %1954 = vmatpush2.msra.mxu0 0.0
  %1955 = vmatprep.subr.mxu0 0.0
  %1956 = vmatpush2.msra.mxu0 0.0
  %1957 = vmatprep.subr.mxu0 0.0
  %1958 = vmatpush2.msra.mxu0 0.0
  %1959 = vmatprep.subr.mxu0 0.0
  %1960 = vmatpush2.msra.mxu0 0.0
  %1961 = vmatprep.subr.mxu0 0.0
  %1962 = vmatpush2.msra.mxu0 0.0
  %1963 = vmatprep.subr.mxu0 0.0
  %1964 = vmatpush2.msra.mxu0 0.0
  %1965 = vmatprep.subr.mxu0 0.0
  %1966 = vmatpush2.msra.mxu0 0.0
  %1967 = vmatprep.subr.mxu0 0.0
  %1968 = vmatpush2.msra.mxu0 0.0
  %1969 = vmatprep.mubr.f32.mxu0 0.0
  %1970 = vmatmul.mubr.f32.gmra.mxu0 %v1903
  %v1971 = vpop.f32.mrf.mxu0
  %v1972 = vadd.f32 0.0, %v1971
  %v1973 = vpop.f32.mrf.mxu0
  %1974 = vdwg.mxu0
  %v1976 = vrot.slane %v1972, 6
  %v1978 = vadd.f32 %v478, %v1976
  %v1979 = vxor.u32 %v1978, 2147483648
  %v1980 = vmul.f32 %v1979, 1.442695
  %v1981 = vpow.pop %v1980
  %v1982 = vadd.f32 %v1981, 1.0
  %v1983 = vrcp.pop %v1982
  %v1984 = vmul.f32 1.0, %v1983
  %v1985 = vtanh.pop %v1978
  %v1987 = vrot.slane %v1891, 6
  %v1989 = vmul.f32 %v1984, %v1987
  %1991 = vrot.lane.b32.xlu0 %v1985, 64
  %v1992 = vpop.permute.xlu0 %1991
  %v1994 = vmul.f32 %v1984, %v1992
  %1996 = vrot.lane.b32.xlu0 %v1994, 32
  %v1997 = vpop.permute.xlu0 %1996
  %v1999 = vadd.f32 %v1989, %v1997
  %v2000 = vtanh.pop %v1999
  %2002 = vrot.lane.b32.xlu0 %v2000, 64
  %v2003 = vpop.permute.xlu0 %2002
  %v2005 = vmul.f32 %v1984, %v2003
  %2007 = vrot.lane.b32.xlu0 %v2005, 32
  %v2008 = vpop.permute.xlu0 %2007
  %2010 = vst.msk [vmem:[#allocation3 + $0x18] sm:$0xc] %vm693, %v2008
  %v2011 = vrot.slane %v2005, 2
  %2012 = vrot.lane.b32.xlu0 %v2011, 32
  %v2013 = vpop.permute.xlu0 %2012
  %v2014 = vsel %vm481, %v2013, 0
  %2016 = vmatprep.subr.mxu0 0.0
  %2017 = vmatpush1.msra.mxu0 0.0
  %2018 = vmatprep.subr.mxu0 0.0
  %2019 = vmatpush1.msra.mxu0 0.0
  %2020 = vmatprep.subr.mxu0 0.0
  %2021 = vmatpush1.msra.mxu0 0.0
  %2022 = vmatprep.subr.mxu0 0.0
  %2023 = vmatpush1.msra.mxu0 0.0
  %2024 = vmatprep.subr.mxu0 0.0
  %2025 = vmatpush1.msra.mxu0 0.0
  %2026 = vmatprep.subr.mxu0 0.0
  %2027 = vmatpush1.msra.mxu0 0.0
  %2028 = vmatprep.subr.mxu0 0.0
  %2029 = vmatpush1.msra.mxu0 0.0
  %2030 = vmatprep.subr.mxu0 0.0
  %2031 = vmatpush1.msra.mxu0 0.0
  %2032 = vmatprep.subr.mxu0 0.0
  %2033 = vmatpush1.msra.mxu0 0.0
  %2034 = vmatprep.subr.mxu0 0.0
  %2035 = vmatpush1.msra.mxu0 0.0
  %2036 = vmatprep.subr.mxu0 0.0
  %2037 = vmatpush1.msra.mxu0 0.0
  %2038 = vmatprep.subr.mxu0 0.0
  %2039 = vmatpush1.msra.mxu0 0.0
  %2040 = vmatprep.subr.mxu0 0.0
  %2041 = vmatpush1.msra.mxu0 %v375
  %2042 = vmatprep.subr.mxu0 0.0
  %2043 = vmatpush1.msra.mxu0 %v374
  %2044 = vmatprep.subr.mxu0 0.0
  %2045 = vmatpush1.msra.mxu0 %v373
  %2046 = vmatprep.subr.mxu0 0.0
  %2047 = vmatpush1.msra.mxu0 %v372
  %2048 = vmatprep.subr.mxu0 0.0
  %2049 = vmatpush2.msra.mxu0 0.0
  %2050 = vmatprep.subr.mxu0 0.0
  %2051 = vmatpush2.msra.mxu0 0.0
  %2052 = vmatprep.subr.mxu0 0.0
  %2053 = vmatpush2.msra.mxu0 0.0
  %2054 = vmatprep.subr.mxu0 0.0
  %2055 = vmatpush2.msra.mxu0 0.0
  %2056 = vmatprep.subr.mxu0 0.0
  %2057 = vmatpush2.msra.mxu0 0.0
  %2058 = vmatprep.subr.mxu0 0.0
  %2059 = vmatpush2.msra.mxu0 0.0
  %2060 = vmatprep.subr.mxu0 0.0
  %2061 = vmatpush2.msra.mxu0 0.0
  %2062 = vmatprep.subr.mxu0 0.0
  %2063 = vmatpush2.msra.mxu0 0.0
  %2064 = vmatprep.subr.mxu0 0.0
  %2065 = vmatpush2.msra.mxu0 0.0
  %2066 = vmatprep.subr.mxu0 0.0
  %2067 = vmatpush2.msra.mxu0 0.0
  %2068 = vmatprep.subr.mxu0 0.0
  %2069 = vmatpush2.msra.mxu0 0.0
  %2070 = vmatprep.subr.mxu0 0.0
  %2071 = vmatpush2.msra.mxu0 0.0
  %2072 = vmatprep.subr.mxu0 0.0
  %2073 = vmatpush2.msra.mxu0 0.0
  %2074 = vmatprep.subr.mxu0 0.0
  %2075 = vmatpush2.msra.mxu0 0.0
  %2076 = vmatprep.subr.mxu0 0.0
  %2077 = vmatpush2.msra.mxu0 0.0
  %2078 = vmatprep.subr.mxu0 0.0
  %2079 = vmatpush2.msra.mxu0 0.0
  %2080 = vmatprep.mubr.f32.mxu0 0.0
  %2081 = vmatmul.mubr.f32.gmra.mxu0 %v2014
  %v2082 = vpop.f32.mrf.mxu0
  %v2083 = vadd.f32 0.0, %v2082
  %v2084 = vpop.f32.mrf.mxu0
  %2085 = vdwg.mxu0
  %v2087 = vrot.slane %v2083, 4
  %v2089 = vadd.f32 %v478, %v2087
  %v2090 = vxor.u32 %v2089, 2147483648
  %v2091 = vmul.f32 %v2090, 1.442695
  %v2092 = vpow.pop %v2091
  %v2093 = vadd.f32 %v2092, 1.0
  %v2094 = vrcp.pop %v2093
  %v2095 = vmul.f32 1.0, %v2094
  %v2096 = vtanh.pop %v2089
  %v2098 = vrot.slane %v1999, 6
  %v2100 = vmul.f32 %v2095, %v2098
  %2102 = vrot.lane.b32.xlu0 %v2096, 64
  %v2103 = vpop.permute.xlu0 %2102
  %v2105 = vmul.f32 %v2095, %v2103
  %2107 = vrot.lane.b32.xlu0 %v2105, 32
  %v2108 = vpop.permute.xlu0 %2107
  %v2110 = vadd.f32 %v2100, %v2108
  %v2111 = vtanh.pop %v2110
  %2113 = vrot.lane.b32.xlu0 %v2111, 64
  %v2114 = vpop.permute.xlu0 %2113
  %v2116 = vmul.f32 %v2095, %v2114
  %2118 = vrot.lane.b32.xlu0 %v2116, 32
  %v2119 = vpop.permute.xlu0 %2118
  %2121 = vst.msk [vmem:[#allocation3 + $0x18] sm:$0x30] %vm805, %v2119
  %v2122 = vrot.slane %v2116, 4
  %2123 = vrot.lane.b32.xlu0 %v2122, 32
  %v2124 = vpop.permute.xlu0 %2123
  %v2125 = vsel %vm481, %v2124, 0
  %2127 = vmatprep.subr.mxu0 0.0
  %2128 = vmatpush1.msra.mxu0 0.0
  %2129 = vmatprep.subr.mxu0 0.0
  %2130 = vmatpush1.msra.mxu0 0.0
  %2131 = vmatprep.subr.mxu0 0.0
  %2132 = vmatpush1.msra.mxu0 0.0
  %2133 = vmatprep.subr.mxu0 0.0
  %2134 = vmatpush1.msra.mxu0 0.0
  %2135 = vmatprep.subr.mxu0 0.0
  %2136 = vmatpush1.msra.mxu0 0.0
  %2137 = vmatprep.subr.mxu0 0.0
  %2138 = vmatpush1.msra.mxu0 0.0
  %2139 = vmatprep.subr.mxu0 0.0
  %2140 = vmatpush1.msra.mxu0 0.0
  %2141 = vmatprep.subr.mxu0 0.0
  %2142 = vmatpush1.msra.mxu0 0.0
  %2143 = vmatprep.subr.mxu0 0.0
  %2144 = vmatpush1.msra.mxu0 0.0
  %2145 = vmatprep.subr.mxu0 0.0
  %2146 = vmatpush1.msra.mxu0 0.0
  %2147 = vmatprep.subr.mxu0 0.0
  %2148 = vmatpush1.msra.mxu0 0.0
  %2149 = vmatprep.subr.mxu0 0.0
  %2150 = vmatpush1.msra.mxu0 0.0
  %2151 = vmatprep.subr.mxu0 0.0
  %2152 = vmatpush1.msra.mxu0 %v375
  %2153 = vmatprep.subr.mxu0 0.0
  %2154 = vmatpush1.msra.mxu0 %v374
  %2155 = vmatprep.subr.mxu0 0.0
  %2156 = vmatpush1.msra.mxu0 %v373
  %2157 = vmatprep.subr.mxu0 0.0
  %2158 = vmatpush1.msra.mxu0 %v372
  %2159 = vmatprep.subr.mxu0 0.0
  %2160 = vmatpush2.msra.mxu0 0.0
  %2161 = vmatprep.subr.mxu0 0.0
  %2162 = vmatpush2.msra.mxu0 0.0
  %2163 = vmatprep.subr.mxu0 0.0
  %2164 = vmatpush2.msra.mxu0 0.0
  %2165 = vmatprep.subr.mxu0 0.0
  %2166 = vmatpush2.msra.mxu0 0.0
  %2167 = vmatprep.subr.mxu0 0.0
  %2168 = vmatpush2.msra.mxu0 0.0
  %2169 = vmatprep.subr.mxu0 0.0
  %2170 = vmatpush2.msra.mxu0 0.0
  %2171 = vmatprep.subr.mxu0 0.0
  %2172 = vmatpush2.msra.mxu0 0.0
  %2173 = vmatprep.subr.mxu0 0.0
  %2174 = vmatpush2.msra.mxu0 0.0
  %2175 = vmatprep.subr.mxu0 0.0
  %2176 = vmatpush2.msra.mxu0 0.0
  %2177 = vmatprep.subr.mxu0 0.0
  %2178 = vmatpush2.msra.mxu0 0.0
  %2179 = vmatprep.subr.mxu0 0.0
  %2180 = vmatpush2.msra.mxu0 0.0
  %2181 = vmatprep.subr.mxu0 0.0
  %2182 = vmatpush2.msra.mxu0 0.0
  %2183 = vmatprep.subr.mxu0 0.0
  %2184 = vmatpush2.msra.mxu0 0.0
  %2185 = vmatprep.subr.mxu0 0.0
  %2186 = vmatpush2.msra.mxu0 0.0
  %2187 = vmatprep.subr.mxu0 0.0
  %2188 = vmatpush2.msra.mxu0 0.0
  %2189 = vmatprep.subr.mxu0 0.0
  %2190 = vmatpush2.msra.mxu0 0.0
  %2191 = vmatprep.mubr.f32.mxu0 0.0
  %2192 = vmatmul.mubr.f32.gmra.mxu0 %v2125
  %v2193 = vpop.f32.mrf.mxu0
  %v2194 = vadd.f32 0.0, %v2193
  %v2195 = vpop.f32.mrf.mxu0
  %2196 = vdwg.mxu0
  %v2198 = vrot.slane %v2194, 2
  %v2200 = vadd.f32 %v478, %v2198
  %v2201 = vxor.u32 %v2200, 2147483648
  %v2202 = vmul.f32 %v2201, 1.442695
  %v2203 = vpow.pop %v2202
  %v2204 = vadd.f32 %v2203, 1.0
  %v2205 = vrcp.pop %v2204
  %v2206 = vmul.f32 1.0, %v2205
  %v2207 = vtanh.pop %v2200
  %v2209 = vrot.slane %v2110, 6
  %v2211 = vmul.f32 %v2206, %v2209
  %2213 = vrot.lane.b32.xlu0 %v2207, 64
  %v2214 = vpop.permute.xlu0 %2213
  %v2216 = vmul.f32 %v2206, %v2214
  %2218 = vrot.lane.b32.xlu0 %v2216, 32
  %v2219 = vpop.permute.xlu0 %2218
  %v2221 = vadd.f32 %v2211, %v2219
  %v2222 = vtanh.pop %v2221
  %2224 = vrot.lane.b32.xlu0 %v2222, 64
  %v2225 = vpop.permute.xlu0 %2224
  %v2227 = vmul.f32 %v2206, %v2225
  %2229 = vrot.lane.b32.xlu0 %v2227, 32
  %v2230 = vpop.permute.xlu0 %2229
  %2232 = vst.msk [vmem:[#allocation3 + $0x18] sm:$0xc0] %vm917, %v2230
  %v2233 = vld [vmem:[#allocation3] sm:$0xff]
  %v2234 = vld [vmem:[#allocation3 + $0x8] sm:$0xff]
  %v2235 = vld [vmem:[#allocation3 + $0x10] sm:$0xff]
  %v2236 = vld [vmem:[#allocation3 + $0x18] sm:$0xff]
  %v2237 = vld [vmem:[%s9] sm:$0xff]
  %v2238 = vld [vmem:[%s9 + $0x8] sm:$0xff]
  %v2239 = vld [vmem:[%s9 + $0x10] sm:$0xff]
  %v2240 = vld [vmem:[%s9 + $0x18] sm:$0xff]
  %v2241 = vld [vmem:[%s10] sm:$0xff]
  %v2242 = vld [vmem:[%s10 + $0x8] sm:$0xff]
  %v2243 = vld [vmem:[%s10 + $0x10] sm:$0xff]
  %v2244 = vld [vmem:[%s10 + $0x18] sm:$0xff]
  %v2245 = vld [vmem:[%s11] sm:$0x1]
  %v2247 = vlaneseq
  %v2248 = vshrl.u32 %v2247, 7
  %v2249 = vsub.s32 0, %v2248
  %v2250 = vrot.slane %v2245, %v2249
  %v2253 = vsel %vm481, %v2233, 0
  %v2256 = vsel %vm481, %v2234, 0
  %v2259 = vsel %vm481, %v2235, 0
  %v2262 = vsel %vm481, %v2236, 0
  %2264 = vmatprep.subr.mxu0 0.0
  %2265 = vmatpush1.msra.mxu0 0.0
  %2266 = vmatprep.subr.mxu0 0.0
  %2267 = vmatpush1.msra.mxu0 0.0
  %2268 = vmatprep.subr.mxu0 0.0
  %2269 = vmatpush1.msra.mxu0 0.0
  %2270 = vmatprep.subr.mxu0 0.0
  %2271 = vmatpush1.msra.mxu0 0.0
  %2272 = vmatprep.subr.mxu0 0.0
  %2273 = vmatpush1.msra.mxu0 0.0
  %2274 = vmatprep.subr.mxu0 0.0
  %2275 = vmatpush1.msra.mxu0 0.0
  %2276 = vmatprep.subr.mxu0 0.0
  %2277 = vmatpush1.msra.mxu0 0.0
  %2278 = vmatprep.subr.mxu0 0.0
  %2279 = vmatpush1.msra.mxu0 0.0
  %2280 = vmatprep.subr.mxu0 0.0
  %2281 = vmatpush1.msra.mxu0 0.0
  %2282 = vmatprep.subr.mxu0 0.0
  %2283 = vmatpush1.msra.mxu0 0.0
  %2284 = vmatprep.subr.mxu0 0.0
  %2285 = vmatpush1.msra.mxu0 0.0
  %2286 = vmatprep.subr.mxu0 0.0
  %2287 = vmatpush1.msra.mxu0 0.0
  %2288 = vmatprep.subr.mxu0 0.0
  %2289 = vmatpush1.msra.mxu0 %v2240
  %2290 = vmatprep.subr.mxu0 0.0
  %2291 = vmatpush1.msra.mxu0 %v2239
  %2292 = vmatprep.subr.mxu0 0.0
  %2293 = vmatpush1.msra.mxu0 %v2238
  %2294 = vmatprep.subr.mxu0 0.0
  %2295 = vmatpush1.msra.mxu0 %v2237
  %2296 = vmatprep.subr.mxu0 0.0
  %2297 = vmatpush2.msra.mxu0 0.0
  %2298 = vmatprep.subr.mxu0 0.0
  %2299 = vmatpush2.msra.mxu0 0.0
  %2300 = vmatprep.subr.mxu0 0.0
  %2301 = vmatpush2.msra.mxu0 0.0
  %2302 = vmatprep.subr.mxu0 0.0
  %2303 = vmatpush2.msra.mxu0 0.0
  %2304 = vmatprep.subr.mxu0 0.0
  %2305 = vmatpush2.msra.mxu0 0.0
  %2306 = vmatprep.subr.mxu0 0.0
  %2307 = vmatpush2.msra.mxu0 0.0
  %2308 = vmatprep.subr.mxu0 0.0
  %2309 = vmatpush2.msra.mxu0 0.0
  %2310 = vmatprep.subr.mxu0 0.0
  %2311 = vmatpush2.msra.mxu0 0.0
  %2312 = vmatprep.subr.mxu0 0.0
  %2313 = vmatpush2.msra.mxu0 0.0
  %2314 = vmatprep.subr.mxu0 0.0
  %2315 = vmatpush2.msra.mxu0 0.0
  %2316 = vmatprep.subr.mxu0 0.0
  %2317 = vmatpush2.msra.mxu0 0.0
  %2318 = vmatprep.subr.mxu0 0.0
  %2319 = vmatpush2.msra.mxu0 0.0
  %2320 = vmatprep.subr.mxu0 0.0
  %2321 = vmatpush2.msra.mxu0 0.0
  %2322 = vmatprep.subr.mxu0 0.0
  %2323 = vmatpush2.msra.mxu0 0.0
  %2324 = vmatprep.subr.mxu0 0.0
  %2325 = vmatpush2.msra.mxu0 0.0
  %2326 = vmatprep.subr.mxu0 0.0
  %2327 = vmatpush2.msra.mxu0 0.0
  %2328 = vmatprep.mubr.f32.mxu0 0.0
  %2329 = vmatmul.mubr.f32.gmra.mxu0 %v2253
  %v2330 = vpop.f32.mrf.mxu0
  %v2331 = vadd.f32 %v2250, %v2330
  %v2332 = vpop.f32.mrf.mxu0
  %2333 = vmatprep.mubr.f32.mxu0 0.0
  %2334 = vmatmul.mubr.f32.gmra.mxu0 %v2256
  %v2335 = vpop.f32.mrf.mxu0
  %v2336 = vadd.f32 %v2250, %v2335
  %v2337 = vpop.f32.mrf.mxu0
  %2338 = vmatprep.mubr.f32.mxu0 0.0
  %2339 = vmatmul.mubr.f32.gmra.mxu0 %v2259
  %v2340 = vpop.f32.mrf.mxu0
  %v2341 = vadd.f32 %v2250, %v2340
  %v2342 = vpop.f32.mrf.mxu0
  %2343 = vmatprep.mubr.f32.mxu0 0.0
  %2344 = vmatmul.mubr.f32.gmra.mxu0 %v2262
  %v2345 = vpop.f32.mrf.mxu0
  %v2346 = vadd.f32 %v2250, %v2345
  %v2347 = vpop.f32.mrf.mxu0
  %2348 = vdwg.mxu0
  %2349 = vmatprep.subr.mxu0 0.0
  %2350 = vmatpush1.msra.mxu0 0.0
  %2351 = vmatprep.subr.mxu0 0.0
  %2352 = vmatpush1.msra.mxu0 0.0
  %2353 = vmatprep.subr.mxu0 0.0
  %2354 = vmatpush1.msra.mxu0 0.0
  %2355 = vmatprep.subr.mxu0 0.0
  %2356 = vmatpush1.msra.mxu0 0.0
  %2357 = vmatprep.subr.mxu0 0.0
  %2358 = vmatpush1.msra.mxu0 0.0
  %2359 = vmatprep.subr.mxu0 0.0
  %2360 = vmatpush1.msra.mxu0 0.0
  %2361 = vmatprep.subr.mxu0 0.0
  %2362 = vmatpush1.msra.mxu0 0.0
  %2363 = vmatprep.subr.mxu0 0.0
  %2364 = vmatpush1.msra.mxu0 0.0
  %2365 = vmatprep.subr.mxu0 0.0
  %2366 = vmatpush1.msra.mxu0 0.0
  %2367 = vmatprep.subr.mxu0 0.0
  %2368 = vmatpush1.msra.mxu0 0.0
  %2369 = vmatprep.subr.mxu0 0.0
  %2370 = vmatpush1.msra.mxu0 0.0
  %2371 = vmatprep.subr.mxu0 0.0
  %2372 = vmatpush1.msra.mxu0 0.0
  %2373 = vmatprep.subr.mxu0 0.0
  %2374 = vmatpush1.msra.mxu0 %v2244
  %2375 = vmatprep.subr.mxu0 0.0
  %2376 = vmatpush1.msra.mxu0 %v2243
  %2377 = vmatprep.subr.mxu0 0.0
  %2378 = vmatpush1.msra.mxu0 %v2242
  %2379 = vmatprep.subr.mxu0 0.0
  %2380 = vmatpush1.msra.mxu0 %v2241
  %2381 = vmatprep.subr.mxu0 0.0
  %2382 = vmatpush2.msra.mxu0 0.0
  %2383 = vmatprep.subr.mxu0 0.0
  %2384 = vmatpush2.msra.mxu0 0.0
  %2385 = vmatprep.subr.mxu0 0.0
  %2386 = vmatpush2.msra.mxu0 0.0
  %2387 = vmatprep.subr.mxu0 0.0
  %2388 = vmatpush2.msra.mxu0 0.0
  %2389 = vmatprep.subr.mxu0 0.0
  %2390 = vmatpush2.msra.mxu0 0.0
  %2391 = vmatprep.subr.mxu0 0.0
  %2392 = vmatpush2.msra.mxu0 0.0
  %2393 = vmatprep.subr.mxu0 0.0
  %2394 = vmatpush2.msra.mxu0 0.0
  %2395 = vmatprep.subr.mxu0 0.0
  %2396 = vmatpush2.msra.mxu0 0.0
  %2397 = vmatprep.subr.mxu0 0.0
  %2398 = vmatpush2.msra.mxu0 0.0
  %2399 = vmatprep.subr.mxu0 0.0
  %2400 = vmatpush2.msra.mxu0 0.0
  %2401 = vmatprep.subr.mxu0 0.0
  %2402 = vmatpush2.msra.mxu0 0.0
  %2403 = vmatprep.subr.mxu0 0.0
  %2404 = vmatpush2.msra.mxu0 0.0
  %2405 = vmatprep.subr.mxu0 0.0
  %2406 = vmatpush2.msra.mxu0 0.0
  %2407 = vmatprep.subr.mxu0 0.0
  %2408 = vmatpush2.msra.mxu0 0.0
  %2409 = vmatprep.subr.mxu0 0.0
  %2410 = vmatpush2.msra.mxu0 0.0
  %2411 = vmatprep.subr.mxu0 0.0
  %2412 = vmatpush2.msra.mxu0 0.0
  %2413 = vmatprep.mubr.f32.mxu0 0.0
  %2414 = vmatmul.mubr.f32.gmra.mxu0 %v483
  %v2415 = vpop.f32.mrf.mxu0
  %v2416 = vadd.f32 0.0, %v2415
  %v2417 = vpop.f32.mrf.mxu0
  %2418 = vdwg.mxu0
  %v2419 = vadd.f32 %v2331, %v2416
  %v2420 = vxor.u32 %v2419, 2147483648
  %v2421 = vmul.f32 %v2420, 1.442695
  %v2422 = vpow.pop %v2421
  %v2423 = vadd.f32 %v2422, 1.0
  %v2424 = vrcp.pop %v2423
  %v2425 = vmul.f32 1.0, %v2424
  %v2426 = vtanh.pop %v2419
  %v2427 = vmul.f32 %v2425, 0.0
  %2429 = vrot.lane.b32.xlu0 %v2426, 64
  %v2430 = vpop.permute.xlu0 %2429
  %v2432 = vmul.f32 %v2425, %v2430
  %2434 = vrot.lane.b32.xlu0 %v2432, 32
  %v2435 = vpop.permute.xlu0 %2434
  %v2437 = vadd.f32 %v2427, %v2435
  %v2438 = vtanh.pop %v2437
  %2440 = vrot.lane.b32.xlu0 %v2438, 64
  %v2441 = vpop.permute.xlu0 %2440
  %v2443 = vmul.f32 %v2425, %v2441
  %2445 = vrot.lane.b32.xlu0 %v2443, 32
  %v2446 = vpop.permute.xlu0 %2445
  %2448 = vst.msk [vmem:[#allocation3] sm:$0x3] %vm584, %v2446
  %v2449 = vsel %vm481, %v2446, 0
  %2451 = vmatprep.subr.mxu0 0.0
  %2452 = vmatpush1.msra.mxu0 0.0
  %2453 = vmatprep.subr.mxu0 0.0
  %2454 = vmatpush1.msra.mxu0 0.0
  %2455 = vmatprep.subr.mxu0 0.0
  %2456 = vmatpush1.msra.mxu0 0.0
  %2457 = vmatprep.subr.mxu0 0.0
  %2458 = vmatpush1.msra.mxu0 0.0
  %2459 = vmatprep.subr.mxu0 0.0
  %2460 = vmatpush1.msra.mxu0 0.0
  %2461 = vmatprep.subr.mxu0 0.0
  %2462 = vmatpush1.msra.mxu0 0.0
  %2463 = vmatprep.subr.mxu0 0.0
  %2464 = vmatpush1.msra.mxu0 0.0
  %2465 = vmatprep.subr.mxu0 0.0
  %2466 = vmatpush1.msra.mxu0 0.0
  %2467 = vmatprep.subr.mxu0 0.0
  %2468 = vmatpush1.msra.mxu0 0.0
  %2469 = vmatprep.subr.mxu0 0.0
  %2470 = vmatpush1.msra.mxu0 0.0
  %2471 = vmatprep.subr.mxu0 0.0
  %2472 = vmatpush1.msra.mxu0 0.0
  %2473 = vmatprep.subr.mxu0 0.0
  %2474 = vmatpush1.msra.mxu0 0.0
  %2475 = vmatprep.subr.mxu0 0.0
  %2476 = vmatpush1.msra.mxu0 %v2244
  %2477 = vmatprep.subr.mxu0 0.0
  %2478 = vmatpush1.msra.mxu0 %v2243
  %2479 = vmatprep.subr.mxu0 0.0
  %2480 = vmatpush1.msra.mxu0 %v2242
  %2481 = vmatprep.subr.mxu0 0.0
  %2482 = vmatpush1.msra.mxu0 %v2241
  %2483 = vmatprep.subr.mxu0 0.0
  %2484 = vmatpush2.msra.mxu0 0.0
  %2485 = vmatprep.subr.mxu0 0.0
  %2486 = vmatpush2.msra.mxu0 0.0
  %2487 = vmatprep.subr.mxu0 0.0
  %2488 = vmatpush2.msra.mxu0 0.0
  %2489 = vmatprep.subr.mxu0 0.0
  %2490 = vmatpush2.msra.mxu0 0.0
  %2491 = vmatprep.subr.mxu0 0.0
  %2492 = vmatpush2.msra.mxu0 0.0
  %2493 = vmatprep.subr.mxu0 0.0
  %2494 = vmatpush2.msra.mxu0 0.0
  %2495 = vmatprep.subr.mxu0 0.0
  %2496 = vmatpush2.msra.mxu0 0.0
  %2497 = vmatprep.subr.mxu0 0.0
  %2498 = vmatpush2.msra.mxu0 0.0
  %2499 = vmatprep.subr.mxu0 0.0
  %2500 = vmatpush2.msra.mxu0 0.0
  %2501 = vmatprep.subr.mxu0 0.0
  %2502 = vmatpush2.msra.mxu0 0.0
  %2503 = vmatprep.subr.mxu0 0.0
  %2504 = vmatpush2.msra.mxu0 0.0
  %2505 = vmatprep.subr.mxu0 0.0
  %2506 = vmatpush2.msra.mxu0 0.0
  %2507 = vmatprep.subr.mxu0 0.0
  %2508 = vmatpush2.msra.mxu0 0.0
  %2509 = vmatprep.subr.mxu0 0.0
  %2510 = vmatpush2.msra.mxu0 0.0
  %2511 = vmatprep.subr.mxu0 0.0
  %2512 = vmatpush2.msra.mxu0 0.0
  %2513 = vmatprep.subr.mxu0 0.0
  %2514 = vmatpush2.msra.mxu0 0.0
  %2515 = vmatprep.mubr.f32.mxu0 0.0
  %2516 = vmatmul.mubr.f32.gmra.mxu0 %v2449
  %v2517 = vpop.f32.mrf.mxu0
  %v2518 = vadd.f32 0.0, %v2517
  %v2519 = vpop.f32.mrf.mxu0
  %2520 = vdwg.mxu0
  %v2522 = vrot.slane %v2518, 6
  %v2524 = vadd.f32 %v2331, %v2522
  %v2525 = vxor.u32 %v2524, 2147483648
  %v2526 = vmul.f32 %v2525, 1.442695
  %v2527 = vpow.pop %v2526
  %v2528 = vadd.f32 %v2527, 1.0
  %v2529 = vrcp.pop %v2528
  %v2530 = vmul.f32 1.0, %v2529
  %v2531 = vtanh.pop %v2524
  %v2533 = vrot.slane %v2437, 6
  %v2535 = vmul.f32 %v2530, %v2533
  %2537 = vrot.lane.b32.xlu0 %v2531, 64
  %v2538 = vpop.permute.xlu0 %2537
  %v2540 = vmul.f32 %v2530, %v2538
  %2542 = vrot.lane.b32.xlu0 %v2540, 32
  %v2543 = vpop.permute.xlu0 %2542
  %v2545 = vadd.f32 %v2535, %v2543
  %v2546 = vtanh.pop %v2545
  %2548 = vrot.lane.b32.xlu0 %v2546, 64
  %v2549 = vpop.permute.xlu0 %2548
  %v2551 = vmul.f32 %v2530, %v2549
  %2553 = vrot.lane.b32.xlu0 %v2551, 32
  %v2554 = vpop.permute.xlu0 %2553
  %2556 = vst.msk [vmem:[#allocation3] sm:$0xc] %vm693, %v2554
  %v2557 = vrot.slane %v2551, 2
  %2558 = vrot.lane.b32.xlu0 %v2557, 32
  %v2559 = vpop.permute.xlu0 %2558
  %v2560 = vsel %vm481, %v2559, 0
  %2562 = vmatprep.subr.mxu0 0.0
  %2563 = vmatpush1.msra.mxu0 0.0
  %2564 = vmatprep.subr.mxu0 0.0
  %2565 = vmatpush1.msra.mxu0 0.0
  %2566 = vmatprep.subr.mxu0 0.0
  %2567 = vmatpush1.msra.mxu0 0.0
  %2568 = vmatprep.subr.mxu0 0.0
  %2569 = vmatpush1.msra.mxu0 0.0
  %2570 = vmatprep.subr.mxu0 0.0
  %2571 = vmatpush1.msra.mxu0 0.0
  %2572 = vmatprep.subr.mxu0 0.0
  %2573 = vmatpush1.msra.mxu0 0.0
  %2574 = vmatprep.subr.mxu0 0.0
  %2575 = vmatpush1.msra.mxu0 0.0
  %2576 = vmatprep.subr.mxu0 0.0
  %2577 = vmatpush1.msra.mxu0 0.0
  %2578 = vmatprep.subr.mxu0 0.0
  %2579 = vmatpush1.msra.mxu0 0.0
  %2580 = vmatprep.subr.mxu0 0.0
  %2581 = vmatpush1.msra.mxu0 0.0
  %2582 = vmatprep.subr.mxu0 0.0
  %2583 = vmatpush1.msra.mxu0 0.0
  %2584 = vmatprep.subr.mxu0 0.0
  %2585 = vmatpush1.msra.mxu0 0.0
  %2586 = vmatprep.subr.mxu0 0.0
  %2587 = vmatpush1.msra.mxu0 %v2244
  %2588 = vmatprep.subr.mxu0 0.0
  %2589 = vmatpush1.msra.mxu0 %v2243
  %2590 = vmatprep.subr.mxu0 0.0
  %2591 = vmatpush1.msra.mxu0 %v2242
  %2592 = vmatprep.subr.mxu0 0.0
  %2593 = vmatpush1.msra.mxu0 %v2241
  %2594 = vmatprep.subr.mxu0 0.0
  %2595 = vmatpush2.msra.mxu0 0.0
  %2596 = vmatprep.subr.mxu0 0.0
  %2597 = vmatpush2.msra.mxu0 0.0
  %2598 = vmatprep.subr.mxu0 0.0
  %2599 = vmatpush2.msra.mxu0 0.0
  %2600 = vmatprep.subr.mxu0 0.0
  %2601 = vmatpush2.msra.mxu0 0.0
  %2602 = vmatprep.subr.mxu0 0.0
  %2603 = vmatpush2.msra.mxu0 0.0
  %2604 = vmatprep.subr.mxu0 0.0
  %2605 = vmatpush2.msra.mxu0 0.0
  %2606 = vmatprep.subr.mxu0 0.0
  %2607 = vmatpush2.msra.mxu0 0.0
  %2608 = vmatprep.subr.mxu0 0.0
  %2609 = vmatpush2.msra.mxu0 0.0
  %2610 = vmatprep.subr.mxu0 0.0
  %2611 = vmatpush2.msra.mxu0 0.0
  %2612 = vmatprep.subr.mxu0 0.0
  %2613 = vmatpush2.msra.mxu0 0.0
  %2614 = vmatprep.subr.mxu0 0.0
  %2615 = vmatpush2.msra.mxu0 0.0
  %2616 = vmatprep.subr.mxu0 0.0
  %2617 = vmatpush2.msra.mxu0 0.0
  %2618 = vmatprep.subr.mxu0 0.0
  %2619 = vmatpush2.msra.mxu0 0.0
  %2620 = vmatprep.subr.mxu0 0.0
  %2621 = vmatpush2.msra.mxu0 0.0
  %2622 = vmatprep.subr.mxu0 0.0
  %2623 = vmatpush2.msra.mxu0 0.0
  %2624 = vmatprep.subr.mxu0 0.0
  %2625 = vmatpush2.msra.mxu0 0.0
  %2626 = vmatprep.mubr.f32.mxu0 0.0
  %2627 = vmatmul.mubr.f32.gmra.mxu0 %v2560
  %v2628 = vpop.f32.mrf.mxu0
  %v2629 = vadd.f32 0.0, %v2628
  %v2630 = vpop.f32.mrf.mxu0
  %2631 = vdwg.mxu0
  %v2633 = vrot.slane %v2629, 4
  %v2635 = vadd.f32 %v2331, %v2633
  %v2636 = vxor.u32 %v2635, 2147483648
  %v2637 = vmul.f32 %v2636, 1.442695
  %v2638 = vpow.pop %v2637
  %v2639 = vadd.f32 %v2638, 1.0
  %v2640 = vrcp.pop %v2639
  %v2641 = vmul.f32 1.0, %v2640
  %v2642 = vtanh.pop %v2635
  %v2644 = vrot.slane %v2545, 6
  %v2646 = vmul.f32 %v2641, %v2644
  %2648 = vrot.lane.b32.xlu0 %v2642, 64
  %v2649 = vpop.permute.xlu0 %2648
  %v2651 = vmul.f32 %v2641, %v2649
  %2653 = vrot.lane.b32.xlu0 %v2651, 32
  %v2654 = vpop.permute.xlu0 %2653
  %v2656 = vadd.f32 %v2646, %v2654
  %v2657 = vtanh.pop %v2656
  %2659 = vrot.lane.b32.xlu0 %v2657, 64
  %v2660 = vpop.permute.xlu0 %2659
  %v2662 = vmul.f32 %v2641, %v2660
  %2664 = vrot.lane.b32.xlu0 %v2662, 32
  %v2665 = vpop.permute.xlu0 %2664
  %2667 = vst.msk [vmem:[#allocation3] sm:$0x30] %vm805, %v2665
  %v2668 = vrot.slane %v2662, 4
  %2669 = vrot.lane.b32.xlu0 %v2668, 32
  %v2670 = vpop.permute.xlu0 %2669
  %v2671 = vsel %vm481, %v2670, 0
  %2673 = vmatprep.subr.mxu0 0.0
  %2674 = vmatpush1.msra.mxu0 0.0
  %2675 = vmatprep.subr.mxu0 0.0
  %2676 = vmatpush1.msra.mxu0 0.0
  %2677 = vmatprep.subr.mxu0 0.0
  %2678 = vmatpush1.msra.mxu0 0.0
  %2679 = vmatprep.subr.mxu0 0.0
  %2680 = vmatpush1.msra.mxu0 0.0
  %2681 = vmatprep.subr.mxu0 0.0
  %2682 = vmatpush1.msra.mxu0 0.0
  %2683 = vmatprep.subr.mxu0 0.0
  %2684 = vmatpush1.msra.mxu0 0.0
  %2685 = vmatprep.subr.mxu0 0.0
  %2686 = vmatpush1.msra.mxu0 0.0
  %2687 = vmatprep.subr.mxu0 0.0
  %2688 = vmatpush1.msra.mxu0 0.0
  %2689 = vmatprep.subr.mxu0 0.0
  %2690 = vmatpush1.msra.mxu0 0.0
  %2691 = vmatprep.subr.mxu0 0.0
  %2692 = vmatpush1.msra.mxu0 0.0
  %2693 = vmatprep.subr.mxu0 0.0
  %2694 = vmatpush1.msra.mxu0 0.0
  %2695 = vmatprep.subr.mxu0 0.0
  %2696 = vmatpush1.msra.mxu0 0.0
  %2697 = vmatprep.subr.mxu0 0.0
  %2698 = vmatpush1.msra.mxu0 %v2244
  %2699 = vmatprep.subr.mxu0 0.0
  %2700 = vmatpush1.msra.mxu0 %v2243
  %2701 = vmatprep.subr.mxu0 0.0
  %2702 = vmatpush1.msra.mxu0 %v2242
  %2703 = vmatprep.subr.mxu0 0.0
  %2704 = vmatpush1.msra.mxu0 %v2241
  %2705 = vmatprep.subr.mxu0 0.0
  %2706 = vmatpush2.msra.mxu0 0.0
  %2707 = vmatprep.subr.mxu0 0.0
  %2708 = vmatpush2.msra.mxu0 0.0
  %2709 = vmatprep.subr.mxu0 0.0
  %2710 = vmatpush2.msra.mxu0 0.0
  %2711 = vmatprep.subr.mxu0 0.0
  %2712 = vmatpush2.msra.mxu0 0.0
  %2713 = vmatprep.subr.mxu0 0.0
  %2714 = vmatpush2.msra.mxu0 0.0
  %2715 = vmatprep.subr.mxu0 0.0
  %2716 = vmatpush2.msra.mxu0 0.0
  %2717 = vmatprep.subr.mxu0 0.0
  %2718 = vmatpush2.msra.mxu0 0.0
  %2719 = vmatprep.subr.mxu0 0.0
  %2720 = vmatpush2.msra.mxu0 0.0
  %2721 = vmatprep.subr.mxu0 0.0
  %2722 = vmatpush2.msra.mxu0 0.0
  %2723 = vmatprep.subr.mxu0 0.0
  %2724 = vmatpush2.msra.mxu0 0.0
  %2725 = vmatprep.subr.mxu0 0.0
  %2726 = vmatpush2.msra.mxu0 0.0
  %2727 = vmatprep.subr.mxu0 0.0
  %2728 = vmatpush2.msra.mxu0 0.0
  %2729 = vmatprep.subr.mxu0 0.0
  %2730 = vmatpush2.msra.mxu0 0.0
  %2731 = vmatprep.subr.mxu0 0.0
  %2732 = vmatpush2.msra.mxu0 0.0
  %2733 = vmatprep.subr.mxu0 0.0
  %2734 = vmatpush2.msra.mxu0 0.0
  %2735 = vmatprep.subr.mxu0 0.0
  %2736 = vmatpush2.msra.mxu0 0.0
  %2737 = vmatprep.mubr.f32.mxu0 0.0
  %2738 = vmatmul.mubr.f32.gmra.mxu0 %v2671
  %v2739 = vpop.f32.mrf.mxu0
  %v2740 = vadd.f32 0.0, %v2739
  %v2741 = vpop.f32.mrf.mxu0
  %2742 = vdwg.mxu0
  %v2744 = vrot.slane %v2740, 2
  %v2746 = vadd.f32 %v2331, %v2744
  %v2747 = vxor.u32 %v2746, 2147483648
  %v2748 = vmul.f32 %v2747, 1.442695
  %v2749 = vpow.pop %v2748
  %v2750 = vadd.f32 %v2749, 1.0
  %v2751 = vrcp.pop %v2750
  %v2752 = vmul.f32 1.0, %v2751
  %v2753 = vtanh.pop %v2746
  %v2755 = vrot.slane %v2656, 6
  %v2757 = vmul.f32 %v2752, %v2755
  %2759 = vrot.lane.b32.xlu0 %v2753, 64
  %v2760 = vpop.permute.xlu0 %2759
  %v2762 = vmul.f32 %v2752, %v2760
  %2764 = vrot.lane.b32.xlu0 %v2762, 32
  %v2765 = vpop.permute.xlu0 %2764
  %v2767 = vadd.f32 %v2757, %v2765
  %v2768 = vtanh.pop %v2767
  %2770 = vrot.lane.b32.xlu0 %v2768, 64
  %v2771 = vpop.permute.xlu0 %2770
  %v2773 = vmul.f32 %v2752, %v2771
  %2775 = vrot.lane.b32.xlu0 %v2773, 32
  %v2776 = vpop.permute.xlu0 %2775
  %2778 = vst.msk [vmem:[#allocation3] sm:$0xc0] %vm917, %v2776
  %v2779 = vrot.slane %v2773, 6
  %2780 = vrot.lane.b32.xlu0 %v2779, 32
  %v2781 = vpop.permute.xlu0 %2780
  %v2782 = vsel %vm481, %v2781, 0
  %2784 = vmatprep.subr.mxu0 0.0
  %2785 = vmatpush1.msra.mxu0 0.0
  %2786 = vmatprep.subr.mxu0 0.0
  %2787 = vmatpush1.msra.mxu0 0.0
  %2788 = vmatprep.subr.mxu0 0.0
  %2789 = vmatpush1.msra.mxu0 0.0
  %2790 = vmatprep.subr.mxu0 0.0
  %2791 = vmatpush1.msra.mxu0 0.0
  %2792 = vmatprep.subr.mxu0 0.0
  %2793 = vmatpush1.msra.mxu0 0.0
  %2794 = vmatprep.subr.mxu0 0.0
  %2795 = vmatpush1.msra.mxu0 0.0
  %2796 = vmatprep.subr.mxu0 0.0
  %2797 = vmatpush1.msra.mxu0 0.0
  %2798 = vmatprep.subr.mxu0 0.0
  %2799 = vmatpush1.msra.mxu0 0.0
  %2800 = vmatprep.subr.mxu0 0.0
  %2801 = vmatpush1.msra.mxu0 0.0
  %2802 = vmatprep.subr.mxu0 0.0
  %2803 = vmatpush1.msra.mxu0 0.0
  %2804 = vmatprep.subr.mxu0 0.0
  %2805 = vmatpush1.msra.mxu0 0.0
  %2806 = vmatprep.subr.mxu0 0.0
  %2807 = vmatpush1.msra.mxu0 0.0
  %2808 = vmatprep.subr.mxu0 0.0
  %2809 = vmatpush1.msra.mxu0 %v2244
  %2810 = vmatprep.subr.mxu0 0.0
  %2811 = vmatpush1.msra.mxu0 %v2243
  %2812 = vmatprep.subr.mxu0 0.0
  %2813 = vmatpush1.msra.mxu0 %v2242
  %2814 = vmatprep.subr.mxu0 0.0
  %2815 = vmatpush1.msra.mxu0 %v2241
  %2816 = vmatprep.subr.mxu0 0.0
  %2817 = vmatpush2.msra.mxu0 0.0
  %2818 = vmatprep.subr.mxu0 0.0
  %2819 = vmatpush2.msra.mxu0 0.0
  %2820 = vmatprep.subr.mxu0 0.0
  %2821 = vmatpush2.msra.mxu0 0.0
  %2822 = vmatprep.subr.mxu0 0.0
  %2823 = vmatpush2.msra.mxu0 0.0
  %2824 = vmatprep.subr.mxu0 0.0
  %2825 = vmatpush2.msra.mxu0 0.0
  %2826 = vmatprep.subr.mxu0 0.0
  %2827 = vmatpush2.msra.mxu0 0.0
  %2828 = vmatprep.subr.mxu0 0.0
  %2829 = vmatpush2.msra.mxu0 0.0
  %2830 = vmatprep.subr.mxu0 0.0
  %2831 = vmatpush2.msra.mxu0 0.0
  %2832 = vmatprep.subr.mxu0 0.0
  %2833 = vmatpush2.msra.mxu0 0.0
  %2834 = vmatprep.subr.mxu0 0.0
  %2835 = vmatpush2.msra.mxu0 0.0
  %2836 = vmatprep.subr.mxu0 0.0
  %2837 = vmatpush2.msra.mxu0 0.0
  %2838 = vmatprep.subr.mxu0 0.0
  %2839 = vmatpush2.msra.mxu0 0.0
  %2840 = vmatprep.subr.mxu0 0.0
  %2841 = vmatpush2.msra.mxu0 0.0
  %2842 = vmatprep.subr.mxu0 0.0
  %2843 = vmatpush2.msra.mxu0 0.0
  %2844 = vmatprep.subr.mxu0 0.0
  %2845 = vmatpush2.msra.mxu0 0.0
  %2846 = vmatprep.subr.mxu0 0.0
  %2847 = vmatpush2.msra.mxu0 0.0
  %2848 = vmatprep.mubr.f32.mxu0 0.0
  %2849 = vmatmul.mubr.f32.gmra.mxu0 %v2782
  %v2850 = vpop.f32.mrf.mxu0
  %v2851 = vadd.f32 0.0, %v2850
  %v2852 = vpop.f32.mrf.mxu0
  %2853 = vdwg.mxu0
  %v2854 = vadd.f32 %v2336, %v2851
  %v2855 = vxor.u32 %v2854, 2147483648
  %v2856 = vmul.f32 %v2855, 1.442695
  %v2857 = vpow.pop %v2856
  %v2858 = vadd.f32 %v2857, 1.0
  %v2859 = vrcp.pop %v2858
  %v2860 = vmul.f32 1.0, %v2859
  %v2861 = vtanh.pop %v2854
  %v2863 = vrot.slane %v2767, 6
  %v2865 = vmul.f32 %v2860, %v2863
  %2867 = vrot.lane.b32.xlu0 %v2861, 64
  %v2868 = vpop.permute.xlu0 %2867
  %v2870 = vmul.f32 %v2860, %v2868
  %2872 = vrot.lane.b32.xlu0 %v2870, 32
  %v2873 = vpop.permute.xlu0 %2872
  %v2875 = vadd.f32 %v2865, %v2873
  %v2876 = vtanh.pop %v2875
  %2878 = vrot.lane.b32.xlu0 %v2876, 64
  %v2879 = vpop.permute.xlu0 %2878
  %v2881 = vmul.f32 %v2860, %v2879
  %2883 = vrot.lane.b32.xlu0 %v2881, 32
  %v2884 = vpop.permute.xlu0 %2883
  %2886 = vst.msk [vmem:[#allocation3 + $0x8] sm:$0x3] %vm584, %v2884
  %v2887 = vsel %vm481, %v2884, 0
  %2889 = vmatprep.subr.mxu0 0.0
  %2890 = vmatpush1.msra.mxu0 0.0
  %2891 = vmatprep.subr.mxu0 0.0
  %2892 = vmatpush1.msra.mxu0 0.0
  %2893 = vmatprep.subr.mxu0 0.0
  %2894 = vmatpush1.msra.mxu0 0.0
  %2895 = vmatprep.subr.mxu0 0.0
  %2896 = vmatpush1.msra.mxu0 0.0
  %2897 = vmatprep.subr.mxu0 0.0
  %2898 = vmatpush1.msra.mxu0 0.0
  %2899 = vmatprep.subr.mxu0 0.0
  %2900 = vmatpush1.msra.mxu0 0.0
  %2901 = vmatprep.subr.mxu0 0.0
  %2902 = vmatpush1.msra.mxu0 0.0
  %2903 = vmatprep.subr.mxu0 0.0
  %2904 = vmatpush1.msra.mxu0 0.0
  %2905 = vmatprep.subr.mxu0 0.0
  %2906 = vmatpush1.msra.mxu0 0.0
  %2907 = vmatprep.subr.mxu0 0.0
  %2908 = vmatpush1.msra.mxu0 0.0
  %2909 = vmatprep.subr.mxu0 0.0
  %2910 = vmatpush1.msra.mxu0 0.0
  %2911 = vmatprep.subr.mxu0 0.0
  %2912 = vmatpush1.msra.mxu0 0.0
  %2913 = vmatprep.subr.mxu0 0.0
  %2914 = vmatpush1.msra.mxu0 %v2244
  %2915 = vmatprep.subr.mxu0 0.0
  %2916 = vmatpush1.msra.mxu0 %v2243
  %2917 = vmatprep.subr.mxu0 0.0
  %2918 = vmatpush1.msra.mxu0 %v2242
  %2919 = vmatprep.subr.mxu0 0.0
  %2920 = vmatpush1.msra.mxu0 %v2241
  %2921 = vmatprep.subr.mxu0 0.0
  %2922 = vmatpush2.msra.mxu0 0.0
  %2923 = vmatprep.subr.mxu0 0.0
  %2924 = vmatpush2.msra.mxu0 0.0
  %2925 = vmatprep.subr.mxu0 0.0
  %2926 = vmatpush2.msra.mxu0 0.0
  %2927 = vmatprep.subr.mxu0 0.0
  %2928 = vmatpush2.msra.mxu0 0.0
  %2929 = vmatprep.subr.mxu0 0.0
  %2930 = vmatpush2.msra.mxu0 0.0
  %2931 = vmatprep.subr.mxu0 0.0
  %2932 = vmatpush2.msra.mxu0 0.0
  %2933 = vmatprep.subr.mxu0 0.0
  %2934 = vmatpush2.msra.mxu0 0.0
  %2935 = vmatprep.subr.mxu0 0.0
  %2936 = vmatpush2.msra.mxu0 0.0
  %2937 = vmatprep.subr.mxu0 0.0
  %2938 = vmatpush2.msra.mxu0 0.0
  %2939 = vmatprep.subr.mxu0 0.0
  %2940 = vmatpush2.msra.mxu0 0.0
  %2941 = vmatprep.subr.mxu0 0.0
  %2942 = vmatpush2.msra.mxu0 0.0
  %2943 = vmatprep.subr.mxu0 0.0
  %2944 = vmatpush2.msra.mxu0 0.0
  %2945 = vmatprep.subr.mxu0 0.0
  %2946 = vmatpush2.msra.mxu0 0.0
  %2947 = vmatprep.subr.mxu0 0.0
  %2948 = vmatpush2.msra.mxu0 0.0
  %2949 = vmatprep.subr.mxu0 0.0
  %2950 = vmatpush2.msra.mxu0 0.0
  %2951 = vmatprep.subr.mxu0 0.0
  %2952 = vmatpush2.msra.mxu0 0.0
  %2953 = vmatprep.mubr.f32.mxu0 0.0
  %2954 = vmatmul.mubr.f32.gmra.mxu0 %v2887
  %v2955 = vpop.f32.mrf.mxu0
  %v2956 = vadd.f32 0.0, %v2955
  %v2957 = vpop.f32.mrf.mxu0
  %2958 = vdwg.mxu0
  %v2960 = vrot.slane %v2956, 6
  %v2962 = vadd.f32 %v2336, %v2960
  %v2963 = vxor.u32 %v2962, 2147483648
  %v2964 = vmul.f32 %v2963, 1.442695
  %v2965 = vpow.pop %v2964
  %v2966 = vadd.f32 %v2965, 1.0
  %v2967 = vrcp.pop %v2966
  %v2968 = vmul.f32 1.0, %v2967
  %v2969 = vtanh.pop %v2962
  %v2971 = vrot.slane %v2875, 6
  %v2973 = vmul.f32 %v2968, %v2971
  %2975 = vrot.lane.b32.xlu0 %v2969, 64
  %v2976 = vpop.permute.xlu0 %2975
  %v2978 = vmul.f32 %v2968, %v2976
  %2980 = vrot.lane.b32.xlu0 %v2978, 32
  %v2981 = vpop.permute.xlu0 %2980
  %v2983 = vadd.f32 %v2973, %v2981
  %v2984 = vtanh.pop %v2983
  %2986 = vrot.lane.b32.xlu0 %v2984, 64
  %v2987 = vpop.permute.xlu0 %2986
  %v2989 = vmul.f32 %v2968, %v2987
  %2991 = vrot.lane.b32.xlu0 %v2989, 32
  %v2992 = vpop.permute.xlu0 %2991
  %2994 = vst.msk [vmem:[#allocation3 + $0x8] sm:$0xc] %vm693, %v2992
  %v2995 = vrot.slane %v2989, 2
  %2996 = vrot.lane.b32.xlu0 %v2995, 32
  %v2997 = vpop.permute.xlu0 %2996
  %v2998 = vsel %vm481, %v2997, 0
  %3000 = vmatprep.subr.mxu0 0.0
  %3001 = vmatpush1.msra.mxu0 0.0
  %3002 = vmatprep.subr.mxu0 0.0
  %3003 = vmatpush1.msra.mxu0 0.0
  %3004 = vmatprep.subr.mxu0 0.0
  %3005 = vmatpush1.msra.mxu0 0.0
  %3006 = vmatprep.subr.mxu0 0.0
  %3007 = vmatpush1.msra.mxu0 0.0
  %3008 = vmatprep.subr.mxu0 0.0
  %3009 = vmatpush1.msra.mxu0 0.0
  %3010 = vmatprep.subr.mxu0 0.0
  %3011 = vmatpush1.msra.mxu0 0.0
  %3012 = vmatprep.subr.mxu0 0.0
  %3013 = vmatpush1.msra.mxu0 0.0
  %3014 = vmatprep.subr.mxu0 0.0
  %3015 = vmatpush1.msra.mxu0 0.0
  %3016 = vmatprep.subr.mxu0 0.0
  %3017 = vmatpush1.msra.mxu0 0.0
  %3018 = vmatprep.subr.mxu0 0.0
  %3019 = vmatpush1.msra.mxu0 0.0
  %3020 = vmatprep.subr.mxu0 0.0
  %3021 = vmatpush1.msra.mxu0 0.0
  %3022 = vmatprep.subr.mxu0 0.0
  %3023 = vmatpush1.msra.mxu0 0.0
  %3024 = vmatprep.subr.mxu0 0.0
  %3025 = vmatpush1.msra.mxu0 %v2244
  %3026 = vmatprep.subr.mxu0 0.0
  %3027 = vmatpush1.msra.mxu0 %v2243
  %3028 = vmatprep.subr.mxu0 0.0
  %3029 = vmatpush1.msra.mxu0 %v2242
  %3030 = vmatprep.subr.mxu0 0.0
  %3031 = vmatpush1.msra.mxu0 %v2241
  %3032 = vmatprep.subr.mxu0 0.0
  %3033 = vmatpush2.msra.mxu0 0.0
  %3034 = vmatprep.subr.mxu0 0.0
  %3035 = vmatpush2.msra.mxu0 0.0
  %3036 = vmatprep.subr.mxu0 0.0
  %3037 = vmatpush2.msra.mxu0 0.0
  %3038 = vmatprep.subr.mxu0 0.0
  %3039 = vmatpush2.msra.mxu0 0.0
  %3040 = vmatprep.subr.mxu0 0.0
  %3041 = vmatpush2.msra.mxu0 0.0
  %3042 = vmatprep.subr.mxu0 0.0
  %3043 = vmatpush2.msra.mxu0 0.0
  %3044 = vmatprep.subr.mxu0 0.0
  %3045 = vmatpush2.msra.mxu0 0.0
  %3046 = vmatprep.subr.mxu0 0.0
  %3047 = vmatpush2.msra.mxu0 0.0
  %3048 = vmatprep.subr.mxu0 0.0
  %3049 = vmatpush2.msra.mxu0 0.0
  %3050 = vmatprep.subr.mxu0 0.0
  %3051 = vmatpush2.msra.mxu0 0.0
  %3052 = vmatprep.subr.mxu0 0.0
  %3053 = vmatpush2.msra.mxu0 0.0
  %3054 = vmatprep.subr.mxu0 0.0
  %3055 = vmatpush2.msra.mxu0 0.0
  %3056 = vmatprep.subr.mxu0 0.0
  %3057 = vmatpush2.msra.mxu0 0.0
  %3058 = vmatprep.subr.mxu0 0.0
  %3059 = vmatpush2.msra.mxu0 0.0
  %3060 = vmatprep.subr.mxu0 0.0
  %3061 = vmatpush2.msra.mxu0 0.0
  %3062 = vmatprep.subr.mxu0 0.0
  %3063 = vmatpush2.msra.mxu0 0.0
  %3064 = vmatprep.mubr.f32.mxu0 0.0
  %3065 = vmatmul.mubr.f32.gmra.mxu0 %v2998
  %v3066 = vpop.f32.mrf.mxu0
  %v3067 = vadd.f32 0.0, %v3066
  %v3068 = vpop.f32.mrf.mxu0
  %3069 = vdwg.mxu0
  %v3071 = vrot.slane %v3067, 4
  %v3073 = vadd.f32 %v2336, %v3071
  %v3074 = vxor.u32 %v3073, 2147483648
  %v3075 = vmul.f32 %v3074, 1.442695
  %v3076 = vpow.pop %v3075
  %v3077 = vadd.f32 %v3076, 1.0
  %v3078 = vrcp.pop %v3077
  %v3079 = vmul.f32 1.0, %v3078
  %v3080 = vtanh.pop %v3073
  %v3082 = vrot.slane %v2983, 6
  %v3084 = vmul.f32 %v3079, %v3082
  %3086 = vrot.lane.b32.xlu0 %v3080, 64
  %v3087 = vpop.permute.xlu0 %3086
  %v3089 = vmul.f32 %v3079, %v3087
  %3091 = vrot.lane.b32.xlu0 %v3089, 32
  %v3092 = vpop.permute.xlu0 %3091
  %v3094 = vadd.f32 %v3084, %v3092
  %v3095 = vtanh.pop %v3094
  %3097 = vrot.lane.b32.xlu0 %v3095, 64
  %v3098 = vpop.permute.xlu0 %3097
  %v3100 = vmul.f32 %v3079, %v3098
  %3102 = vrot.lane.b32.xlu0 %v3100, 32
  %v3103 = vpop.permute.xlu0 %3102
  %3105 = vst.msk [vmem:[#allocation3 + $0x8] sm:$0x30] %vm805, %v3103
  %v3106 = vrot.slane %v3100, 4
  %3107 = vrot.lane.b32.xlu0 %v3106, 32
  %v3108 = vpop.permute.xlu0 %3107
  %v3109 = vsel %vm481, %v3108, 0
  %3111 = vmatprep.subr.mxu0 0.0
  %3112 = vmatpush1.msra.mxu0 0.0
  %3113 = vmatprep.subr.mxu0 0.0
  %3114 = vmatpush1.msra.mxu0 0.0
  %3115 = vmatprep.subr.mxu0 0.0
  %3116 = vmatpush1.msra.mxu0 0.0
  %3117 = vmatprep.subr.mxu0 0.0
  %3118 = vmatpush1.msra.mxu0 0.0
  %3119 = vmatprep.subr.mxu0 0.0
  %3120 = vmatpush1.msra.mxu0 0.0
  %3121 = vmatprep.subr.mxu0 0.0
  %3122 = vmatpush1.msra.mxu0 0.0
  %3123 = vmatprep.subr.mxu0 0.0
  %3124 = vmatpush1.msra.mxu0 0.0
  %3125 = vmatprep.subr.mxu0 0.0
  %3126 = vmatpush1.msra.mxu0 0.0
  %3127 = vmatprep.subr.mxu0 0.0
  %3128 = vmatpush1.msra.mxu0 0.0
  %3129 = vmatprep.subr.mxu0 0.0
  %3130 = vmatpush1.msra.mxu0 0.0
  %3131 = vmatprep.subr.mxu0 0.0
  %3132 = vmatpush1.msra.mxu0 0.0
  %3133 = vmatprep.subr.mxu0 0.0
  %3134 = vmatpush1.msra.mxu0 0.0
  %3135 = vmatprep.subr.mxu0 0.0
  %3136 = vmatpush1.msra.mxu0 %v2244
  %3137 = vmatprep.subr.mxu0 0.0
  %3138 = vmatpush1.msra.mxu0 %v2243
  %3139 = vmatprep.subr.mxu0 0.0
  %3140 = vmatpush1.msra.mxu0 %v2242
  %3141 = vmatprep.subr.mxu0 0.0
  %3142 = vmatpush1.msra.mxu0 %v2241
  %3143 = vmatprep.subr.mxu0 0.0
  %3144 = vmatpush2.msra.mxu0 0.0
  %3145 = vmatprep.subr.mxu0 0.0
  %3146 = vmatpush2.msra.mxu0 0.0
  %3147 = vmatprep.subr.mxu0 0.0
  %3148 = vmatpush2.msra.mxu0 0.0
  %3149 = vmatprep.subr.mxu0 0.0
  %3150 = vmatpush2.msra.mxu0 0.0
  %3151 = vmatprep.subr.mxu0 0.0
  %3152 = vmatpush2.msra.mxu0 0.0
  %3153 = vmatprep.subr.mxu0 0.0
  %3154 = vmatpush2.msra.mxu0 0.0
  %3155 = vmatprep.subr.mxu0 0.0
  %3156 = vmatpush2.msra.mxu0 0.0
  %3157 = vmatprep.subr.mxu0 0.0
  %3158 = vmatpush2.msra.mxu0 0.0
  %3159 = vmatprep.subr.mxu0 0.0
  %3160 = vmatpush2.msra.mxu0 0.0
  %3161 = vmatprep.subr.mxu0 0.0
  %3162 = vmatpush2.msra.mxu0 0.0
  %3163 = vmatprep.subr.mxu0 0.0
  %3164 = vmatpush2.msra.mxu0 0.0
  %3165 = vmatprep.subr.mxu0 0.0
  %3166 = vmatpush2.msra.mxu0 0.0
  %3167 = vmatprep.subr.mxu0 0.0
  %3168 = vmatpush2.msra.mxu0 0.0
  %3169 = vmatprep.subr.mxu0 0.0
  %3170 = vmatpush2.msra.mxu0 0.0
  %3171 = vmatprep.subr.mxu0 0.0
  %3172 = vmatpush2.msra.mxu0 0.0
  %3173 = vmatprep.subr.mxu0 0.0
  %3174 = vmatpush2.msra.mxu0 0.0
  %3175 = vmatprep.mubr.f32.mxu0 0.0
  %3176 = vmatmul.mubr.f32.gmra.mxu0 %v3109
  %v3177 = vpop.f32.mrf.mxu0
  %v3178 = vadd.f32 0.0, %v3177
  %v3179 = vpop.f32.mrf.mxu0
  %3180 = vdwg.mxu0
  %v3182 = vrot.slane %v3178, 2
  %v3184 = vadd.f32 %v2336, %v3182
  %v3185 = vxor.u32 %v3184, 2147483648
  %v3186 = vmul.f32 %v3185, 1.442695
  %v3187 = vpow.pop %v3186
  %v3188 = vadd.f32 %v3187, 1.0
  %v3189 = vrcp.pop %v3188
  %v3190 = vmul.f32 1.0, %v3189
  %v3191 = vtanh.pop %v3184
  %v3193 = vrot.slane %v3094, 6
  %v3195 = vmul.f32 %v3190, %v3193
  %3197 = vrot.lane.b32.xlu0 %v3191, 64
  %v3198 = vpop.permute.xlu0 %3197
  %v3200 = vmul.f32 %v3190, %v3198
  %3202 = vrot.lane.b32.xlu0 %v3200, 32
  %v3203 = vpop.permute.xlu0 %3202
  %v3205 = vadd.f32 %v3195, %v3203
  %v3206 = vtanh.pop %v3205
  %3208 = vrot.lane.b32.xlu0 %v3206, 64
  %v3209 = vpop.permute.xlu0 %3208
  %v3211 = vmul.f32 %v3190, %v3209
  %3213 = vrot.lane.b32.xlu0 %v3211, 32
  %v3214 = vpop.permute.xlu0 %3213
  %3216 = vst.msk [vmem:[#allocation3 + $0x8] sm:$0xc0] %vm917, %v3214
  %v3217 = vrot.slane %v3211, 6
  %3218 = vrot.lane.b32.xlu0 %v3217, 32
  %v3219 = vpop.permute.xlu0 %3218
  %v3220 = vsel %vm481, %v3219, 0
  %3222 = vmatprep.subr.mxu0 0.0
  %3223 = vmatpush1.msra.mxu0 0.0
  %3224 = vmatprep.subr.mxu0 0.0
  %3225 = vmatpush1.msra.mxu0 0.0
  %3226 = vmatprep.subr.mxu0 0.0
  %3227 = vmatpush1.msra.mxu0 0.0
  %3228 = vmatprep.subr.mxu0 0.0
  %3229 = vmatpush1.msra.mxu0 0.0
  %3230 = vmatprep.subr.mxu0 0.0
  %3231 = vmatpush1.msra.mxu0 0.0
  %3232 = vmatprep.subr.mxu0 0.0
  %3233 = vmatpush1.msra.mxu0 0.0
  %3234 = vmatprep.subr.mxu0 0.0
  %3235 = vmatpush1.msra.mxu0 0.0
  %3236 = vmatprep.subr.mxu0 0.0
  %3237 = vmatpush1.msra.mxu0 0.0
  %3238 = vmatprep.subr.mxu0 0.0
  %3239 = vmatpush1.msra.mxu0 0.0
  %3240 = vmatprep.subr.mxu0 0.0
  %3241 = vmatpush1.msra.mxu0 0.0
  %3242 = vmatprep.subr.mxu0 0.0
  %3243 = vmatpush1.msra.mxu0 0.0
  %3244 = vmatprep.subr.mxu0 0.0
  %3245 = vmatpush1.msra.mxu0 0.0
  %3246 = vmatprep.subr.mxu0 0.0
  %3247 = vmatpush1.msra.mxu0 %v2244
  %3248 = vmatprep.subr.mxu0 0.0
  %3249 = vmatpush1.msra.mxu0 %v2243
  %3250 = vmatprep.subr.mxu0 0.0
  %3251 = vmatpush1.msra.mxu0 %v2242
  %3252 = vmatprep.subr.mxu0 0.0
  %3253 = vmatpush1.msra.mxu0 %v2241
  %3254 = vmatprep.subr.mxu0 0.0
  %3255 = vmatpush2.msra.mxu0 0.0
  %3256 = vmatprep.subr.mxu0 0.0
  %3257 = vmatpush2.msra.mxu0 0.0
  %3258 = vmatprep.subr.mxu0 0.0
  %3259 = vmatpush2.msra.mxu0 0.0
  %3260 = vmatprep.subr.mxu0 0.0
  %3261 = vmatpush2.msra.mxu0 0.0
  %3262 = vmatprep.subr.mxu0 0.0
  %3263 = vmatpush2.msra.mxu0 0.0
  %3264 = vmatprep.subr.mxu0 0.0
  %3265 = vmatpush2.msra.mxu0 0.0
  %3266 = vmatprep.subr.mxu0 0.0
  %3267 = vmatpush2.msra.mxu0 0.0
  %3268 = vmatprep.subr.mxu0 0.0
  %3269 = vmatpush2.msra.mxu0 0.0
  %3270 = vmatprep.subr.mxu0 0.0
  %3271 = vmatpush2.msra.mxu0 0.0
  %3272 = vmatprep.subr.mxu0 0.0
  %3273 = vmatpush2.msra.mxu0 0.0
  %3274 = vmatprep.subr.mxu0 0.0
  %3275 = vmatpush2.msra.mxu0 0.0
  %3276 = vmatprep.subr.mxu0 0.0
  %3277 = vmatpush2.msra.mxu0 0.0
  %3278 = vmatprep.subr.mxu0 0.0
  %3279 = vmatpush2.msra.mxu0 0.0
  %3280 = vmatprep.subr.mxu0 0.0
  %3281 = vmatpush2.msra.mxu0 0.0
  %3282 = vmatprep.subr.mxu0 0.0
  %3283 = vmatpush2.msra.mxu0 0.0
  %3284 = vmatprep.subr.mxu0 0.0
  %3285 = vmatpush2.msra.mxu0 0.0
  %3286 = vmatprep.mubr.f32.mxu0 0.0
  %3287 = vmatmul.mubr.f32.gmra.mxu0 %v3220
  %v3288 = vpop.f32.mrf.mxu0
  %v3289 = vadd.f32 0.0, %v3288
  %v3290 = vpop.f32.mrf.mxu0
  %3291 = vdwg.mxu0
  %v3292 = vadd.f32 %v2341, %v3289
  %v3293 = vxor.u32 %v3292, 2147483648
  %v3294 = vmul.f32 %v3293, 1.442695
  %v3295 = vpow.pop %v3294
  %v3296 = vadd.f32 %v3295, 1.0
  %v3297 = vrcp.pop %v3296
  %v3298 = vmul.f32 1.0, %v3297
  %v3299 = vtanh.pop %v3292
  %v3301 = vrot.slane %v3205, 6
  %v3303 = vmul.f32 %v3298, %v3301
  %3305 = vrot.lane.b32.xlu0 %v3299, 64
  %v3306 = vpop.permute.xlu0 %3305
  %v3308 = vmul.f32 %v3298, %v3306
  %3310 = vrot.lane.b32.xlu0 %v3308, 32
  %v3311 = vpop.permute.xlu0 %3310
  %v3313 = vadd.f32 %v3303, %v3311
  %v3314 = vtanh.pop %v3313
  %3316 = vrot.lane.b32.xlu0 %v3314, 64
  %v3317 = vpop.permute.xlu0 %3316
  %v3319 = vmul.f32 %v3298, %v3317
  %3321 = vrot.lane.b32.xlu0 %v3319, 32
  %v3322 = vpop.permute.xlu0 %3321
  %3324 = vst.msk [vmem:[#allocation3 + $0x10] sm:$0x3] %vm584, %v3322
  %v3325 = vsel %vm481, %v3322, 0
  %3327 = vmatprep.subr.mxu0 0.0
  %3328 = vmatpush1.msra.mxu0 0.0
  %3329 = vmatprep.subr.mxu0 0.0
  %3330 = vmatpush1.msra.mxu0 0.0
  %3331 = vmatprep.subr.mxu0 0.0
  %3332 = vmatpush1.msra.mxu0 0.0
  %3333 = vmatprep.subr.mxu0 0.0
  %3334 = vmatpush1.msra.mxu0 0.0
  %3335 = vmatprep.subr.mxu0 0.0
  %3336 = vmatpush1.msra.mxu0 0.0
  %3337 = vmatprep.subr.mxu0 0.0
  %3338 = vmatpush1.msra.mxu0 0.0
  %3339 = vmatprep.subr.mxu0 0.0
  %3340 = vmatpush1.msra.mxu0 0.0
  %3341 = vmatprep.subr.mxu0 0.0
  %3342 = vmatpush1.msra.mxu0 0.0
  %3343 = vmatprep.subr.mxu0 0.0
  %3344 = vmatpush1.msra.mxu0 0.0
  %3345 = vmatprep.subr.mxu0 0.0
  %3346 = vmatpush1.msra.mxu0 0.0
  %3347 = vmatprep.subr.mxu0 0.0
  %3348 = vmatpush1.msra.mxu0 0.0
  %3349 = vmatprep.subr.mxu0 0.0
  %3350 = vmatpush1.msra.mxu0 0.0
  %3351 = vmatprep.subr.mxu0 0.0
  %3352 = vmatpush1.msra.mxu0 %v2244
  %3353 = vmatprep.subr.mxu0 0.0
  %3354 = vmatpush1.msra.mxu0 %v2243
  %3355 = vmatprep.subr.mxu0 0.0
  %3356 = vmatpush1.msra.mxu0 %v2242
  %3357 = vmatprep.subr.mxu0 0.0
  %3358 = vmatpush1.msra.mxu0 %v2241
  %3359 = vmatprep.subr.mxu0 0.0
  %3360 = vmatpush2.msra.mxu0 0.0
  %3361 = vmatprep.subr.mxu0 0.0
  %3362 = vmatpush2.msra.mxu0 0.0
  %3363 = vmatprep.subr.mxu0 0.0
  %3364 = vmatpush2.msra.mxu0 0.0
  %3365 = vmatprep.subr.mxu0 0.0
  %3366 = vmatpush2.msra.mxu0 0.0
  %3367 = vmatprep.subr.mxu0 0.0
  %3368 = vmatpush2.msra.mxu0 0.0
  %3369 = vmatprep.subr.mxu0 0.0
  %3370 = vmatpush2.msra.mxu0 0.0
  %3371 = vmatprep.subr.mxu0 0.0
  %3372 = vmatpush2.msra.mxu0 0.0
  %3373 = vmatprep.subr.mxu0 0.0
  %3374 = vmatpush2.msra.mxu0 0.0
  %3375 = vmatprep.subr.mxu0 0.0
  %3376 = vmatpush2.msra.mxu0 0.0
  %3377 = vmatprep.subr.mxu0 0.0
  %3378 = vmatpush2.msra.mxu0 0.0
  %3379 = vmatprep.subr.mxu0 0.0
  %3380 = vmatpush2.msra.mxu0 0.0
  %3381 = vmatprep.subr.mxu0 0.0
  %3382 = vmatpush2.msra.mxu0 0.0
  %3383 = vmatprep.subr.mxu0 0.0
  %3384 = vmatpush2.msra.mxu0 0.0
  %3385 = vmatprep.subr.mxu0 0.0
  %3386 = vmatpush2.msra.mxu0 0.0
  %3387 = vmatprep.subr.mxu0 0.0
  %3388 = vmatpush2.msra.mxu0 0.0
  %3389 = vmatprep.subr.mxu0 0.0
  %3390 = vmatpush2.msra.mxu0 0.0
  %3391 = vmatprep.mubr.f32.mxu0 0.0
  %3392 = vmatmul.mubr.f32.gmra.mxu0 %v3325
  %v3393 = vpop.f32.mrf.mxu0
  %v3394 = vadd.f32 0.0, %v3393
  %v3395 = vpop.f32.mrf.mxu0
  %3396 = vdwg.mxu0
  %v3398 = vrot.slane %v3394, 6
  %v3400 = vadd.f32 %v2341, %v3398
  %v3401 = vxor.u32 %v3400, 2147483648
  %v3402 = vmul.f32 %v3401, 1.442695
  %v3403 = vpow.pop %v3402
  %v3404 = vadd.f32 %v3403, 1.0
  %v3405 = vrcp.pop %v3404
  %v3406 = vmul.f32 1.0, %v3405
  %v3407 = vtanh.pop %v3400
  %v3409 = vrot.slane %v3313, 6
  %v3411 = vmul.f32 %v3406, %v3409
  %3413 = vrot.lane.b32.xlu0 %v3407, 64
  %v3414 = vpop.permute.xlu0 %3413
  %v3416 = vmul.f32 %v3406, %v3414
  %3418 = vrot.lane.b32.xlu0 %v3416, 32
  %v3419 = vpop.permute.xlu0 %3418
  %v3421 = vadd.f32 %v3411, %v3419
  %v3422 = vtanh.pop %v3421
  %3424 = vrot.lane.b32.xlu0 %v3422, 64
  %v3425 = vpop.permute.xlu0 %3424
  %v3427 = vmul.f32 %v3406, %v3425
  %3429 = vrot.lane.b32.xlu0 %v3427, 32
  %v3430 = vpop.permute.xlu0 %3429
  %3432 = vst.msk [vmem:[#allocation3 + $0x10] sm:$0xc] %vm693, %v3430
  %v3433 = vrot.slane %v3427, 2
  %3434 = vrot.lane.b32.xlu0 %v3433, 32
  %v3435 = vpop.permute.xlu0 %3434
  %v3436 = vsel %vm481, %v3435, 0
  %3438 = vmatprep.subr.mxu0 0.0
  %3439 = vmatpush1.msra.mxu0 0.0
  %3440 = vmatprep.subr.mxu0 0.0
  %3441 = vmatpush1.msra.mxu0 0.0
  %3442 = vmatprep.subr.mxu0 0.0
  %3443 = vmatpush1.msra.mxu0 0.0
  %3444 = vmatprep.subr.mxu0 0.0
  %3445 = vmatpush1.msra.mxu0 0.0
  %3446 = vmatprep.subr.mxu0 0.0
  %3447 = vmatpush1.msra.mxu0 0.0
  %3448 = vmatprep.subr.mxu0 0.0
  %3449 = vmatpush1.msra.mxu0 0.0
  %3450 = vmatprep.subr.mxu0 0.0
  %3451 = vmatpush1.msra.mxu0 0.0
  %3452 = vmatprep.subr.mxu0 0.0
  %3453 = vmatpush1.msra.mxu0 0.0
  %3454 = vmatprep.subr.mxu0 0.0
  %3455 = vmatpush1.msra.mxu0 0.0
  %3456 = vmatprep.subr.mxu0 0.0
  %3457 = vmatpush1.msra.mxu0 0.0
  %3458 = vmatprep.subr.mxu0 0.0
  %3459 = vmatpush1.msra.mxu0 0.0
  %3460 = vmatprep.subr.mxu0 0.0
  %3461 = vmatpush1.msra.mxu0 0.0
  %3462 = vmatprep.subr.mxu0 0.0
  %3463 = vmatpush1.msra.mxu0 %v2244
  %3464 = vmatprep.subr.mxu0 0.0
  %3465 = vmatpush1.msra.mxu0 %v2243
  %3466 = vmatprep.subr.mxu0 0.0
  %3467 = vmatpush1.msra.mxu0 %v2242
  %3468 = vmatprep.subr.mxu0 0.0
  %3469 = vmatpush1.msra.mxu0 %v2241
  %3470 = vmatprep.subr.mxu0 0.0
  %3471 = vmatpush2.msra.mxu0 0.0
  %3472 = vmatprep.subr.mxu0 0.0
  %3473 = vmatpush2.msra.mxu0 0.0
  %3474 = vmatprep.subr.mxu0 0.0
  %3475 = vmatpush2.msra.mxu0 0.0
  %3476 = vmatprep.subr.mxu0 0.0
  %3477 = vmatpush2.msra.mxu0 0.0
  %3478 = vmatprep.subr.mxu0 0.0
  %3479 = vmatpush2.msra.mxu0 0.0
  %3480 = vmatprep.subr.mxu0 0.0
  %3481 = vmatpush2.msra.mxu0 0.0
  %3482 = vmatprep.subr.mxu0 0.0
  %3483 = vmatpush2.msra.mxu0 0.0
  %3484 = vmatprep.subr.mxu0 0.0
  %3485 = vmatpush2.msra.mxu0 0.0
  %3486 = vmatprep.subr.mxu0 0.0
  %3487 = vmatpush2.msra.mxu0 0.0
  %3488 = vmatprep.subr.mxu0 0.0
  %3489 = vmatpush2.msra.mxu0 0.0
  %3490 = vmatprep.subr.mxu0 0.0
  %3491 = vmatpush2.msra.mxu0 0.0
  %3492 = vmatprep.subr.mxu0 0.0
  %3493 = vmatpush2.msra.mxu0 0.0
  %3494 = vmatprep.subr.mxu0 0.0
  %3495 = vmatpush2.msra.mxu0 0.0
  %3496 = vmatprep.subr.mxu0 0.0
  %3497 = vmatpush2.msra.mxu0 0.0
  %3498 = vmatprep.subr.mxu0 0.0
  %3499 = vmatpush2.msra.mxu0 0.0
  %3500 = vmatprep.subr.mxu0 0.0
  %3501 = vmatpush2.msra.mxu0 0.0
  %3502 = vmatprep.mubr.f32.mxu0 0.0
  %3503 = vmatmul.mubr.f32.gmra.mxu0 %v3436
  %v3504 = vpop.f32.mrf.mxu0
  %v3505 = vadd.f32 0.0, %v3504
  %v3506 = vpop.f32.mrf.mxu0
  %3507 = vdwg.mxu0
  %v3509 = vrot.slane %v3505, 4
  %v3511 = vadd.f32 %v2341, %v3509
  %v3512 = vxor.u32 %v3511, 2147483648
  %v3513 = vmul.f32 %v3512, 1.442695
  %v3514 = vpow.pop %v3513
  %v3515 = vadd.f32 %v3514, 1.0
  %v3516 = vrcp.pop %v3515
  %v3517 = vmul.f32 1.0, %v3516
  %v3518 = vtanh.pop %v3511
  %v3520 = vrot.slane %v3421, 6
  %v3522 = vmul.f32 %v3517, %v3520
  %3524 = vrot.lane.b32.xlu0 %v3518, 64
  %v3525 = vpop.permute.xlu0 %3524
  %v3527 = vmul.f32 %v3517, %v3525
  %3529 = vrot.lane.b32.xlu0 %v3527, 32
  %v3530 = vpop.permute.xlu0 %3529
  %v3532 = vadd.f32 %v3522, %v3530
  %v3533 = vtanh.pop %v3532
  %3535 = vrot.lane.b32.xlu0 %v3533, 64
  %v3536 = vpop.permute.xlu0 %3535
  %v3538 = vmul.f32 %v3517, %v3536
  %3540 = vrot.lane.b32.xlu0 %v3538, 32
  %v3541 = vpop.permute.xlu0 %3540
  %3543 = vst.msk [vmem:[#allocation3 + $0x10] sm:$0x30] %vm805, %v3541
  %v3544 = vrot.slane %v3538, 4
  %3545 = vrot.lane.b32.xlu0 %v3544, 32
  %v3546 = vpop.permute.xlu0 %3545
  %v3547 = vsel %vm481, %v3546, 0
  %3549 = vmatprep.subr.mxu0 0.0
  %3550 = vmatpush1.msra.mxu0 0.0
  %3551 = vmatprep.subr.mxu0 0.0
  %3552 = vmatpush1.msra.mxu0 0.0
  %3553 = vmatprep.subr.mxu0 0.0
  %3554 = vmatpush1.msra.mxu0 0.0
  %3555 = vmatprep.subr.mxu0 0.0
  %3556 = vmatpush1.msra.mxu0 0.0
  %3557 = vmatprep.subr.mxu0 0.0
  %3558 = vmatpush1.msra.mxu0 0.0
  %3559 = vmatprep.subr.mxu0 0.0
  %3560 = vmatpush1.msra.mxu0 0.0
  %3561 = vmatprep.subr.mxu0 0.0
  %3562 = vmatpush1.msra.mxu0 0.0
  %3563 = vmatprep.subr.mxu0 0.0
  %3564 = vmatpush1.msra.mxu0 0.0
  %3565 = vmatprep.subr.mxu0 0.0
  %3566 = vmatpush1.msra.mxu0 0.0
  %3567 = vmatprep.subr.mxu0 0.0
  %3568 = vmatpush1.msra.mxu0 0.0
  %3569 = vmatprep.subr.mxu0 0.0
  %3570 = vmatpush1.msra.mxu0 0.0
  %3571 = vmatprep.subr.mxu0 0.0
  %3572 = vmatpush1.msra.mxu0 0.0
  %3573 = vmatprep.subr.mxu0 0.0
  %3574 = vmatpush1.msra.mxu0 %v2244
  %3575 = vmatprep.subr.mxu0 0.0
  %3576 = vmatpush1.msra.mxu0 %v2243
  %3577 = vmatprep.subr.mxu0 0.0
  %3578 = vmatpush1.msra.mxu0 %v2242
  %3579 = vmatprep.subr.mxu0 0.0
  %3580 = vmatpush1.msra.mxu0 %v2241
  %3581 = vmatprep.subr.mxu0 0.0
  %3582 = vmatpush2.msra.mxu0 0.0
  %3583 = vmatprep.subr.mxu0 0.0
  %3584 = vmatpush2.msra.mxu0 0.0
  %3585 = vmatprep.subr.mxu0 0.0
  %3586 = vmatpush2.msra.mxu0 0.0
  %3587 = vmatprep.subr.mxu0 0.0
  %3588 = vmatpush2.msra.mxu0 0.0
  %3589 = vmatprep.subr.mxu0 0.0
  %3590 = vmatpush2.msra.mxu0 0.0
  %3591 = vmatprep.subr.mxu0 0.0
  %3592 = vmatpush2.msra.mxu0 0.0
  %3593 = vmatprep.subr.mxu0 0.0
  %3594 = vmatpush2.msra.mxu0 0.0
  %3595 = vmatprep.subr.mxu0 0.0
  %3596 = vmatpush2.msra.mxu0 0.0
  %3597 = vmatprep.subr.mxu0 0.0
  %3598 = vmatpush2.msra.mxu0 0.0
  %3599 = vmatprep.subr.mxu0 0.0
  %3600 = vmatpush2.msra.mxu0 0.0
  %3601 = vmatprep.subr.mxu0 0.0
  %3602 = vmatpush2.msra.mxu0 0.0
  %3603 = vmatprep.subr.mxu0 0.0
  %3604 = vmatpush2.msra.mxu0 0.0
  %3605 = vmatprep.subr.mxu0 0.0
  %3606 = vmatpush2.msra.mxu0 0.0
  %3607 = vmatprep.subr.mxu0 0.0
  %3608 = vmatpush2.msra.mxu0 0.0
  %3609 = vmatprep.subr.mxu0 0.0
  %3610 = vmatpush2.msra.mxu0 0.0
  %3611 = vmatprep.subr.mxu0 0.0
  %3612 = vmatpush2.msra.mxu0 0.0
  %3613 = vmatprep.mubr.f32.mxu0 0.0
  %3614 = vmatmul.mubr.f32.gmra.mxu0 %v3547
  %v3615 = vpop.f32.mrf.mxu0
  %v3616 = vadd.f32 0.0, %v3615
  %v3617 = vpop.f32.mrf.mxu0
  %3618 = vdwg.mxu0
  %v3620 = vrot.slane %v3616, 2
  %v3622 = vadd.f32 %v2341, %v3620
  %v3623 = vxor.u32 %v3622, 2147483648
  %v3624 = vmul.f32 %v3623, 1.442695
  %v3625 = vpow.pop %v3624
  %v3626 = vadd.f32 %v3625, 1.0
  %v3627 = vrcp.pop %v3626
  %v3628 = vmul.f32 1.0, %v3627
  %v3629 = vtanh.pop %v3622
  %v3631 = vrot.slane %v3532, 6
  %v3633 = vmul.f32 %v3628, %v3631
  %3635 = vrot.lane.b32.xlu0 %v3629, 64
  %v3636 = vpop.permute.xlu0 %3635
  %v3638 = vmul.f32 %v3628, %v3636
  %3640 = vrot.lane.b32.xlu0 %v3638, 32
  %v3641 = vpop.permute.xlu0 %3640
  %v3643 = vadd.f32 %v3633, %v3641
  %v3644 = vtanh.pop %v3643
  %3646 = vrot.lane.b32.xlu0 %v3644, 64
  %v3647 = vpop.permute.xlu0 %3646
  %v3649 = vmul.f32 %v3628, %v3647
  %3651 = vrot.lane.b32.xlu0 %v3649, 32
  %v3652 = vpop.permute.xlu0 %3651
  %3654 = vst.msk [vmem:[#allocation3 + $0x10] sm:$0xc0] %vm917, %v3652
  %v3655 = vrot.slane %v3649, 6
  %3656 = vrot.lane.b32.xlu0 %v3655, 32
  %v3657 = vpop.permute.xlu0 %3656
  %v3658 = vsel %vm481, %v3657, 0
  %3660 = vmatprep.subr.mxu0 0.0
  %3661 = vmatpush1.msra.mxu0 0.0
  %3662 = vmatprep.subr.mxu0 0.0
  %3663 = vmatpush1.msra.mxu0 0.0
  %3664 = vmatprep.subr.mxu0 0.0
  %3665 = vmatpush1.msra.mxu0 0.0
  %3666 = vmatprep.subr.mxu0 0.0
  %3667 = vmatpush1.msra.mxu0 0.0
  %3668 = vmatprep.subr.mxu0 0.0
  %3669 = vmatpush1.msra.mxu0 0.0
  %3670 = vmatprep.subr.mxu0 0.0
  %3671 = vmatpush1.msra.mxu0 0.0
  %3672 = vmatprep.subr.mxu0 0.0
  %3673 = vmatpush1.msra.mxu0 0.0
  %3674 = vmatprep.subr.mxu0 0.0
  %3675 = vmatpush1.msra.mxu0 0.0
  %3676 = vmatprep.subr.mxu0 0.0
  %3677 = vmatpush1.msra.mxu0 0.0
  %3678 = vmatprep.subr.mxu0 0.0
  %3679 = vmatpush1.msra.mxu0 0.0
  %3680 = vmatprep.subr.mxu0 0.0
  %3681 = vmatpush1.msra.mxu0 0.0
  %3682 = vmatprep.subr.mxu0 0.0
  %3683 = vmatpush1.msra.mxu0 0.0
  %3684 = vmatprep.subr.mxu0 0.0
  %3685 = vmatpush1.msra.mxu0 %v2244
  %3686 = vmatprep.subr.mxu0 0.0
  %3687 = vmatpush1.msra.mxu0 %v2243
  %3688 = vmatprep.subr.mxu0 0.0
  %3689 = vmatpush1.msra.mxu0 %v2242
  %3690 = vmatprep.subr.mxu0 0.0
  %3691 = vmatpush1.msra.mxu0 %v2241
  %3692 = vmatprep.subr.mxu0 0.0
  %3693 = vmatpush2.msra.mxu0 0.0
  %3694 = vmatprep.subr.mxu0 0.0
  %3695 = vmatpush2.msra.mxu0 0.0
  %3696 = vmatprep.subr.mxu0 0.0
  %3697 = vmatpush2.msra.mxu0 0.0
  %3698 = vmatprep.subr.mxu0 0.0
  %3699 = vmatpush2.msra.mxu0 0.0
  %3700 = vmatprep.subr.mxu0 0.0
  %3701 = vmatpush2.msra.mxu0 0.0
  %3702 = vmatprep.subr.mxu0 0.0
  %3703 = vmatpush2.msra.mxu0 0.0
  %3704 = vmatprep.subr.mxu0 0.0
  %3705 = vmatpush2.msra.mxu0 0.0
  %3706 = vmatprep.subr.mxu0 0.0
  %3707 = vmatpush2.msra.mxu0 0.0
  %3708 = vmatprep.subr.mxu0 0.0
  %3709 = vmatpush2.msra.mxu0 0.0
  %3710 = vmatprep.subr.mxu0 0.0
  %3711 = vmatpush2.msra.mxu0 0.0
  %3712 = vmatprep.subr.mxu0 0.0
  %3713 = vmatpush2.msra.mxu0 0.0
  %3714 = vmatprep.subr.mxu0 0.0
  %3715 = vmatpush2.msra.mxu0 0.0
  %3716 = vmatprep.subr.mxu0 0.0
  %3717 = vmatpush2.msra.mxu0 0.0
  %3718 = vmatprep.subr.mxu0 0.0
  %3719 = vmatpush2.msra.mxu0 0.0
  %3720 = vmatprep.subr.mxu0 0.0
  %3721 = vmatpush2.msra.mxu0 0.0
  %3722 = vmatprep.subr.mxu0 0.0
  %3723 = vmatpush2.msra.mxu0 0.0
  %3724 = vmatprep.mubr.f32.mxu0 0.0
  %3725 = vmatmul.mubr.f32.gmra.mxu0 %v3658
  %v3726 = vpop.f32.mrf.mxu0
  %v3727 = vadd.f32 0.0, %v3726
  %v3728 = vpop.f32.mrf.mxu0
  %3729 = vdwg.mxu0
  %v3730 = vadd.f32 %v2346, %v3727
  %v3731 = vxor.u32 %v3730, 2147483648
  %v3732 = vmul.f32 %v3731, 1.442695
  %v3733 = vpow.pop %v3732
  %v3734 = vadd.f32 %v3733, 1.0
  %v3735 = vrcp.pop %v3734
  %v3736 = vmul.f32 1.0, %v3735
  %v3737 = vtanh.pop %v3730
  %v3739 = vrot.slane %v3643, 6
  %v3741 = vmul.f32 %v3736, %v3739
  %3743 = vrot.lane.b32.xlu0 %v3737, 64
  %v3744 = vpop.permute.xlu0 %3743
  %v3746 = vmul.f32 %v3736, %v3744
  %3748 = vrot.lane.b32.xlu0 %v3746, 32
  %v3749 = vpop.permute.xlu0 %3748
  %v3751 = vadd.f32 %v3741, %v3749
  %v3752 = vtanh.pop %v3751
  %3754 = vrot.lane.b32.xlu0 %v3752, 64
  %v3755 = vpop.permute.xlu0 %3754
  %v3757 = vmul.f32 %v3736, %v3755
  %3759 = vrot.lane.b32.xlu0 %v3757, 32
  %v3760 = vpop.permute.xlu0 %3759
  %3762 = vst.msk [vmem:[#allocation3 + $0x18] sm:$0x3] %vm584, %v3760
  %v3763 = vsel %vm481, %v3760, 0
  %3765 = vmatprep.subr.mxu0 0.0
  %3766 = vmatpush1.msra.mxu0 0.0
  %3767 = vmatprep.subr.mxu0 0.0
  %3768 = vmatpush1.msra.mxu0 0.0
  %3769 = vmatprep.subr.mxu0 0.0
  %3770 = vmatpush1.msra.mxu0 0.0
  %3771 = vmatprep.subr.mxu0 0.0
  %3772 = vmatpush1.msra.mxu0 0.0
  %3773 = vmatprep.subr.mxu0 0.0
  %3774 = vmatpush1.msra.mxu0 0.0
  %3775 = vmatprep.subr.mxu0 0.0
  %3776 = vmatpush1.msra.mxu0 0.0
  %3777 = vmatprep.subr.mxu0 0.0
  %3778 = vmatpush1.msra.mxu0 0.0
  %3779 = vmatprep.subr.mxu0 0.0
  %3780 = vmatpush1.msra.mxu0 0.0
  %3781 = vmatprep.subr.mxu0 0.0
  %3782 = vmatpush1.msra.mxu0 0.0
  %3783 = vmatprep.subr.mxu0 0.0
  %3784 = vmatpush1.msra.mxu0 0.0
  %3785 = vmatprep.subr.mxu0 0.0
  %3786 = vmatpush1.msra.mxu0 0.0
  %3787 = vmatprep.subr.mxu0 0.0
  %3788 = vmatpush1.msra.mxu0 0.0
  %3789 = vmatprep.subr.mxu0 0.0
  %3790 = vmatpush1.msra.mxu0 %v2244
  %3791 = vmatprep.subr.mxu0 0.0
  %3792 = vmatpush1.msra.mxu0 %v2243
  %3793 = vmatprep.subr.mxu0 0.0
  %3794 = vmatpush1.msra.mxu0 %v2242
  %3795 = vmatprep.subr.mxu0 0.0
  %3796 = vmatpush1.msra.mxu0 %v2241
  %3797 = vmatprep.subr.mxu0 0.0
  %3798 = vmatpush2.msra.mxu0 0.0
  %3799 = vmatprep.subr.mxu0 0.0
  %3800 = vmatpush2.msra.mxu0 0.0
  %3801 = vmatprep.subr.mxu0 0.0
  %3802 = vmatpush2.msra.mxu0 0.0
  %3803 = vmatprep.subr.mxu0 0.0
  %3804 = vmatpush2.msra.mxu0 0.0
  %3805 = vmatprep.subr.mxu0 0.0
  %3806 = vmatpush2.msra.mxu0 0.0
  %3807 = vmatprep.subr.mxu0 0.0
  %3808 = vmatpush2.msra.mxu0 0.0
  %3809 = vmatprep.subr.mxu0 0.0
  %3810 = vmatpush2.msra.mxu0 0.0
  %3811 = vmatprep.subr.mxu0 0.0
  %3812 = vmatpush2.msra.mxu0 0.0
  %3813 = vmatprep.subr.mxu0 0.0
  %3814 = vmatpush2.msra.mxu0 0.0
  %3815 = vmatprep.subr.mxu0 0.0
  %3816 = vmatpush2.msra.mxu0 0.0
  %3817 = vmatprep.subr.mxu0 0.0
  %3818 = vmatpush2.msra.mxu0 0.0
  %3819 = vmatprep.subr.mxu0 0.0
  %3820 = vmatpush2.msra.mxu0 0.0
  %3821 = vmatprep.subr.mxu0 0.0
  %3822 = vmatpush2.msra.mxu0 0.0
  %3823 = vmatprep.subr.mxu0 0.0
  %3824 = vmatpush2.msra.mxu0 0.0
  %3825 = vmatprep.subr.mxu0 0.0
  %3826 = vmatpush2.msra.mxu0 0.0
  %3827 = vmatprep.subr.mxu0 0.0
  %3828 = vmatpush2.msra.mxu0 0.0
  %3829 = vmatprep.mubr.f32.mxu0 0.0
  %3830 = vmatmul.mubr.f32.gmra.mxu0 %v3763
  %v3831 = vpop.f32.mrf.mxu0
  %v3832 = vadd.f32 0.0, %v3831
  %v3833 = vpop.f32.mrf.mxu0
  %3834 = vdwg.mxu0
  %v3836 = vrot.slane %v3832, 6
  %v3838 = vadd.f32 %v2346, %v3836
  %v3839 = vxor.u32 %v3838, 2147483648
  %v3840 = vmul.f32 %v3839, 1.442695
  %v3841 = vpow.pop %v3840
  %v3842 = vadd.f32 %v3841, 1.0
  %v3843 = vrcp.pop %v3842
  %v3844 = vmul.f32 1.0, %v3843
  %v3845 = vtanh.pop %v3838
  %v3847 = vrot.slane %v3751, 6
  %v3849 = vmul.f32 %v3844, %v3847
  %3851 = vrot.lane.b32.xlu0 %v3845, 64
  %v3852 = vpop.permute.xlu0 %3851
  %v3854 = vmul.f32 %v3844, %v3852
  %3856 = vrot.lane.b32.xlu0 %v3854, 32
  %v3857 = vpop.permute.xlu0 %3856
  %v3859 = vadd.f32 %v3849, %v3857
  %v3860 = vtanh.pop %v3859
  %3862 = vrot.lane.b32.xlu0 %v3860, 64
  %v3863 = vpop.permute.xlu0 %3862
  %v3865 = vmul.f32 %v3844, %v3863
  %3867 = vrot.lane.b32.xlu0 %v3865, 32
  %v3868 = vpop.permute.xlu0 %3867
  %3870 = vst.msk [vmem:[#allocation3 + $0x18] sm:$0xc] %vm693, %v3868
  %v3871 = vrot.slane %v3865, 2
  %3872 = vrot.lane.b32.xlu0 %v3871, 32
  %v3873 = vpop.permute.xlu0 %3872
  %v3874 = vsel %vm481, %v3873, 0
  %3876 = vmatprep.subr.mxu0 0.0
  %3877 = vmatpush1.msra.mxu0 0.0
  %3878 = vmatprep.subr.mxu0 0.0
  %3879 = vmatpush1.msra.mxu0 0.0
  %3880 = vmatprep.subr.mxu0 0.0
  %3881 = vmatpush1.msra.mxu0 0.0
  %3882 = vmatprep.subr.mxu0 0.0
  %3883 = vmatpush1.msra.mxu0 0.0
  %3884 = vmatprep.subr.mxu0 0.0
  %3885 = vmatpush1.msra.mxu0 0.0
  %3886 = vmatprep.subr.mxu0 0.0
  %3887 = vmatpush1.msra.mxu0 0.0
  %3888 = vmatprep.subr.mxu0 0.0
  %3889 = vmatpush1.msra.mxu0 0.0
  %3890 = vmatprep.subr.mxu0 0.0
  %3891 = vmatpush1.msra.mxu0 0.0
  %3892 = vmatprep.subr.mxu0 0.0
  %3893 = vmatpush1.msra.mxu0 0.0
  %3894 = vmatprep.subr.mxu0 0.0
  %3895 = vmatpush1.msra.mxu0 0.0
  %3896 = vmatprep.subr.mxu0 0.0
  %3897 = vmatpush1.msra.mxu0 0.0
  %3898 = vmatprep.subr.mxu0 0.0
  %3899 = vmatpush1.msra.mxu0 0.0
  %3900 = vmatprep.subr.mxu0 0.0
  %3901 = vmatpush1.msra.mxu0 %v2244
  %3902 = vmatprep.subr.mxu0 0.0
  %3903 = vmatpush1.msra.mxu0 %v2243
  %3904 = vmatprep.subr.mxu0 0.0
  %3905 = vmatpush1.msra.mxu0 %v2242
  %3906 = vmatprep.subr.mxu0 0.0
  %3907 = vmatpush1.msra.mxu0 %v2241
  %3908 = vmatprep.subr.mxu0 0.0
  %3909 = vmatpush2.msra.mxu0 0.0
  %3910 = vmatprep.subr.mxu0 0.0
  %3911 = vmatpush2.msra.mxu0 0.0
  %3912 = vmatprep.subr.mxu0 0.0
  %3913 = vmatpush2.msra.mxu0 0.0
  %3914 = vmatprep.subr.mxu0 0.0
  %3915 = vmatpush2.msra.mxu0 0.0
  %3916 = vmatprep.subr.mxu0 0.0
  %3917 = vmatpush2.msra.mxu0 0.0
  %3918 = vmatprep.subr.mxu0 0.0
  %3919 = vmatpush2.msra.mxu0 0.0
  %3920 = vmatprep.subr.mxu0 0.0
  %3921 = vmatpush2.msra.mxu0 0.0
  %3922 = vmatprep.subr.mxu0 0.0
  %3923 = vmatpush2.msra.mxu0 0.0
  %3924 = vmatprep.subr.mxu0 0.0
  %3925 = vmatpush2.msra.mxu0 0.0
  %3926 = vmatprep.subr.mxu0 0.0
  %3927 = vmatpush2.msra.mxu0 0.0
  %3928 = vmatprep.subr.mxu0 0.0
  %3929 = vmatpush2.msra.mxu0 0.0
  %3930 = vmatprep.subr.mxu0 0.0
  %3931 = vmatpush2.msra.mxu0 0.0
  %3932 = vmatprep.subr.mxu0 0.0
  %3933 = vmatpush2.msra.mxu0 0.0
  %3934 = vmatprep.subr.mxu0 0.0
  %3935 = vmatpush2.msra.mxu0 0.0
  %3936 = vmatprep.subr.mxu0 0.0
  %3937 = vmatpush2.msra.mxu0 0.0
  %3938 = vmatprep.subr.mxu0 0.0
  %3939 = vmatpush2.msra.mxu0 0.0
  %3940 = vmatprep.mubr.f32.mxu0 0.0
  %3941 = vmatmul.mubr.f32.gmra.mxu0 %v3874
  %v3942 = vpop.f32.mrf.mxu0
  %v3943 = vadd.f32 0.0, %v3942
  %v3944 = vpop.f32.mrf.mxu0
  %3945 = vdwg.mxu0
  %v3947 = vrot.slane %v3943, 4
  %v3949 = vadd.f32 %v2346, %v3947
  %v3950 = vxor.u32 %v3949, 2147483648
  %v3951 = vmul.f32 %v3950, 1.442695
  %v3952 = vpow.pop %v3951
  %v3953 = vadd.f32 %v3952, 1.0
  %v3954 = vrcp.pop %v3953
  %v3955 = vmul.f32 1.0, %v3954
  %v3956 = vtanh.pop %v3949
  %v3958 = vrot.slane %v3859, 6
  %v3960 = vmul.f32 %v3955, %v3958
  %3962 = vrot.lane.b32.xlu0 %v3956, 64
  %v3963 = vpop.permute.xlu0 %3962
  %v3965 = vmul.f32 %v3955, %v3963
  %3967 = vrot.lane.b32.xlu0 %v3965, 32
  %v3968 = vpop.permute.xlu0 %3967
  %v3970 = vadd.f32 %v3960, %v3968
  %v3971 = vtanh.pop %v3970
  %3973 = vrot.lane.b32.xlu0 %v3971, 64
  %v3974 = vpop.permute.xlu0 %3973
  %v3976 = vmul.f32 %v3955, %v3974
  %3978 = vrot.lane.b32.xlu0 %v3976, 32
  %v3979 = vpop.permute.xlu0 %3978
  %3981 = vst.msk [vmem:[#allocation3 + $0x18] sm:$0x30] %vm805, %v3979
  %v3982 = vrot.slane %v3976, 4
  %3983 = vrot.lane.b32.xlu0 %v3982, 32
  %v3984 = vpop.permute.xlu0 %3983
  %v3985 = vsel %vm481, %v3984, 0
  %3987 = vmatprep.subr.mxu0 0.0
  %3988 = vmatpush1.msra.mxu0 0.0
  %3989 = vmatprep.subr.mxu0 0.0
  %3990 = vmatpush1.msra.mxu0 0.0
  %3991 = vmatprep.subr.mxu0 0.0
  %3992 = vmatpush1.msra.mxu0 0.0
  %3993 = vmatprep.subr.mxu0 0.0
  %3994 = vmatpush1.msra.mxu0 0.0
  %3995 = vmatprep.subr.mxu0 0.0
  %3996 = vmatpush1.msra.mxu0 0.0
  %3997 = vmatprep.subr.mxu0 0.0
  %3998 = vmatpush1.msra.mxu0 0.0
  %3999 = vmatprep.subr.mxu0 0.0
  %4000 = vmatpush1.msra.mxu0 0.0
  %4001 = vmatprep.subr.mxu0 0.0
  %4002 = vmatpush1.msra.mxu0 0.0
  %4003 = vmatprep.subr.mxu0 0.0
  %4004 = vmatpush1.msra.mxu0 0.0
  %4005 = vmatprep.subr.mxu0 0.0
  %4006 = vmatpush1.msra.mxu0 0.0
  %4007 = vmatprep.subr.mxu0 0.0
  %4008 = vmatpush1.msra.mxu0 0.0
  %4009 = vmatprep.subr.mxu0 0.0
  %4010 = vmatpush1.msra.mxu0 0.0
  %4011 = vmatprep.subr.mxu0 0.0
  %4012 = vmatpush1.msra.mxu0 %v2244
  %4013 = vmatprep.subr.mxu0 0.0
  %4014 = vmatpush1.msra.mxu0 %v2243
  %4015 = vmatprep.subr.mxu0 0.0
  %4016 = vmatpush1.msra.mxu0 %v2242
  %4017 = vmatprep.subr.mxu0 0.0
  %4018 = vmatpush1.msra.mxu0 %v2241
  %4019 = vmatprep.subr.mxu0 0.0
  %4020 = vmatpush2.msra.mxu0 0.0
  %4021 = vmatprep.subr.mxu0 0.0
  %4022 = vmatpush2.msra.mxu0 0.0
  %4023 = vmatprep.subr.mxu0 0.0
  %4024 = vmatpush2.msra.mxu0 0.0
  %4025 = vmatprep.subr.mxu0 0.0
  %4026 = vmatpush2.msra.mxu0 0.0
  %4027 = vmatprep.subr.mxu0 0.0
  %4028 = vmatpush2.msra.mxu0 0.0
  %4029 = vmatprep.subr.mxu0 0.0
  %4030 = vmatpush2.msra.mxu0 0.0
  %4031 = vmatprep.subr.mxu0 0.0
  %4032 = vmatpush2.msra.mxu0 0.0
  %4033 = vmatprep.subr.mxu0 0.0
  %4034 = vmatpush2.msra.mxu0 0.0
  %4035 = vmatprep.subr.mxu0 0.0
  %4036 = vmatpush2.msra.mxu0 0.0
  %4037 = vmatprep.subr.mxu0 0.0
  %4038 = vmatpush2.msra.mxu0 0.0
  %4039 = vmatprep.subr.mxu0 0.0
  %4040 = vmatpush2.msra.mxu0 0.0
  %4041 = vmatprep.subr.mxu0 0.0
  %4042 = vmatpush2.msra.mxu0 0.0
  %4043 = vmatprep.subr.mxu0 0.0
  %4044 = vmatpush2.msra.mxu0 0.0
  %4045 = vmatprep.subr.mxu0 0.0
  %4046 = vmatpush2.msra.mxu0 0.0
  %4047 = vmatprep.subr.mxu0 0.0
  %4048 = vmatpush2.msra.mxu0 0.0
  %4049 = vmatprep.subr.mxu0 0.0
  %4050 = vmatpush2.msra.mxu0 0.0
  %4051 = vmatprep.mubr.f32.mxu0 0.0
  %4052 = vmatmul.mubr.f32.gmra.mxu0 %v3985
  %v4053 = vpop.f32.mrf.mxu0
  %v4054 = vadd.f32 0.0, %v4053
  %v4055 = vpop.f32.mrf.mxu0
  %4056 = vdwg.mxu0
  %v4058 = vrot.slane %v4054, 2
  %v4060 = vadd.f32 %v2346, %v4058
  %v4061 = vxor.u32 %v4060, 2147483648
  %v4062 = vmul.f32 %v4061, 1.442695
  %v4063 = vpow.pop %v4062
  %v4064 = vadd.f32 %v4063, 1.0
  %v4065 = vrcp.pop %v4064
  %v4066 = vmul.f32 1.0, %v4065
  %v4067 = vtanh.pop %v4060
  %v4069 = vrot.slane %v3970, 6
  %v4071 = vmul.f32 %v4066, %v4069
  %4073 = vrot.lane.b32.xlu0 %v4067, 64
  %v4074 = vpop.permute.xlu0 %4073
  %v4076 = vmul.f32 %v4066, %v4074
  %4078 = vrot.lane.b32.xlu0 %v4076, 32
  %v4079 = vpop.permute.xlu0 %4078
  %v4081 = vadd.f32 %v4071, %v4079
  %v4082 = vtanh.pop %v4081
  %4084 = vrot.lane.b32.xlu0 %v4082, 64
  %v4085 = vpop.permute.xlu0 %4084
  %v4087 = vmul.f32 %v4066, %v4085
  %4089 = vrot.lane.b32.xlu0 %v4087, 32
  %v4090 = vpop.permute.xlu0 %4089
  %4092 = vst.msk [vmem:[#allocation3 + $0x18] sm:$0xc0] %vm917, %v4090
  %v4093 = vld [vmem:[#allocation3] sm:$0xff]
  %v4094 = vld [vmem:[#allocation3 + $0x8] sm:$0xff]
  %v4095 = vld [vmem:[#allocation3 + $0x10] sm:$0xff]
  %v4096 = vld [vmem:[#allocation3 + $0x18] sm:$0xff]
  %v4097 = vld [vmem:[%s12] sm:$0xff]
  %v4098 = vld [vmem:[%s12 + $0x8] sm:$0xff]
  %v4099 = vld [vmem:[%s12 + $0x10] sm:$0xff]
  %v4100 = vld [vmem:[%s12 + $0x18] sm:$0xff]
  %v4101 = vld [vmem:[%s13] sm:$0x1]
  %v4103 = vlaneseq
  %v4104 = vshrl.u32 %v4103, 7
  %v4105 = vsub.s32 0, %v4104
  %v4106 = vrot.slane %v4101, %v4105
  %v4109 = vsel %vm481, %v4093, 0
  %v4112 = vsel %vm481, %v4094, 0
  %v4115 = vsel %vm481, %v4095, 0
  %v4118 = vsel %vm481, %v4096, 0
  %4120 = vmatprep.subr.mxu0 0.0
  %4121 = vmatpush1.msra.mxu0 0.0
  %4122 = vmatprep.subr.mxu0 0.0
  %4123 = vmatpush1.msra.mxu0 0.0
  %4124 = vmatprep.subr.mxu0 0.0
  %4125 = vmatpush1.msra.mxu0 0.0
  %4126 = vmatprep.subr.mxu0 0.0
  %4127 = vmatpush1.msra.mxu0 0.0
  %4128 = vmatprep.subr.mxu0 0.0
  %4129 = vmatpush1.msra.mxu0 0.0
  %4130 = vmatprep.subr.mxu0 0.0
  %4131 = vmatpush1.msra.mxu0 0.0
  %4132 = vmatprep.subr.mxu0 0.0
  %4133 = vmatpush1.msra.mxu0 0.0
  %4134 = vmatprep.subr.mxu0 0.0
  %4135 = vmatpush1.msra.mxu0 0.0
  %4136 = vmatprep.subr.mxu0 0.0
  %4137 = vmatpush1.msra.mxu0 0.0
  %4138 = vmatprep.subr.mxu0 0.0
  %4139 = vmatpush1.msra.mxu0 0.0
  %4140 = vmatprep.subr.mxu0 0.0
  %4141 = vmatpush1.msra.mxu0 0.0
  %4142 = vmatprep.subr.mxu0 0.0
  %4143 = vmatpush1.msra.mxu0 0.0
  %4144 = vmatprep.subr.mxu0 0.0
  %4145 = vmatpush1.msra.mxu0 %v4100
  %4146 = vmatprep.subr.mxu0 0.0
  %4147 = vmatpush1.msra.mxu0 %v4099
  %4148 = vmatprep.subr.mxu0 0.0
  %4149 = vmatpush1.msra.mxu0 %v4098
  %4150 = vmatprep.subr.mxu0 0.0
  %4151 = vmatpush1.msra.mxu0 %v4097
  %4152 = vmatprep.subr.mxu0 0.0
  %4153 = vmatpush2.msra.mxu0 0.0
  %4154 = vmatprep.subr.mxu0 0.0
  %4155 = vmatpush2.msra.mxu0 0.0
  %4156 = vmatprep.subr.mxu0 0.0
  %4157 = vmatpush2.msra.mxu0 0.0
  %4158 = vmatprep.subr.mxu0 0.0
  %4159 = vmatpush2.msra.mxu0 0.0
  %4160 = vmatprep.subr.mxu0 0.0
  %4161 = vmatpush2.msra.mxu0 0.0
  %4162 = vmatprep.subr.mxu0 0.0
  %4163 = vmatpush2.msra.mxu0 0.0
  %4164 = vmatprep.subr.mxu0 0.0
  %4165 = vmatpush2.msra.mxu0 0.0
  %4166 = vmatprep.subr.mxu0 0.0
  %4167 = vmatpush2.msra.mxu0 0.0
  %4168 = vmatprep.subr.mxu0 0.0
  %4169 = vmatpush2.msra.mxu0 0.0
  %4170 = vmatprep.subr.mxu0 0.0
  %4171 = vmatpush2.msra.mxu0 0.0
  %4172 = vmatprep.subr.mxu0 0.0
  %4173 = vmatpush2.msra.mxu0 0.0
  %4174 = vmatprep.subr.mxu0 0.0
  %4175 = vmatpush2.msra.mxu0 0.0
  %4176 = vmatprep.subr.mxu0 0.0
  %4177 = vmatpush2.msra.mxu0 0.0
  %4178 = vmatprep.subr.mxu0 0.0
  %4179 = vmatpush2.msra.mxu0 0.0
  %4180 = vmatprep.subr.mxu0 0.0
  %4181 = vmatpush2.msra.mxu0 0.0
  %4182 = vmatprep.subr.mxu0 0.0
  %4183 = vmatpush2.msra.mxu0 0.0
  %4184 = vmatprep.mubr.f32.mxu0 0.0
  %4185 = vmatmul.mubr.f32.gmra.mxu0 %v4109
  %v4186 = vpop.f32.mrf.mxu0
  %v4187 = vadd.f32 %v4106, %v4186
  %v4188 = vpop.f32.mrf.mxu0
  %4189 = vmatprep.mubr.f32.mxu0 0.0
  %4190 = vmatmul.mubr.f32.gmra.mxu0 %v4112
  %v4191 = vpop.f32.mrf.mxu0
  %v4192 = vadd.f32 %v4106, %v4191
  %v4193 = vpop.f32.mrf.mxu0
  %4194 = vmatprep.mubr.f32.mxu0 0.0
  %4195 = vmatmul.mubr.f32.gmra.mxu0 %v4115
  %v4196 = vpop.f32.mrf.mxu0
  %v4197 = vadd.f32 %v4106, %v4196
  %v4198 = vpop.f32.mrf.mxu0
  %4199 = vmatprep.mubr.f32.mxu0 0.0
  %4200 = vmatmul.mubr.f32.gmra.mxu0 %v4118
  %v4201 = vpop.f32.mrf.mxu0
  %v4202 = vadd.f32 %v4106, %v4201
  %v4203 = vpop.f32.mrf.mxu0
  %4204 = vdwg.mxu0
  %v4205 = vmax.f32 %v4187, 0.0
  %v4206 = vmax.f32 %v4192, 0.0
  %v4207 = vmax.f32 %v4197, 0.0
  %v4208 = vmax.f32 %v4202, 0.0
  %v4209 = vld [vmem:[%s14] sm:$0xff]
  %v4210 = vld [vmem:[%s14 + $0x8] sm:$0xff]
  %v4211 = vld [vmem:[#allocation4] sm:$0x1]
  %v4213 = vlaneseq
  %v4214 = vshrl.u32 %v4213, 7
  %v4215 = vsub.s32 0, %v4214
  %v4216 = vrot.slane %v4211, %v4215
  %v4219 = vsel %vm58, %v4205, 0
  %v4222 = vsel %vm58, %v4206, 0
  %v4225 = vsel %vm58, %v4207, 0
  %v4228 = vsel %vm58, %v4208, 0
  %4230 = vmatprep.subr.mxu0 0.0
  %4231 = vmatpush1.msra.mxu0 0.0
  %4232 = vmatprep.subr.mxu0 0.0
  %4233 = vmatpush1.msra.mxu0 0.0
  %4234 = vmatprep.subr.mxu0 0.0
  %4235 = vmatpush1.msra.mxu0 0.0
  %4236 = vmatprep.subr.mxu0 0.0
  %4237 = vmatpush1.msra.mxu0 0.0
  %4238 = vmatprep.subr.mxu0 0.0
  %4239 = vmatpush1.msra.mxu0 0.0
  %4240 = vmatprep.subr.mxu0 0.0
  %4241 = vmatpush1.msra.mxu0 0.0
  %4242 = vmatprep.subr.mxu0 0.0
  %4243 = vmatpush1.msra.mxu0 0.0
  %4244 = vmatprep.subr.mxu0 0.0
  %4245 = vmatpush1.msra.mxu0 0.0
  %4246 = vmatprep.subr.mxu0 0.0
  %4247 = vmatpush1.msra.mxu0 0.0
  %4248 = vmatprep.subr.mxu0 0.0
  %4249 = vmatpush1.msra.mxu0 0.0
  %4250 = vmatprep.subr.mxu0 0.0
  %4251 = vmatpush1.msra.mxu0 0.0
  %4252 = vmatprep.subr.mxu0 0.0
  %4253 = vmatpush1.msra.mxu0 0.0
  %4254 = vmatprep.subr.mxu0 0.0
  %4255 = vmatpush1.msra.mxu0 0.0
  %4256 = vmatprep.subr.mxu0 0.0
  %4257 = vmatpush1.msra.mxu0 0.0
  %4258 = vmatprep.subr.mxu0 0.0
  %4259 = vmatpush1.msra.mxu0 %v4210
  %4260 = vmatprep.subr.mxu0 0.0
  %4261 = vmatpush1.msra.mxu0 %v4209
  %4262 = vmatprep.subr.mxu0 0.0
  %4263 = vmatpush2.msra.mxu0 0.0
  %4264 = vmatprep.subr.mxu0 0.0
  %4265 = vmatpush2.msra.mxu0 0.0
  %4266 = vmatprep.subr.mxu0 0.0
  %4267 = vmatpush2.msra.mxu0 0.0
  %4268 = vmatprep.subr.mxu0 0.0
  %4269 = vmatpush2.msra.mxu0 0.0
  %4270 = vmatprep.subr.mxu0 0.0
  %4271 = vmatpush2.msra.mxu0 0.0
  %4272 = vmatprep.subr.mxu0 0.0
  %4273 = vmatpush2.msra.mxu0 0.0
  %4274 = vmatprep.subr.mxu0 0.0
  %4275 = vmatpush2.msra.mxu0 0.0
  %4276 = vmatprep.subr.mxu0 0.0
  %4277 = vmatpush2.msra.mxu0 0.0
  %4278 = vmatprep.subr.mxu0 0.0
  %4279 = vmatpush2.msra.mxu0 0.0
  %4280 = vmatprep.subr.mxu0 0.0
  %4281 = vmatpush2.msra.mxu0 0.0
  %4282 = vmatprep.subr.mxu0 0.0
  %4283 = vmatpush2.msra.mxu0 0.0
  %4284 = vmatprep.subr.mxu0 0.0
  %4285 = vmatpush2.msra.mxu0 0.0
  %4286 = vmatprep.subr.mxu0 0.0
  %4287 = vmatpush2.msra.mxu0 0.0
  %4288 = vmatprep.subr.mxu0 0.0
  %4289 = vmatpush2.msra.mxu0 0.0
  %4290 = vmatprep.subr.mxu0 0.0
  %4291 = vmatpush2.msra.mxu0 0.0
  %4292 = vmatprep.subr.mxu0 0.0
  %4293 = vmatpush2.msra.mxu0 0.0
  %4294 = vmatprep.mubr.f32.mxu0 0.0
  %4295 = vmatmul.mubr.f32.gmra.mxu0 %v4219
  %v4296 = vpop.f32.mrf.mxu0
  %v4297 = vadd.f32 %v4216, %v4296
  %v4298 = vpop.f32.mrf.mxu0
  %4299 = vmatprep.mubr.f32.mxu0 0.0
  %4300 = vmatmul.mubr.f32.gmra.mxu0 %v4222
  %v4301 = vpop.f32.mrf.mxu0
  %v4302 = vadd.f32 %v4216, %v4301
  %v4303 = vpop.f32.mrf.mxu0
  %4304 = vmatprep.mubr.f32.mxu0 0.0
  %4305 = vmatmul.mubr.f32.gmra.mxu0 %v4225
  %v4306 = vpop.f32.mrf.mxu0
  %v4307 = vadd.f32 %v4216, %v4306
  %v4308 = vpop.f32.mrf.mxu0
  %4309 = vmatprep.mubr.f32.mxu0 0.0
  %4310 = vmatmul.mubr.f32.gmra.mxu0 %v4228
  %v4311 = vpop.f32.mrf.mxu0
  %v4312 = vadd.f32 %v4216, %v4311
  %v4313 = vpop.f32.mrf.mxu0
  %4314 = vdwg.mxu0
  %vm4315 = vcmask 7168
  %4316 = vst.msk [vmem:[%s16] sm:$0xff] %vm4315, %v4297
  %4317 = vst.msk [vmem:[%s16 + $0x8] sm:$0xff] %vm4315, %v4302
  %4318 = vst.msk [vmem:[%s16 + $0x10] sm:$0xff] %vm4315, %v4307
  %4319 = vst.msk [vmem:[%s16 + $0x18] sm:$0xff] %vm4315, %v4312
  // Predicated region
  $region66: #{convlstm_forward.1} parent=0 // pred_check
    _
  $region67: #{convlstm_forward.1} parent=0 // pred_check_branch
    %4321 = sbr.rel (0) target = $region69
  $region68: #{convlstm_forward.1} parent=0 // pred_region
    _
  $region69: #{convlstm_forward.1} parent=0 // pred_fallthru
    _
  // Predicated region
  $region70: #{convlstm_forward.1} parent=0 // pred_check
    _
  $region71: #{convlstm_forward.1} parent=0 // pred_check_branch
    %4323 = sbr.rel (0) target = $region73
  $region72: #{convlstm_forward.1} parent=0 // pred_region
    _
  $region73: #{convlstm_forward.1} parent=0 // pred_fallthru
    _

</llo_original>
